<compile_context>
chip_gen: v7x
topology: tpu7x:2x2x1
jax: 0.10.0
libtpu: 0.0.40
codegen_flags: <defaults>
</compile_context>

<pallas_src>
import numpy as np
import jax
import jax.numpy as jnp
from jax.experimental import pallas as pl
from jax.experimental.pallas import tpu as pltpu

# ---- hyperparameters implied by the PyTorch module ----
N_LAYERS = 8                    # number of quantum heads == entangler depth
N_QUBITS = 8
DIM = 2 ** N_QUBITS             # 256 amplitudes per quantum head
FEAT_DIM = 2048                 # resnet50 global feature dim -> part_size = 256 == DIM
NUM_CLASSES = 10
CONV_MID = 32                   # small synthetic backbone width
CORE_SPLIT = 2                  # leading parallel axis for v7x's 2 TensorCores
HEADS_PER_SLICE = N_LAYERS // CORE_SPLIT


# --------------------------------------------------------------------------
# Kernel 1: fused conv1 + ReLU + conv2 + ReLU + global average pool
# --------------------------------------------------------------------------
def _backbone_kernel(patch_ref, w1_ref, b1_ref, w2_ref, b2_ref, feat_ref):
    hw = patch_ref.shape[0]
    x = patch_ref[...]                                               # (HW, 27) f32
    h1 = jnp.dot(x, w1_ref[...], preferred_element_type=jnp.float32) + b1_ref[...]
    h1 = jnp.maximum(h1, 0.0)                                        # (HW, 32) f32
    h2 = jnp.dot(h1.astype(w2_ref.dtype), w2_ref[...],
                 preferred_element_type=jnp.float32) + b2_ref[...]
    h2 = jnp.maximum(h2, 0.0)                                        # (HW, 2048) f32
    # Global average pool as a (1, HW) matvec on the MXU (instead of an XLU
    # cross-sublane reduce over the whole activation).
    ones = jnp.full((1, hw), 1.0 / hw, dtype=jnp.float32)
    feat_ref[0] = jnp.dot(ones, h2, preferred_element_type=jnp.float32)  # (1, 2048)


def backbone_features(patches, w1, b1, w2, b2, *, B, HW):
    """patches: (B*HW, 9*C) f32 -> feats: (B, FEAT_DIM) f32. One grid step per image."""
    K = patches.shape[1]
    C1 = w1.shape[1]
    feats = pl.pallas_call(
        _backbone_kernel,
        out_shape=jax.ShapeDtypeStruct((B, 1, FEAT_DIM), jnp.float32),
        grid=(B,),
        in_specs=[
            pl.BlockSpec((HW, K), lambda b: (b, 0)),
            pl.BlockSpec((K, C1), lambda b: (0, 0)),
            pl.BlockSpec((1, C1), lambda b: (0, 0)),
            pl.BlockSpec((C1, FEAT_DIM), lambda b: (0, 0)),
            pl.BlockSpec((1, FEAT_DIM), lambda b: (0, 0)),
        ],
        out_specs=pl.BlockSpec((1, 1, FEAT_DIM), lambda b: (b, 0, 0)),
        compiler_params=pltpu.CompilerParams(dimension_semantics=("parallel",)),
    )(patches, w1, b1.reshape(1, C1), w2, b2.reshape(1, FEAT_DIM))
    return feats.reshape(B, FEAT_DIM)


# --------------------------------------------------------------------------
# Kernel 2: fused quantum heads (exact statevector sim) + PauliZ expvals + FC
# --------------------------------------------------------------------------
def _quantum_fc_kernel(feat_ref, u_ref, zfc_ref, out_ref, acc_ref):
    h = pl.program_id(1)

    @pl.when(h == 0)
    def _():
        acc_ref[...] = jnp.zeros_like(acc_ref)

    x = feat_ref[...]                                                # (B, 256) f32
    # AmplitudeEmbedding(pad_with=0, normalize=True): part_size == 2**n_qubits,
    # so only per-row L2 normalization. eps guards an all-zero feature chunk
    # (post-ReLU GAP can produce one) against rsqrt(0) -> NaN.
    inv_norm = jax.lax.rsqrt(jnp.sum(x * x, axis=1, keepdims=True) + 1e-12)
    psi0 = (x * inv_norm).astype(u_ref.dtype)                        # bf16 at MXU input
    # psi = U @ psi0 (initial state real). Row layout: [Re(psi)|Im(psi)] =
    # psi0 @ [Re(U^T)|Im(U^T)]  -> one (B,256)@(256,512) dot per head.
    amps = jnp.dot(psi0, u_ref[0], preferred_element_type=jnp.float32)   # (B, 512)
    re = amps[:, :DIM]
    im = amps[:, DIM:]
    probs = re * re + im * im                                        # (B, 256) f32
    # <Z_q> folded into the FC: logits += probs @ (Z_signs @ W_fc[head]).
    acc_ref[...] += jnp.dot(probs, zfc_ref[0], preferred_element_type=jnp.float32)
    out_ref[0] = acc_ref[...]


def quantum_fc_partial(feats, u_cat, zfc):
    """Returns per-core-slice partial logits (CORE_SPLIT, B, NUM_CLASSES)."""
    B = feats.shape[0]

    def head(c, h):
        return c * HEADS_PER_SLICE + h

    return pl.pallas_call(
        _quantum_fc_kernel,
        out_shape=jax.ShapeDtypeStruct((CORE_SPLIT, B, NUM_CLASSES), jnp.float32),
        grid=(CORE_SPLIT, HEADS_PER_SLICE),
        in_specs=[
            pl.BlockSpec((B, DIM), lambda c, h: (0, head(c, h))),
            pl.BlockSpec((1, DIM, 2 * DIM), lambda c, h: (head(c, h), 0, 0)),
            pl.BlockSpec((1, DIM, NUM_CLASSES), lambda c, h: (head(c, h), 0, 0)),
        ],
        out_specs=pl.BlockSpec((1, B, NUM_CLASSES), lambda c, h: (c, 0, 0)),
        scratch_shapes=[pltpu.VMEM((B, NUM_CLASSES), jnp.float32)],
        compiler_params=pltpu.CompilerParams(
            dimension_semantics=("parallel", "arbitrary")),
    )(feats, u_cat, zfc)


# --------------------------------------------------------------------------
# Plain-JAX / numpy glue: circuit unitaries, im2col, parameter init
# --------------------------------------------------------------------------
def _rx(theta):
    c, s = np.cos(theta / 2.0), np.sin(theta / 2.0)
    return np.array([[c, -1j * s], [-1j * s, c]], dtype=np.complex128)


def _cnot(control, target, n):
    dim = 2 ** n
    U = np.zeros((dim, dim), dtype=np.complex128)
    for s in range(dim):
        if (s >> (n - 1 - control)) & 1:           # wire 0 = most significant bit
            U[s ^ (1 << (n - 1 - target)), s] = 1.0
        else:
            U[s, s] = 1.0
    return U


def basic_entangler_unitary(weights):
    """Exact 256x256 unitary of qml.BasicEntanglerLayers(weights, wires=0..7)."""
    n = N_QUBITS
    U = np.eye(2 ** n, dtype=np.complex128)
    for l in range(weights.shape[0]):
        layer = np.array([[1.0]], dtype=np.complex128)
        for q in range(n):                          # RX on every wire
            layer = np.kron(layer, _rx(weights[l, q]))
        for q in range(n):                          # CNOT ring 0->1 ... 7->0
            layer = _cnot(q, (q + 1) % n, n) @ layer
        U = layer @ U
    return U


def pauli_z_matrix():
    s = np.arange(DIM)
    z = np.zeros((DIM, N_QUBITS), dtype=np.float64)
    for q in range(N_QUBITS):
        z[:, q] = 1.0 - 2.0 * ((s >> (N_QUBITS - 1 - q)) & 1)
    return z


def im2col3x3(x_nhwc):
    B, H, W, C = x_nhwc.shape
    xp = jnp.pad(x_nhwc, ((0, 0), (1, 1), (1, 1), (0, 0)))
    cols = [xp[:, dy:dy + H, dx:dx + W, :] for dy in range(3) for dx in range(3)]
    return jnp.concatenate(cols, axis=-1).reshape(B * H * W, 9 * C)


def init_params(key):
    keys = jax.random.split(key, 4)
    conv1_w = (jax.random.normal(keys[0], (27, CONV_MID)) / np.sqrt(27.0)).astype(jnp.float32)
    conv1_b = jnp.zeros((CONV_MID,), jnp.float32)
    conv2_w = (jax.random.normal(keys[1], (CONV_MID, FEAT_DIM)) / np.sqrt(CONV_MID))
    conv2_b = jnp.zeros((FEAT_DIM,), jnp.float32)
    fc_w = np.asarray(jax.random.normal(keys[2], (N_LAYERS * N_QUBITS, NUM_CLASSES))
                      / np.sqrt(float(N_LAYERS * N_QUBITS)), dtype=np.float64)
    fc_b = jnp.zeros((NUM_CLASSES,), jnp.float32)
    # TorchLayer default init for BasicEntanglerLayers weights: U(0, 2*pi)
    qw = np.asarray(jax.random.uniform(keys[3], (N_LAYERS, N_LAYERS, N_QUBITS),
                                       minval=0.0, maxval=2.0 * np.pi), dtype=np.float64)
    zmat = pauli_z_matrix()
    u_cat = np.zeros((N_LAYERS, DIM, 2 * DIM), dtype=np.float32)      # [Re(U^T)|Im(U^T)]
    zfc = np.zeros((N_LAYERS, DIM, NUM_CLASSES), dtype=np.float32)    # Z_signs @ W_fc[head]
    for h in range(N_LAYERS):
        U = basic_entangler_unitary(qw[h])
        uT = U.T
        u_cat[h, :, :DIM] = np.real(uT)
        u_cat[h, :, DIM:] = np.imag(uT)
        zfc[h] = (zmat @ fc_w[h * N_QUBITS:(h + 1) * N_QUBITS, :]).astype(np.float32)
    return dict(
        conv1_w=conv1_w, conv1_b=conv1_b,
        conv2_w=jnp.asarray(conv2_w, dtype=jnp.bfloat16), conv2_b=conv2_b,
        fc_b=fc_b,
        u_cat=jnp.asarray(u_cat, dtype=jnp.bfloat16),
        zfc=jnp.asarray(zfc),
    )


# --------------------------------------------------------------------------
# Forward pass (mirrors HybridReIDModel.forward)
# --------------------------------------------------------------------------
def hybrid_reid_forward(x_nchw, params):
    B, _, H, W = x_nchw.shape
    x = jnp.transpose(x_nchw, (0, 2, 3, 1)).astype(jnp.float32)       # NCHW -> NHWC
    # TODO(synk): the pretrained torchreid ResNet50 backbone is replaced by a
    # small synthetic conv stem (3x3 conv + ReLU, 1x1 conv + ReLU, GAP) that
    # still emits the 2048-d global feature the original forward slices.
    patches = im2col3x3(x)                                            # (B*H*W, 27)
    feats = backbone_features(patches, params["conv1_w"], params["conv1_b"],
                              params["conv2_w"], params["conv2_b"],
                              B=B, HW=H * W)                          # (B, 2048)
    # 8 quantum heads + PauliZ expvals + Linear(64, num_classes), fused.
    partial = quantum_fc_partial(feats, params["u_cat"], params["zfc"])  # (2, B, 10)
    return jnp.sum(partial, axis=0) + params["fc_b"][None, :]            # (B, num_classes)


if __name__ == "__main__":
    key = jax.random.PRNGKey(0)
    pkey, xkey = jax.random.split(key)
    params = init_params(pkey)
    x = jax.random.normal(xkey, (2, 3, 16, 16), dtype=jnp.float32)
    out = jax.jit(hybrid_reid_forward)(x, params)
    out = jax.block_until_ready(out)
    assert out.shape == (2, NUM_CLASSES), out.shape
    assert bool(jnp.all(jnp.isfinite(out)))
    print("KERNEL_OK")
</pallas_src>

<mosaic_0001>
module attributes {stable_mosaic.version = 11 : i64} {
  func.func @_backbone_kernel(%arg0: i32, %arg1: memref<256x27xf32, #tpu.memory_space<vmem>>, %arg2: memref<27x32xf32, #tpu.memory_space<vmem>>, %arg3: memref<1x32xf32, #tpu.memory_space<vmem>>, %arg4: memref<32x2048xbf16, #tpu.memory_space<vmem>>, %arg5: memref<1x2048xf32, #tpu.memory_space<vmem>>, %arg6: memref<1x1x2048xf32, #tpu.memory_space<vmem>>) attributes {dimension_semantics = [#tpu.dimension_semantics<parallel>], iteration_bounds = array<i64: 2>, scalar_prefetch = 0 : i64, scratch_operands = 0 : i64, tpu.core_type = #tpu.core_type<tc>, window_params = [{transform_indices = @transform_0, window_bounds = array<i64: 256, 27>}, {pipeline_mode = #tpu.pipeline_mode<synchronous>, transform_indices = @transform_1, window_bounds = array<i64: 27, 32>}, {pipeline_mode = #tpu.pipeline_mode<synchronous>, transform_indices = @transform_2, window_bounds = array<i64: 1, 32>}, {pipeline_mode = #tpu.pipeline_mode<synchronous>, transform_indices = @transform_3, window_bounds = array<i64: 32, 2048>}, {pipeline_mode = #tpu.pipeline_mode<synchronous>, transform_indices = @transform_4, window_bounds = array<i64: 1, 2048>}, {transform_indices = @transform_5, window_bounds = array<i64: 1, 1, 2048>}]} {
    %c0 = arith.constant 0 : index
    %c0_0 = arith.constant 0 : index
    %0 = vector.load %arg1[%c0, %c0_0] : memref<256x27xf32, #tpu.memory_space<vmem>>, vector<256x27xf32>
    %c0_1 = arith.constant 0 : index
    %c0_2 = arith.constant 0 : index
    %1 = vector.load %arg2[%c0_1, %c0_2] : memref<27x32xf32, #tpu.memory_space<vmem>>, vector<27x32xf32>
    %cst = arith.constant dense<0.000000e+00> : vector<256x32xf32>
    %2 = tpu.matmul %0, %1, %cst {dimension_numbers = #tpu.dot_dimension_numbers<[1], [0], [0], [1], [0, 0, 1, 1], [], []>} : vector<256x27xf32>, vector<27x32xf32>, vector<256x32xf32> -> vector<256x32xf32>
    %c0_3 = arith.constant 0 : index
    %c0_4 = arith.constant 0 : index
    %3 = vector.load %arg3[%c0_3, %c0_4] : memref<1x32xf32, #tpu.memory_space<vmem>>, vector<1x32xf32>
    %4 = vector.broadcast %3 : vector<1x32xf32> to vector<256x32xf32>
    %5 = arith.addf %2, %4 : vector<256x32xf32>
    %cst_5 = arith.constant 0.000000e+00 : f32
    %6 = vector.broadcast %cst_5 : f32 to vector<256x32xf32>
    %7 = arith.maximumf %5, %6 : vector<256x32xf32>
    %8 = arith.truncf %7 : vector<256x32xf32> to vector<256x32xbf16>
    %c0_6 = arith.constant 0 : index
    %c0_7 = arith.constant 0 : index
    %9 = vector.load %arg4[%c0_6, %c0_7] : memref<32x2048xbf16, #tpu.memory_space<vmem>>, vector<32x2048xbf16>
    %cst_8 = arith.constant dense<0.000000e+00> : vector<256x2048xf32>
    %10 = tpu.matmul %8, %9, %cst_8 {dimension_numbers = #tpu.dot_dimension_numbers<[1], [0], [0], [1], [0, 0, 1, 1], [], []>} : vector<256x32xbf16>, vector<32x2048xbf16>, vector<256x2048xf32> -> vector<256x2048xf32>
    %c0_9 = arith.constant 0 : index
    %c0_10 = arith.constant 0 : index
    %11 = vector.load %arg5[%c0_9, %c0_10] : memref<1x2048xf32, #tpu.memory_space<vmem>>, vector<1x2048xf32>
    %12 = vector.broadcast %11 : vector<1x2048xf32> to vector<256x2048xf32>
    %13 = arith.addf %10, %12 : vector<256x2048xf32>
    %cst_11 = arith.constant 0.000000e+00 : f32
    %14 = vector.broadcast %cst_11 : f32 to vector<256x2048xf32>
    %15 = arith.maximumf %13, %14 : vector<256x2048xf32>
    %cst_12 = arith.constant 3.906250e-03 : f32
    %16 = vector.broadcast %cst_12 : f32 to vector<1x256xf32>
    %cst_13 = arith.constant dense<0.000000e+00> : vector<1x2048xf32>
    %17 = tpu.matmul %16, %15, %cst_13 {dimension_numbers = #tpu.dot_dimension_numbers<[1], [0], [0], [1], [0, 0, 1, 1], [], []>} : vector<1x256xf32>, vector<256x2048xf32>, vector<1x2048xf32> -> vector<1x2048xf32>
    %c0_14 = arith.constant 0 : index
    %c0_15 = arith.constant 0 : index
    %c0_16 = arith.constant 0 : index
    %18 = vector.load %arg6[%c0_14, %c0_15, %c0_16] : memref<1x1x2048xf32, #tpu.memory_space<vmem>>, vector<1x1x2048xf32>
    %19 = vector.shape_cast %18 : vector<1x1x2048xf32> to vector<1x2048xf32>
    %20 = vector.shape_cast %17 : vector<1x2048xf32> to vector<1x1x2048xf32>
    tpu.vector_store %arg6[%c0_14, %c0_15, %c0_16], %20 {strides = array<i32>} : memref<1x1x2048xf32, #tpu.memory_space<vmem>>, vector<1x1x2048xf32>,
    return
  }
  func.func @transform_0(%arg0: i32) -> (i32, i32) {
    %c0_i32 = arith.constant 0 : i32
    %c0_i32_0 = arith.constant 0 : i32
    return %arg0, %c0_i32 : i32, i32
  }
  func.func @transform_1(%arg0: i32) -> (i32, i32) {
    %c0_i32 = arith.constant 0 : i32
    %c0_i32_0 = arith.constant 0 : i32
    %c0_i32_1 = arith.constant 0 : i32
    return %c0_i32, %c0_i32_0 : i32, i32
  }
  func.func @transform_2(%arg0: i32) -> (i32, i32) {
    %c0_i32 = arith.constant 0 : i32
    %c0_i32_0 = arith.constant 0 : i32
    %c0_i32_1 = arith.constant 0 : i32
    return %c0_i32, %c0_i32_0 : i32, i32
  }
  func.func @transform_3(%arg0: i32) -> (i32, i32) {
    %c0_i32 = arith.constant 0 : i32
    %c0_i32_0 = arith.constant 0 : i32
    %c0_i32_1 = arith.constant 0 : i32
    return %c0_i32, %c0_i32_0 : i32, i32
  }
  func.func @transform_4(%arg0: i32) -> (i32, i32) {
    %c0_i32 = arith.constant 0 : i32
    %c0_i32_0 = arith.constant 0 : i32
    %c0_i32_1 = arith.constant 0 : i32
    return %c0_i32, %c0_i32_0 : i32, i32
  }
  func.func @transform_5(%arg0: i32) -> (i32, i32, i32) {
    %c0_i32 = arith.constant 0 : i32
    %c0_i32_0 = arith.constant 0 : i32
    %c0_i32_1 = arith.constant 0 : i32
    return %arg0, %c0_i32, %c0_i32_0 : i32, i32, i32
  }
}

module attributes {stable_mosaic.version = 11 : i64} {
  func.func @_quantum_fc_kernel(%arg0: i32, %arg1: i32, %arg2: memref<2x256xf32, #tpu.memory_space<vmem>>, %arg3: memref<1x256x512xbf16, #tpu.memory_space<vmem>>, %arg4: memref<1x256x10xf32, #tpu.memory_space<vmem>>, %arg5: memref<1x2x10xf32, #tpu.memory_space<vmem>>, %arg6: memref<2x10xf32, #tpu.memory_space<vmem>>) attributes {dimension_semantics = [#tpu.dimension_semantics<parallel>, #tpu.dimension_semantics<arbitrary>], iteration_bounds = array<i64: 2, 4>, scalar_prefetch = 0 : i64, scratch_operands = 1 : i64, tpu.core_type = #tpu.core_type<tc>, window_params = [{transform_indices = @transform_0, window_bounds = array<i64: 2, 256>}, {transform_indices = @transform_1, window_bounds = array<i64: 1, 256, 512>}, {transform_indices = @transform_2, window_bounds = array<i64: 1, 256, 10>}, {transform_indices = @transform_3, window_bounds = array<i64: 1, 2, 10>}]} {
    %c0_i32 = arith.constant 0 : i32
    %0 = arith.cmpi eq, %arg1, %c0_i32 : i32
    %1 = arith.extui %0 : i1 to i32
    %c0_i32_0 = arith.constant 0 : i32
    %2 = arith.cmpi ne, %1, %c0_i32_0 : i32
    scf.if %2 {
      %cst_20 = arith.constant 0.000000e+00 : f32
      %31 = vector.broadcast %cst_20 : f32 to vector<2x10xf32>
      %c0_21 = arith.constant 0 : index
      %c0_22 = arith.constant 0 : index
      %32 = vector.load %arg6[%c0_21, %c0_22] : memref<2x10xf32, #tpu.memory_space<vmem>>, vector<2x10xf32>
      tpu.vector_store %arg6[%c0_21, %c0_22], %31 {strides = array<i32>} : memref<2x10xf32, #tpu.memory_space<vmem>>, vector<2x10xf32>,
    } else {
    }
    %c0 = arith.constant 0 : index
    %c0_1 = arith.constant 0 : index
    %3 = vector.load %arg2[%c0, %c0_1] : memref<2x256xf32, #tpu.memory_space<vmem>>, vector<2x256xf32>
    %4 = arith.mulf %3, %3 : vector<2x256xf32>
    %cst = arith.constant dense<0.000000e+00> : vector<2xf32>
    %5 = vector.multi_reduction <add>, %4, %cst [1] : vector<2x256xf32> to vector<2xf32>
    %6 = vector.shape_cast %5 : vector<2xf32> to vector<2x1xf32>
    %cst_2 = arith.constant 9.99999996E-13 : f32
    %7 = vector.broadcast %cst_2 : f32 to vector<2x1xf32>
    %8 = arith.addf %6, %7 : vector<2x1xf32>
    %9 = math.rsqrt %8 : vector<2x1xf32>
    %10 = vector.broadcast %9 : vector<2x1xf32> to vector<2x256xf32>
    %11 = arith.mulf %3, %10 : vector<2x256xf32>
    %12 = arith.truncf %11 : vector<2x256xf32> to vector<2x256xbf16>
    %c0_3 = arith.constant 0 : index
    %c0_4 = arith.constant 0 : index
    %c0_5 = arith.constant 0 : index
    %13 = vector.load %arg3[%c0_3, %c0_4, %c0_5] : memref<1x256x512xbf16, #tpu.memory_space<vmem>>, vector<1x256x512xbf16>
    %14 = vector.shape_cast %13 : vector<1x256x512xbf16> to vector<256x512xbf16>
    %cst_6 = arith.constant dense<0.000000e+00> : vector<2x512xf32>
    %15 = tpu.matmul %12, %14, %cst_6 {dimension_numbers = #tpu.dot_dimension_numbers<[1], [0], [0], [1], [0, 0, 1, 1], [], []>} : vector<2x256xbf16>, vector<256x512xbf16>, vector<2x512xf32> -> vector<2x512xf32>
    %16 = vector.extract_strided_slice %15 {offsets = [0, 0], sizes = [2, 256], strides = [1, 1]} : vector<2x512xf32> to vector<2x256xf32>
    %17 = vector.extract_strided_slice %15 {offsets = [0, 256], sizes = [2, 256], strides = [1, 1]} : vector<2x512xf32> to vector<2x256xf32>
    %18 = arith.mulf %16, %16 : vector<2x256xf32>
    %19 = arith.mulf %17, %17 : vector<2x256xf32>
    %20 = arith.addf %18, %19 : vector<2x256xf32>
    %c0_7 = arith.constant 0 : index
    %c0_8 = arith.constant 0 : index
    %21 = vector.load %arg6[%c0_7, %c0_8] : memref<2x10xf32, #tpu.memory_space<vmem>>, vector<2x10xf32>
    %c0_9 = arith.constant 0 : index
    %c0_10 = arith.constant 0 : index
    %c0_11 = arith.constant 0 : index
    %22 = vector.load %arg4[%c0_9, %c0_10, %c0_11] : memref<1x256x10xf32, #tpu.memory_space<vmem>>, vector<1x256x10xf32>
    %23 = vector.shape_cast %22 : vector<1x256x10xf32> to vector<256x10xf32>
    %cst_12 = arith.constant dense<0.000000e+00> : vector<2x10xf32>
    %24 = tpu.matmul %20, %23, %cst_12 {dimension_numbers = #tpu.dot_dimension_numbers<[1], [0], [0], [1], [0, 0, 1, 1], [], []>} : vector<2x256xf32>, vector<256x10xf32>, vector<2x10xf32> -> vector<2x10xf32>
    %25 = arith.addf %21, %24 : vector<2x10xf32>
    %c0_13 = arith.constant 0 : index
    %c0_14 = arith.constant 0 : index
    %26 = vector.load %arg6[%c0_13, %c0_14] : memref<2x10xf32, #tpu.memory_space<vmem>>, vector<2x10xf32>
    tpu.vector_store %arg6[%c0_13, %c0_14], %25 {strides = array<i32>} : memref<2x10xf32, #tpu.memory_space<vmem>>, vector<2x10xf32>,
    %c0_15 = arith.constant 0 : index
    %c0_16 = arith.constant 0 : index
    %27 = vector.load %arg6[%c0_15, %c0_16] : memref<2x10xf32, #tpu.memory_space<vmem>>, vector<2x10xf32>
    %c0_17 = arith.constant 0 : index
    %c0_18 = arith.constant 0 : index
    %c0_19 = arith.constant 0 : index
    %28 = vector.load %arg5[%c0_17, %c0_18, %c0_19] : memref<1x2x10xf32, #tpu.memory_space<vmem>>, vector<1x2x10xf32>
    %29 = vector.shape_cast %28 : vector<1x2x10xf32> to vector<2x10xf32>
    %30 = vector.shape_cast %27 : vector<2x10xf32> to vector<1x2x10xf32>
    tpu.vector_store %arg5[%c0_17, %c0_18, %c0_19], %30 {strides = array<i32>} : memref<1x2x10xf32, #tpu.memory_space<vmem>>, vector<1x2x10xf32>,
    return
  }
  func.func @transform_0(%arg0: i32, %arg1: i32) -> (i32, i32) {
    %c4_i32 = arith.constant 4 : i32
    %0 = arith.muli %arg0, %c4_i32 : i32
    %1 = arith.addi %0, %arg1 : i32
    %c0_i32 = arith.constant 0 : i32
    %c0_i32_0 = arith.constant 0 : i32
    return %c0_i32, %1 : i32, i32
  }
  func.func @transform_1(%arg0: i32, %arg1: i32) -> (i32, i32, i32) {
    %c4_i32 = arith.constant 4 : i32
    %0 = arith.muli %arg0, %c4_i32 : i32
    %1 = arith.addi %0, %arg1 : i32
    %c0_i32 = arith.constant 0 : i32
    %c0_i32_0 = arith.constant 0 : i32
    %c0_i32_1 = arith.constant 0 : i32
    return %1, %c0_i32, %c0_i32_0 : i32, i32, i32
  }
  func.func @transform_2(%arg0: i32, %arg1: i32) -> (i32, i32, i32) {
    %c4_i32 = arith.constant 4 : i32
    %0 = arith.muli %arg0, %c4_i32 : i32
    %1 = arith.addi %0, %arg1 : i32
    %c0_i32 = arith.constant 0 : i32
    %c0_i32_0 = arith.constant 0 : i32
    %c0_i32_1 = arith.constant 0 : i32
    return %1, %c0_i32, %c0_i32_0 : i32, i32, i32
  }
  func.func @transform_3(%arg0: i32, %arg1: i32) -> (i32, i32, i32) {
    %c0_i32 = arith.constant 0 : i32
    %c0_i32_0 = arith.constant 0 : i32
    %c0_i32_1 = arith.constant 0 : i32
    return %arg0, %c0_i32, %c0_i32_0 : i32, i32, i32
  }
}

</mosaic_0001>

<llo_original>
// kernel: hybrid_reid_forward.3
$region0: #{hybrid_reid_forward.3}
  #allocation0 [shape = 'u32[]', space=smem, size = 0x4, offset = 0x4, fixed_abs, tag = 'smem constant byte address 0x4 - core index']
  #allocation1 [shape = 'u32[144,128]{1,0:T(1,128)}', space=vmem, size = 0x12000, scoped, tag = 'internal scratch']
  #allocation2 [shape = 'f32[2,10]{1,0:T(2,128)}', space=vmem, size = 0x400, scoped, tag = 'scratch operand']
  %s0 = inlined_call_operand.vmem [shape: f32[2,2048], index: 0, kind: input, shape index: {}]
  %s1 = inlined_call_operand.vmem [shape: bf16[8,256,512], index: 1, kind: input, shape index: {}]
  %s2 = inlined_call_operand.vmem [shape: f32[8,256,10], index: 2, kind: input, shape index: {}]
  %s3 = inlined_call_operand.vmem [shape: f32[2,2,10], index: 3, kind: output, shape index: {}]
  %s4 = sld [smem:[#allocation0]]
  $region49: #{hybrid_reid_forward.3} parent=0
    _
  %s6 = ssub.s32 1, %s4
  %s7 = scalar_select 0, %s6, %s4
  loop: start=0, step=1, limit=10
  $region2: #{hybrid_reid_forward.3} parent=0 // loop_pre_header
    _
  $region3: #{hybrid_reid_forward.3} parent=0 // loop_header
    %s9 = sphi 0, %s13
    %p10 = scmp.ge.s32.totalorder %s9, 10
    %s16 = sphi 0, %s28
    %s17 = sphi 0, %s24
    %s18 = sphi 0, %s16
    %s19 = sphi 0, %s17
    %s20 = sphi 0, %s18
    %s21 = sphi 0, %s19
    %s35 = sphi 0, %s37
    %s38 = sphi 0, %s35
    %s39 = sphi 0, %s38
    %s55 = sphi 0, %s39
    %s65 = sphi 0, %s67
    %s68 = sphi 0, %s65
    %s69 = sphi 0, %s68
    %s85 = sphi 0, %s69
    %s95 = sphi 0, %s97
    %s98 = sphi 0, %s95
    %s99 = sphi 0, %s98
    %s115 = sphi 0, %s99
    %s121 = sphi 0, %s123
    %s124 = sphi 0, %s121
    %s125 = sphi 0, %s124
    %s141 = sphi 0, %s125
  $region4: #{hybrid_reid_forward.3} parent=0 // loop_header_branch
    %12 = sbr.rel (%p10) target = $region8
  $region5: #{hybrid_reid_forward.3} parent=0 // loop_body
    %s14 = ssub.s32 %s9, 1
    %s15 = ssub.s32 %s9, 2
    %s22 = sadd.s32 1, %s17
    %p23 = scmp.ge.s32.totalorder %s22, 4
    %s24 = scalar_select %p23, 0, %s22
    %s25 = sadd.s32 1, %s16
    %s26 = scalar_select %p23, %s25, %s16
    %p27 = scmp.ge.s32.totalorder %s26, 2
    %s28 = scalar_select %p27, 0, %s26
    %s29 = smul.u32 %s16, 4
    %s30 = sadd.s32 %s29, %s17
    %s31 = smul.u32 %s28, 4
    %s32 = sadd.s32 %s31, %s24
    %s33 = ssub.s32 %s30, %s32
    %p34 = scmp.eq.s32.totalorder %s33, 0
    %s36 = sadd.s32 %s35, 1
    %s37 = scalar_select %p34, %s35, %s36
    %p40 = pneg %p34
    %p41 = scmp.eq.s32.totalorder %s9, 7
    %p42 = por %p40, %p41
    %p43 = scmp.ne.s32.totalorder %s35, %s38
    %p44 = scmp.eq.s32.totalorder %s9, 0
    %p45 = por %p43, %p44
    %p46 = scmp.ne.s32.totalorder %s35, %s38
    %p47 = scmp.eq.s32.totalorder %s14, 7
    %p48 = por %p46, %p47
    %p49 = scmp.ne.s32.totalorder %s38, %s39
    %p50 = scmp.eq.s32.totalorder %s14, 0
    %p51 = por %p49, %p50
    %p52 = scmp.ne.s32.totalorder %s38, %s39
    %p53 = scmp.eq.s32.totalorder %s15, 7
    %p54 = por %p52, %p53
    %p56 = scmp.ne.s32.totalorder %s39, %s55
    %p57 = scmp.eq.s32.totalorder %s15, 0
    %p58 = por %p56, %p57
    %s59 = smul.u32 %s16, 4
    %s60 = sadd.s32 %s59, %s17
    %s61 = smul.u32 %s28, 4
    %s62 = sadd.s32 %s61, %s24
    %s63 = ssub.s32 %s60, %s62
    %p64 = scmp.eq.s32.totalorder %s63, 0
    %s66 = sadd.s32 %s65, 1
    %s67 = scalar_select %p64, %s65, %s66
    %p70 = pneg %p64
    %p71 = scmp.eq.s32.totalorder %s9, 7
    %p72 = por %p70, %p71
    %p73 = scmp.ne.s32.totalorder %s65, %s68
    %p74 = scmp.eq.s32.totalorder %s9, 0
    %p75 = por %p73, %p74
    %p76 = scmp.ne.s32.totalorder %s65, %s68
    %p77 = scmp.eq.s32.totalorder %s14, 7
    %p78 = por %p76, %p77
    %p79 = scmp.ne.s32.totalorder %s68, %s69
    %p80 = scmp.eq.s32.totalorder %s14, 0
    %p81 = por %p79, %p80
    %p82 = scmp.ne.s32.totalorder %s68, %s69
    %p83 = scmp.eq.s32.totalorder %s15, 7
    %p84 = por %p82, %p83
    %p86 = scmp.ne.s32.totalorder %s69, %s85
    %p87 = scmp.eq.s32.totalorder %s15, 0
    %p88 = por %p86, %p87
    %s89 = smul.u32 %s16, 4
    %s90 = sadd.s32 %s89, %s17
    %s91 = smul.u32 %s28, 4
    %s92 = sadd.s32 %s91, %s24
    %s93 = ssub.s32 %s90, %s92
    %p94 = scmp.eq.s32.totalorder %s93, 0
    %s96 = sadd.s32 %s95, 1
    %s97 = scalar_select %p94, %s95, %s96
    %p100 = pneg %p94
    %p101 = scmp.eq.s32.totalorder %s9, 7
    %p102 = por %p100, %p101
    %p103 = scmp.ne.s32.totalorder %s95, %s98
    %p104 = scmp.eq.s32.totalorder %s9, 0
    %p105 = por %p103, %p104
    %p106 = scmp.ne.s32.totalorder %s95, %s98
    %p107 = scmp.eq.s32.totalorder %s14, 7
    %p108 = por %p106, %p107
    %p109 = scmp.ne.s32.totalorder %s98, %s99
    %p110 = scmp.eq.s32.totalorder %s14, 0
    %p111 = por %p109, %p110
    %p112 = scmp.ne.s32.totalorder %s98, %s99
    %p113 = scmp.eq.s32.totalorder %s15, 7
    %p114 = por %p112, %p113
    %p116 = scmp.ne.s32.totalorder %s99, %s115
    %p117 = scmp.eq.s32.totalorder %s15, 0
    %p118 = por %p116, %p117
    %s119 = ssub.s32 %s16, %s28
    %p120 = scmp.eq.s32.totalorder %s119, 0
    %s122 = sadd.s32 %s121, 1
    %s123 = scalar_select %p120, %s121, %s122
    %p126 = pneg %p120
    %p127 = scmp.eq.s32.totalorder %s9, 7
    %p128 = por %p126, %p127
    %p129 = scmp.ne.s32.totalorder %s121, %s124
    %p130 = scmp.eq.s32.totalorder %s9, 0
    %p131 = por %p129, %p130
    %p132 = scmp.ne.s32.totalorder %s121, %s124
    %p133 = scmp.eq.s32.totalorder %s14, 7
    %p134 = por %p132, %p133
    %p135 = scmp.ne.s32.totalorder %s124, %s125
    %p136 = scmp.eq.s32.totalorder %s14, 0
    %p137 = por %p135, %p136
    %p138 = scmp.ne.s32.totalorder %s124, %s125
    %p139 = scmp.eq.s32.totalorder %s15, 7
    %p140 = por %p138, %p139
    %p142 = scmp.ne.s32.totalorder %s125, %s141
    %p143 = scmp.eq.s32.totalorder %s15, 0
    %p144 = por %p142, %p143
    %p145 = scmp.le.s32.totalorder 1, %s9
    %p146 = scmp.lt.s32.totalorder %s9, 9
    %p147 = pnand %p145, %p146
    %p148 = pneg %p147
    // Predicated region
    $region9: #{hybrid_reid_forward.3} parent=5 // pred_check
      _
    $region10: #{hybrid_reid_forward.3} parent=5 // pred_check_branch
      %150 = sbr.rel (%p147) target = $region12
    $region11: #{hybrid_reid_forward.3} parent=5 // pred_region
      %s151 = ssub.s32 %s9, 1
    $region12: #{hybrid_reid_forward.3} parent=5 // pred_fallthru
      _
    %p152 = scmp.lt.s32.totalorder %s9, 8
    // Predicated region
    $region13: #{hybrid_reid_forward.3} parent=5 // pred_check
      %p153 = pneg %p152
    $region14: #{hybrid_reid_forward.3} parent=5 // pred_check_branch
      %155 = sbr.rel (%p153) target = $region16
    $region15: #{hybrid_reid_forward.3} parent=5 // pred_region
      // Predicated region
      $region17: #{hybrid_reid_forward.3} parent=15 // pred_check
        %p156 = pneg %p45
      $region18: #{hybrid_reid_forward.3} parent=15 // pred_check_branch
        %158 = sbr.rel (%p156) target = $region20
      $region19: #{hybrid_reid_forward.3} parent=15 // pred_region
        %s159 = smul.u32 %s16, 4
        %s160 = sadd.s32 %s159, %s17
        %s161 = smul.u32 2, %s160
        %p162 = scmp.lt.s32.totalorder %s161, 15
        %s163 = scalar_select %p162, %s161, 15
        %s164 = smul.addr %s163, 2
        %s165 = scalar_lea.vmem %s0, %s164
        %s166 = smul.u32 %s16, 4
        %s167 = sadd.s32 %s166, %s17
        %s168 = smul.u32 2, %s167
      $region20: #{hybrid_reid_forward.3} parent=15 // pred_fallthru
        _
      // Predicated region
      $region21: #{hybrid_reid_forward.3} parent=15 // pred_check
        %p169 = pneg %p75
      $region22: #{hybrid_reid_forward.3} parent=15 // pred_check_branch
        %171 = sbr.rel (%p169) target = $region24
      $region23: #{hybrid_reid_forward.3} parent=15 // pred_region
        %s172 = smul.u32 %s16, 4
        %s173 = sadd.s32 %s172, %s17
        %p174 = scmp.lt.s32.totalorder %s173, 7
        %s175 = scalar_select %p174, %s173, 7
        %s176 = smul.addr %s175, 128
        %s177 = smul.addr %s176, 4
        %s178 = scalar_lea.vmem %s1, %s177
        %s179 = smul.u32 %s16, 4
        %s180 = sadd.s32 %s179, %s17
      $region24: #{hybrid_reid_forward.3} parent=15 // pred_fallthru
        _
      // Predicated region
      $region25: #{hybrid_reid_forward.3} parent=15 // pred_check
        %p181 = pneg %p105
      $region26: #{hybrid_reid_forward.3} parent=15 // pred_check_branch
        %183 = sbr.rel (%p181) target = $region28
      $region27: #{hybrid_reid_forward.3} parent=15 // pred_region
        %s184 = smul.u32 %s16, 4
        %s185 = sadd.s32 %s184, %s17
        %p186 = scmp.lt.s32.totalorder %s185, 7
        %s187 = scalar_select %p186, %s185, 7
        %s188 = smul.addr %s187, 32
        %s189 = smul.addr %s188, 8
        %s190 = scalar_lea.vmem %s2, %s189
        %s191 = smul.u32 %s16, 4
        %s192 = sadd.s32 %s191, %s17
      $region28: #{hybrid_reid_forward.3} parent=15 // pred_fallthru
        _
    $region16: #{hybrid_reid_forward.3} parent=5 // pred_fallthru
      _
    %p193 = scmp.le.s32.totalorder 1, %s9
    %p194 = scmp.lt.s32.totalorder %s9, 9
    %p195 = pnand %p193, %p194
    %p196 = pneg %p195
    // Predicated region
    $region29: #{hybrid_reid_forward.3} parent=5 // pred_check
      _
    $region30: #{hybrid_reid_forward.3} parent=5 // pred_check_branch
      %198 = sbr.rel (%p195) target = $region32
    $region31: #{hybrid_reid_forward.3} parent=5 // pred_region
      %s199 = ssub.s32 %s9, 1
      %s200 = smul.u32 %s18, 4
      %s201 = sadd.s32 %s200, %s19
      %s202 = smul.u32 2, %s201
      %p203 = scmp.lt.s32.totalorder %s202, 15
      %s204 = scalar_select %p203, %s202, 15
      %s205 = smul.addr %s204, 2
      %s206 = scalar_lea.vmem %s0, %s205
      %p207 = pneg %p51
      %p208 = pneg %p48
      %s209 = smul.u32 %s18, 4
      %s210 = sadd.s32 %s209, %s19
      %p211 = scmp.lt.s32.totalorder %s210, 7
      %s212 = scalar_select %p211, %s210, 7
      %s213 = smul.addr %s212, 128
      %s214 = smul.addr %s213, 4
      %s215 = scalar_lea.vmem %s1, %s214
      %p216 = pneg %p81
      %p217 = pneg %p78
      %s218 = smul.u32 %s18, 4
      %s219 = sadd.s32 %s218, %s19
      %p220 = scmp.lt.s32.totalorder %s219, 7
      %s221 = scalar_select %p220, %s219, 7
      %s222 = smul.addr %s221, 32
      %s223 = smul.addr %s222, 8
      %s224 = scalar_lea.vmem %s2, %s223
      %p225 = pneg %p111
      %p226 = pneg %p108
      %p227 = pneg %p137
      %p228 = pneg %p134
      %p229 = scmp.lt.s32.totalorder %s18, 1
      %s230 = scalar_select %p229, %s18, 1
      %s231 = smul.addr %s230, 2
      %s232 = scalar_lea.vmem %s3, %s231
      %s233 = smul.u32 %s18, 4
      %s234 = sadd.s32 %s233, %s19
      %s235 = smul.u32 2, %s234
      %p236 = scmp.lt.s32.totalorder %s235, 15
      %s237 = scalar_select %p236, %s235, 15
      %s238 = smul.addr %s237, 2
      %s239 = scalar_lea.vmem %s0, %s238
      %s240 = smul.u32 %s18, 4
      %s241 = sadd.s32 %s240, %s19
      %s242 = smul.u32 2, %s241
      %s243 = smul.u32 %s18, 4
      %s244 = sadd.s32 %s243, %s19
      %p245 = scmp.lt.s32.totalorder %s244, 7
      %s246 = scalar_select %p245, %s244, 7
      %s247 = smul.addr %s246, 128
      %s248 = smul.addr %s247, 4
      %s249 = scalar_lea.vmem %s1, %s248
      %s250 = smul.u32 %s18, 4
      %s251 = sadd.s32 %s250, %s19
      %s252 = smul.u32 %s18, 4
      %s253 = sadd.s32 %s252, %s19
      %p254 = scmp.lt.s32.totalorder %s253, 7
      %s255 = scalar_select %p254, %s253, 7
      %s256 = smul.addr %s255, 32
      %s257 = smul.addr %s256, 8
      %s258 = scalar_lea.vmem %s2, %s257
      %s259 = smul.u32 %s18, 4
      %s260 = sadd.s32 %s259, %s19
      %p261 = scmp.lt.s32.totalorder %s18, 1
      %s262 = scalar_select %p261, %s18, 1
      %s263 = smul.addr %s262, 2
      %s264 = scalar_lea.vmem %s3, %s263
      %p265 = scmp.eq.s32.totalorder %s19, 0
      // Predicated region
      $region33: #{hybrid_reid_forward.3} parent=31 // pred_check
        %p266 = pneg %p265
      $region34: #{hybrid_reid_forward.3} parent=31 // pred_check_branch
        %268 = sbr.rel (%p266) target = $region36
      $region35: #{hybrid_reid_forward.3} parent=31 // pred_region
        %vm269 = vcmask 74752
        %270 = vst.msk [vmem:[#allocation2] sm:$0x3] %vm269, 0.0
      $region36: #{hybrid_reid_forward.3} parent=31 // pred_fallthru
        _
      %v271 = vld [vmem:[%s239] sm:$0xf]
      %v272 = vmul.f32 %v271, %v271
      %v275 = vunpack.c.l.s4 1983009808
      %v276 = vunpack.c.0.s8 %v275
      %v277 = vlaneseq
      %v278 = vshrl.u32 %v277, 7
      %v279 = vsub.s32 %v276, %v278
      %v280 = vrot.slane %v272, %v279
      %v281 = vcombine.high %v280, %v280
      %vm284 = vcmask 1041408
      %v285 = vsel %vm284, %v280, 0.0
      %v286 = vsel %vm284, %v281, 0.0
      %v287 = vadd.f32 %v285, %v286
      %288 = vadd.xlane.f32.xlu0 %v287
      %v289 = vpop.xlane.xlu0 %288
      %v290 = vadd.f32 %v289, 1e-12
      %v291 = vrsqrt.pop %v290
      %v294 = vunpack.c.l.s4 269488144
      %v295 = vunpack.c.0.s8 %v294
      %v296 = vlaneseq
      %v297 = vshrl.u32 %v296, 7
      %v298 = vsub.s32 %v295, %v297
      %v299 = vrot.slane %v291, %v298
      %v301 = vmul.f32 %v271, %v299
      %v304 = vunpack.c.l.s4 1983009808
      %v305 = vunpack.c.0.s8 %v304
      %v306 = vlaneseq
      %v307 = vshrl.u32 %v306, 7
      %v308 = vsub.s32 %v305, %v307
      %v309 = vrot.slane %v301, %v308
      %v310 = vcombine.high %v309, %v309
      %v313 = vpack.c.bf16 %v309, %v309
      %v314 = vpack.c.bf16 %v310, %v310
      %v315 = vld [vmem:[%s249] sm:$0xff]
      %v316 = vld [vmem:[%s249 + $0x8] sm:$0xff]
      %v317 = vld [vmem:[%s249 + $0x10] sm:$0xff]
      %v318 = vld [vmem:[%s249 + $0x18] sm:$0xff]
      %v319 = vld [vmem:[%s249 + $0x20] sm:$0xff]
      %v320 = vld [vmem:[%s249 + $0x28] sm:$0xff]
      %v321 = vld [vmem:[%s249 + $0x30] sm:$0xff]
      %v322 = vld [vmem:[%s249 + $0x38] sm:$0xff]
      %v323 = vld [vmem:[%s249 + $0x40] sm:$0xff]
      %v324 = vld [vmem:[%s249 + $0x48] sm:$0xff]
      %v325 = vld [vmem:[%s249 + $0x50] sm:$0xff]
      %v326 = vld [vmem:[%s249 + $0x58] sm:$0xff]
      %v327 = vld [vmem:[%s249 + $0x60] sm:$0xff]
      %v328 = vld [vmem:[%s249 + $0x68] sm:$0xff]
      %v329 = vld [vmem:[%s249 + $0x70] sm:$0xff]
      %v330 = vld [vmem:[%s249 + $0x78] sm:$0xff]
      %v331 = vld [vmem:[%s249 + $0x80] sm:$0xff]
      %v332 = vld [vmem:[%s249 + $0x88] sm:$0xff]
      %v333 = vld [vmem:[%s249 + $0x90] sm:$0xff]
      %v334 = vld [vmem:[%s249 + $0x98] sm:$0xff]
      %v335 = vld [vmem:[%s249 + $0xa0] sm:$0xff]
      %v336 = vld [vmem:[%s249 + $0xa8] sm:$0xff]
      %v337 = vld [vmem:[%s249 + $0xb0] sm:$0xff]
      %v338 = vld [vmem:[%s249 + $0xb8] sm:$0xff]
      %v339 = vld [vmem:[%s249 + $0xc0] sm:$0xff]
      %v340 = vld [vmem:[%s249 + $0xc8] sm:$0xff]
      %v341 = vld [vmem:[%s249 + $0xd0] sm:$0xff]
      %v342 = vld [vmem:[%s249 + $0xd8] sm:$0xff]
      %v343 = vld [vmem:[%s249 + $0xe0] sm:$0xff]
      %v344 = vld [vmem:[%s249 + $0xe8] sm:$0xff]
      %v345 = vld [vmem:[%s249 + $0xf0] sm:$0xff]
      %v346 = vld [vmem:[%s249 + $0xf8] sm:$0xff]
      %v347 = vld [vmem:[%s249 + $0x100] sm:$0xff]
      %v348 = vld [vmem:[%s249 + $0x108] sm:$0xff]
      %v349 = vld [vmem:[%s249 + $0x110] sm:$0xff]
      %v350 = vld [vmem:[%s249 + $0x118] sm:$0xff]
      %v351 = vld [vmem:[%s249 + $0x120] sm:$0xff]
      %v352 = vld [vmem:[%s249 + $0x128] sm:$0xff]
      %v353 = vld [vmem:[%s249 + $0x130] sm:$0xff]
      %v354 = vld [vmem:[%s249 + $0x138] sm:$0xff]
      %v355 = vld [vmem:[%s249 + $0x140] sm:$0xff]
      %v356 = vld [vmem:[%s249 + $0x148] sm:$0xff]
      %v357 = vld [vmem:[%s249 + $0x150] sm:$0xff]
      %v358 = vld [vmem:[%s249 + $0x158] sm:$0xff]
      %v359 = vld [vmem:[%s249 + $0x160] sm:$0xff]
      %v360 = vld [vmem:[%s249 + $0x168] sm:$0xff]
      %v361 = vld [vmem:[%s249 + $0x170] sm:$0xff]
      %v362 = vld [vmem:[%s249 + $0x178] sm:$0xff]
      %v363 = vld [vmem:[%s249 + $0x180] sm:$0xff]
      %v364 = vld [vmem:[%s249 + $0x188] sm:$0xff]
      %v365 = vld [vmem:[%s249 + $0x190] sm:$0xff]
      %v366 = vld [vmem:[%s249 + $0x198] sm:$0xff]
      %v367 = vld [vmem:[%s249 + $0x1a0] sm:$0xff]
      %v368 = vld [vmem:[%s249 + $0x1a8] sm:$0xff]
      %v369 = vld [vmem:[%s249 + $0x1b0] sm:$0xff]
      %v370 = vld [vmem:[%s249 + $0x1b8] sm:$0xff]
      %v371 = vld [vmem:[%s249 + $0x1c0] sm:$0xff]
      %v372 = vld [vmem:[%s249 + $0x1c8] sm:$0xff]
      %v373 = vld [vmem:[%s249 + $0x1d0] sm:$0xff]
      %v374 = vld [vmem:[%s249 + $0x1d8] sm:$0xff]
      %v375 = vld [vmem:[%s249 + $0x1e0] sm:$0xff]
      %v376 = vld [vmem:[%s249 + $0x1e8] sm:$0xff]
      %v377 = vld [vmem:[%s249 + $0x1f0] sm:$0xff]
      %v378 = vld [vmem:[%s249 + $0x1f8] sm:$0xff]
      %v443 = vunpack.c.l.b16 %v315
      %v444 = vunpack.c.h.b16 %v315
      %v445 = vunpack.c.l.b16 %v316
      %v446 = vunpack.c.h.b16 %v316
      %v447 = vunpack.c.l.b16 %v317
      %v448 = vunpack.c.h.b16 %v317
      %v449 = vunpack.c.l.b16 %v318
      %v450 = vunpack.c.h.b16 %v318
      %v451 = vunpack.c.l.b16 %v319
      %v452 = vunpack.c.h.b16 %v319
      %v453 = vunpack.c.l.b16 %v320
      %v454 = vunpack.c.h.b16 %v320
      %v455 = vunpack.c.l.b16 %v321
      %v456 = vunpack.c.h.b16 %v321
      %v457 = vunpack.c.l.b16 %v322
      %v458 = vunpack.c.h.b16 %v322
      %v459 = vunpack.c.l.b16 %v323
      %v460 = vunpack.c.h.b16 %v323
      %v461 = vunpack.c.l.b16 %v324
      %v462 = vunpack.c.h.b16 %v324
      %v463 = vunpack.c.l.b16 %v325
      %v464 = vunpack.c.h.b16 %v325
      %v465 = vunpack.c.l.b16 %v326
      %v466 = vunpack.c.h.b16 %v326
      %v467 = vunpack.c.l.b16 %v327
      %v468 = vunpack.c.h.b16 %v327
      %v469 = vunpack.c.l.b16 %v328
      %v470 = vunpack.c.h.b16 %v328
      %v471 = vunpack.c.l.b16 %v329
      %v472 = vunpack.c.h.b16 %v329
      %v473 = vunpack.c.l.b16 %v330
      %v474 = vunpack.c.h.b16 %v330
      %v475 = vunpack.c.l.b16 %v331
      %v476 = vunpack.c.h.b16 %v331
      %v477 = vunpack.c.l.b16 %v332
      %v478 = vunpack.c.h.b16 %v332
      %v479 = vunpack.c.l.b16 %v333
      %v480 = vunpack.c.h.b16 %v333
      %v481 = vunpack.c.l.b16 %v334
      %v482 = vunpack.c.h.b16 %v334
      %v483 = vunpack.c.l.b16 %v335
      %v484 = vunpack.c.h.b16 %v335
      %v485 = vunpack.c.l.b16 %v336
      %v486 = vunpack.c.h.b16 %v336
      %v487 = vunpack.c.l.b16 %v337
      %v488 = vunpack.c.h.b16 %v337
      %v489 = vunpack.c.l.b16 %v338
      %v490 = vunpack.c.h.b16 %v338
      %v491 = vunpack.c.l.b16 %v339
      %v492 = vunpack.c.h.b16 %v339
      %v493 = vunpack.c.l.b16 %v340
      %v494 = vunpack.c.h.b16 %v340
      %v495 = vunpack.c.l.b16 %v341
      %v496 = vunpack.c.h.b16 %v341
      %v497 = vunpack.c.l.b16 %v342
      %v498 = vunpack.c.h.b16 %v342
      %v499 = vunpack.c.l.b16 %v343
      %v500 = vunpack.c.h.b16 %v343
      %v501 = vunpack.c.l.b16 %v344
      %v502 = vunpack.c.h.b16 %v344
      %v503 = vunpack.c.l.b16 %v345
      %v504 = vunpack.c.h.b16 %v345
      %v505 = vunpack.c.l.b16 %v346
      %v506 = vunpack.c.h.b16 %v346
      %v507 = vunpack.c.l.b16 %v347
      %v508 = vunpack.c.h.b16 %v347
      %v509 = vunpack.c.l.b16 %v348
      %v510 = vunpack.c.h.b16 %v348
      %v511 = vunpack.c.l.b16 %v349
      %v512 = vunpack.c.h.b16 %v349
      %v513 = vunpack.c.l.b16 %v350
      %v514 = vunpack.c.h.b16 %v350
      %v515 = vunpack.c.l.b16 %v351
      %v516 = vunpack.c.h.b16 %v351
      %v517 = vunpack.c.l.b16 %v352
      %v518 = vunpack.c.h.b16 %v352
      %v519 = vunpack.c.l.b16 %v353
      %v520 = vunpack.c.h.b16 %v353
      %v521 = vunpack.c.l.b16 %v354
      %v522 = vunpack.c.h.b16 %v354
      %v523 = vunpack.c.l.b16 %v355
      %v524 = vunpack.c.h.b16 %v355
      %v525 = vunpack.c.l.b16 %v356
      %v526 = vunpack.c.h.b16 %v356
      %v527 = vunpack.c.l.b16 %v357
      %v528 = vunpack.c.h.b16 %v357
      %v529 = vunpack.c.l.b16 %v358
      %v530 = vunpack.c.h.b16 %v358
      %v531 = vunpack.c.l.b16 %v359
      %v532 = vunpack.c.h.b16 %v359
      %v533 = vunpack.c.l.b16 %v360
      %v534 = vunpack.c.h.b16 %v360
      %v535 = vunpack.c.l.b16 %v361
      %v536 = vunpack.c.h.b16 %v361
      %v537 = vunpack.c.l.b16 %v362
      %v538 = vunpack.c.h.b16 %v362
      %v539 = vunpack.c.l.b16 %v363
      %v540 = vunpack.c.h.b16 %v363
      %v541 = vunpack.c.l.b16 %v364
      %v542 = vunpack.c.h.b16 %v364
      %v543 = vunpack.c.l.b16 %v365
      %v544 = vunpack.c.h.b16 %v365
      %v545 = vunpack.c.l.b16 %v366
      %v546 = vunpack.c.h.b16 %v366
      %v547 = vunpack.c.l.b16 %v367
      %v548 = vunpack.c.h.b16 %v367
      %v549 = vunpack.c.l.b16 %v368
      %v550 = vunpack.c.h.b16 %v368
      %v551 = vunpack.c.l.b16 %v369
      %v552 = vunpack.c.h.b16 %v369
      %v553 = vunpack.c.l.b16 %v370
      %v554 = vunpack.c.h.b16 %v370
      %v555 = vunpack.c.l.b16 %v371
      %v556 = vunpack.c.h.b16 %v371
      %v557 = vunpack.c.l.b16 %v372
      %v558 = vunpack.c.h.b16 %v372
      %v559 = vunpack.c.l.b16 %v373
      %v560 = vunpack.c.h.b16 %v373
      %v561 = vunpack.c.l.b16 %v374
      %v562 = vunpack.c.h.b16 %v374
      %v563 = vunpack.c.l.b16 %v375
      %v564 = vunpack.c.h.b16 %v375
      %v565 = vunpack.c.l.b16 %v376
      %v566 = vunpack.c.h.b16 %v376
      %v567 = vunpack.c.l.b16 %v377
      %v568 = vunpack.c.h.b16 %v377
      %v569 = vunpack.c.l.b16 %v378
      %v570 = vunpack.c.h.b16 %v378
      %v571 = vpack.c.b16 %v447, %v443
      %v572 = vpack.c.b16 %v448, %v444
      %v573 = vpack.c.b16 %v449, %v445
      %v574 = vpack.c.b16 %v450, %v446
      %v575 = vpack.c.b16 %v455, %v451
      %v576 = vpack.c.b16 %v456, %v452
      %v577 = vpack.c.b16 %v457, %v453
      %v578 = vpack.c.b16 %v458, %v454
      %v579 = vpack.c.b16 %v463, %v459
      %v580 = vpack.c.b16 %v464, %v460
      %v581 = vpack.c.b16 %v465, %v461
      %v582 = vpack.c.b16 %v466, %v462
      %v583 = vpack.c.b16 %v471, %v467
      %v584 = vpack.c.b16 %v472, %v468
      %v585 = vpack.c.b16 %v473, %v469
      %v586 = vpack.c.b16 %v474, %v470
      %v587 = vpack.c.b16 %v479, %v475
      %v588 = vpack.c.b16 %v480, %v476
      %v589 = vpack.c.b16 %v481, %v477
      %v590 = vpack.c.b16 %v482, %v478
      %v591 = vpack.c.b16 %v487, %v483
      %v592 = vpack.c.b16 %v488, %v484
      %v593 = vpack.c.b16 %v489, %v485
      %v594 = vpack.c.b16 %v490, %v486
      %v595 = vpack.c.b16 %v495, %v491
      %v596 = vpack.c.b16 %v496, %v492
      %v597 = vpack.c.b16 %v497, %v493
      %v598 = vpack.c.b16 %v498, %v494
      %v599 = vpack.c.b16 %v503, %v499
      %v600 = vpack.c.b16 %v504, %v500
      %v601 = vpack.c.b16 %v505, %v501
      %v602 = vpack.c.b16 %v506, %v502
      %v603 = vpack.c.b16 %v511, %v507
      %v604 = vpack.c.b16 %v512, %v508
      %v605 = vpack.c.b16 %v513, %v509
      %v606 = vpack.c.b16 %v514, %v510
      %v607 = vpack.c.b16 %v519, %v515
      %v608 = vpack.c.b16 %v520, %v516
      %v609 = vpack.c.b16 %v521, %v517
      %v610 = vpack.c.b16 %v522, %v518
      %v611 = vpack.c.b16 %v527, %v523
      %v612 = vpack.c.b16 %v528, %v524
      %v613 = vpack.c.b16 %v529, %v525
      %v614 = vpack.c.b16 %v530, %v526
      %v615 = vpack.c.b16 %v535, %v531
      %v616 = vpack.c.b16 %v536, %v532
      %v617 = vpack.c.b16 %v537, %v533
      %v618 = vpack.c.b16 %v538, %v534
      %v619 = vpack.c.b16 %v543, %v539
      %v620 = vpack.c.b16 %v544, %v540
      %v621 = vpack.c.b16 %v545, %v541
      %v622 = vpack.c.b16 %v546, %v542
      %v623 = vpack.c.b16 %v551, %v547
      %v624 = vpack.c.b16 %v552, %v548
      %v625 = vpack.c.b16 %v553, %v549
      %v626 = vpack.c.b16 %v554, %v550
      %v627 = vpack.c.b16 %v559, %v555
      %v628 = vpack.c.b16 %v560, %v556
      %v629 = vpack.c.b16 %v561, %v557
      %v630 = vpack.c.b16 %v562, %v558
      %v631 = vpack.c.b16 %v567, %v563
      %v632 = vpack.c.b16 %v568, %v564
      %v633 = vpack.c.b16 %v569, %v565
      %v634 = vpack.c.b16 %v570, %v566
      %699 = vmatprep.subr.bf16.mxu0 %v572
      %700 = vmatpush1.bf16.msra.mxu0 %v571
      %701 = vmatprep.subr.bf16.mxu0 %v576
      %702 = vmatpush1.bf16.msra.mxu0 %v575
      %703 = vmatprep.subr.bf16.mxu0 %v580
      %704 = vmatpush1.bf16.msra.mxu0 %v579
      %705 = vmatprep.subr.bf16.mxu0 %v584
      %706 = vmatpush1.bf16.msra.mxu0 %v583
      %707 = vmatprep.subr.bf16.mxu0 %v588
      %708 = vmatpush1.bf16.msra.mxu0 %v587
      %709 = vmatprep.subr.bf16.mxu0 %v592
      %710 = vmatpush1.bf16.msra.mxu0 %v591
      %711 = vmatprep.subr.bf16.mxu0 %v596
      %712 = vmatpush1.bf16.msra.mxu0 %v595
      %713 = vmatprep.subr.bf16.mxu0 %v600
      %714 = vmatpush1.bf16.msra.mxu0 %v599
      %715 = vmatprep.subr.bf16.mxu0 %v604
      %716 = vmatpush1.bf16.msra.mxu0 %v603
      %717 = vmatprep.subr.bf16.mxu0 %v608
      %718 = vmatpush1.bf16.msra.mxu0 %v607
      %719 = vmatprep.subr.bf16.mxu0 %v612
      %720 = vmatpush1.bf16.msra.mxu0 %v611
      %721 = vmatprep.subr.bf16.mxu0 %v616
      %722 = vmatpush1.bf16.msra.mxu0 %v615
      %723 = vmatprep.subr.bf16.mxu0 %v620
      %724 = vmatpush1.bf16.msra.mxu0 %v619
      %725 = vmatprep.subr.bf16.mxu0 %v624
      %726 = vmatpush1.bf16.msra.mxu0 %v623
      %727 = vmatprep.subr.bf16.mxu0 %v628
      %728 = vmatpush1.bf16.msra.mxu0 %v627
      %729 = vmatprep.subr.bf16.mxu0 %v632
      %730 = vmatpush1.bf16.msra.mxu0 %v631
      %731 = vmatprep.mubr.bf16.mxu0 %v314
      %732 = vmatmul.mubr.bf16.gmra.mrb[0].mxu0 %v313
      %v733 = vpop.f32.mrb[0].mxu0
      %v734 = vadd.f32 0.0, %v733
      %v735 = vpop.f32.mrb[0].mxu0
      %v736 = vadd.f32 0.0, %v735
      %v737 = vpop.f32.mrb[0].mxu0
      %v738 = vpop.f32.mrb[0].mxu0
      %739 = vdwg.mxu0
      %740 = vmatprep.subr.bf16.mxu0 %v574
      %741 = vmatpush1.bf16.msra.mxu0 %v573
      %742 = vmatprep.subr.bf16.mxu0 %v578
      %743 = vmatpush1.bf16.msra.mxu0 %v577
      %744 = vmatprep.subr.bf16.mxu0 %v582
      %745 = vmatpush1.bf16.msra.mxu0 %v581
      %746 = vmatprep.subr.bf16.mxu0 %v586
      %747 = vmatpush1.bf16.msra.mxu0 %v585
      %748 = vmatprep.subr.bf16.mxu0 %v590
      %749 = vmatpush1.bf16.msra.mxu0 %v589
      %750 = vmatprep.subr.bf16.mxu0 %v594
      %751 = vmatpush1.bf16.msra.mxu0 %v593
      %752 = vmatprep.subr.bf16.mxu0 %v598
      %753 = vmatpush1.bf16.msra.mxu0 %v597
      %754 = vmatprep.subr.bf16.mxu0 %v602
      %755 = vmatpush1.bf16.msra.mxu0 %v601
      %756 = vmatprep.subr.bf16.mxu0 %v606
      %757 = vmatpush1.bf16.msra.mxu0 %v605
      %758 = vmatprep.subr.bf16.mxu0 %v610
      %759 = vmatpush1.bf16.msra.mxu0 %v609
      %760 = vmatprep.subr.bf16.mxu0 %v614
      %761 = vmatpush1.bf16.msra.mxu0 %v613
      %762 = vmatprep.subr.bf16.mxu0 %v618
      %763 = vmatpush1.bf16.msra.mxu0 %v617
      %764 = vmatprep.subr.bf16.mxu0 %v622
      %765 = vmatpush1.bf16.msra.mxu0 %v621
      %766 = vmatprep.subr.bf16.mxu0 %v626
      %767 = vmatpush1.bf16.msra.mxu0 %v625
      %768 = vmatprep.subr.bf16.mxu0 %v630
      %769 = vmatpush1.bf16.msra.mxu0 %v629
      %770 = vmatprep.subr.bf16.mxu0 %v634
      %771 = vmatpush1.bf16.msra.mxu0 %v633
      %772 = vmatprep.mubr.bf16.mxu0 %v314
      %773 = vmatmul.mubr.bf16.gmra.mrb[0].mxu0 %v313
      %v774 = vpop.f32.mrb[0].mxu0
      %v775 = vadd.f32 0.0, %v774
      %v776 = vpop.f32.mrb[0].mxu0
      %v777 = vadd.f32 0.0, %v776
      %v778 = vpop.f32.mrb[0].mxu0
      %v779 = vpop.f32.mrb[0].mxu0
      %780 = vdwg.mxu0
      %v781 = vmul.f32 %v734, %v734
      %v782 = vmul.f32 %v736, %v736
      %v783 = vmul.f32 %v775, %v775
      %v784 = vmul.f32 %v777, %v777
      %v785 = vadd.f32 %v781, %v783
      %v786 = vadd.f32 %v782, %v784
      %v787 = vld [vmem:[#allocation2] sm:$0x3]
      %v788 = vld [vmem:[%s258] sm:$0xff]
      %v789 = vld [vmem:[%s258 + $0x8] sm:$0xff]
      %v790 = vld [vmem:[%s258 + $0x10] sm:$0xff]
      %v791 = vld [vmem:[%s258 + $0x18] sm:$0xff]
      %v792 = vld [vmem:[%s258 + $0x20] sm:$0xff]
      %v793 = vld [vmem:[%s258 + $0x28] sm:$0xff]
      %v794 = vld [vmem:[%s258 + $0x30] sm:$0xff]
      %v795 = vld [vmem:[%s258 + $0x38] sm:$0xff]
      %v796 = vld [vmem:[%s258 + $0x40] sm:$0xff]
      %v797 = vld [vmem:[%s258 + $0x48] sm:$0xff]
      %v798 = vld [vmem:[%s258 + $0x50] sm:$0xff]
      %v799 = vld [vmem:[%s258 + $0x58] sm:$0xff]
      %v800 = vld [vmem:[%s258 + $0x60] sm:$0xff]
      %v801 = vld [vmem:[%s258 + $0x68] sm:$0xff]
      %v802 = vld [vmem:[%s258 + $0x70] sm:$0xff]
      %v803 = vld [vmem:[%s258 + $0x78] sm:$0xff]
      %v804 = vld [vmem:[%s258 + $0x80] sm:$0xff]
      %v805 = vld [vmem:[%s258 + $0x88] sm:$0xff]
      %v806 = vld [vmem:[%s258 + $0x90] sm:$0xff]
      %v807 = vld [vmem:[%s258 + $0x98] sm:$0xff]
      %v808 = vld [vmem:[%s258 + $0xa0] sm:$0xff]
      %v809 = vld [vmem:[%s258 + $0xa8] sm:$0xff]
      %v810 = vld [vmem:[%s258 + $0xb0] sm:$0xff]
      %v811 = vld [vmem:[%s258 + $0xb8] sm:$0xff]
      %v812 = vld [vmem:[%s258 + $0xc0] sm:$0xff]
      %v813 = vld [vmem:[%s258 + $0xc8] sm:$0xff]
      %v814 = vld [vmem:[%s258 + $0xd0] sm:$0xff]
      %v815 = vld [vmem:[%s258 + $0xd8] sm:$0xff]
      %v816 = vld [vmem:[%s258 + $0xe0] sm:$0xff]
      %v817 = vld [vmem:[%s258 + $0xe8] sm:$0xff]
      %v818 = vld [vmem:[%s258 + $0xf0] sm:$0xff]
      %v819 = vld [vmem:[%s258 + $0xf8] sm:$0xff]
      %820 = vmatprep.subr.mxu0 0.0
      %821 = vmatpush1.msra.mxu0 %v788
      %822 = vmatprep.subr.mxu0 0.0
      %823 = vmatpush1.msra.mxu0 %v789
      %824 = vmatprep.subr.mxu0 0.0
      %825 = vmatpush1.msra.mxu0 %v790
      %826 = vmatprep.subr.mxu0 0.0
      %827 = vmatpush1.msra.mxu0 %v791
      %828 = vmatprep.subr.mxu0 0.0
      %829 = vmatpush1.msra.mxu0 %v792
      %830 = vmatprep.subr.mxu0 0.0
      %831 = vmatpush1.msra.mxu0 %v793
      %832 = vmatprep.subr.mxu0 0.0
      %833 = vmatpush1.msra.mxu0 %v794
      %834 = vmatprep.subr.mxu0 0.0
      %835 = vmatpush1.msra.mxu0 %v795
      %836 = vmatprep.subr.mxu0 0.0
      %837 = vmatpush1.msra.mxu0 %v796
      %838 = vmatprep.subr.mxu0 0.0
      %839 = vmatpush1.msra.mxu0 %v797
      %840 = vmatprep.subr.mxu0 0.0
      %841 = vmatpush1.msra.mxu0 %v798
      %842 = vmatprep.subr.mxu0 0.0
      %843 = vmatpush1.msra.mxu0 %v799
      %844 = vmatprep.subr.mxu0 0.0
      %845 = vmatpush1.msra.mxu0 %v800
      %846 = vmatprep.subr.mxu0 0.0
      %847 = vmatpush1.msra.mxu0 %v801
      %848 = vmatprep.subr.mxu0 0.0
      %849 = vmatpush1.msra.mxu0 %v802
      %850 = vmatprep.subr.mxu0 0.0
      %851 = vmatpush1.msra.mxu0 %v803
      %852 = vmatprep.subr.mxu0 0.0
      %853 = vmatpush1.msra.mxu0 %v804
      %854 = vmatprep.subr.mxu0 0.0
      %855 = vmatpush1.msra.mxu0 %v805
      %856 = vmatprep.subr.mxu0 0.0
      %857 = vmatpush1.msra.mxu0 %v806
      %858 = vmatprep.subr.mxu0 0.0
      %859 = vmatpush1.msra.mxu0 %v807
      %860 = vmatprep.subr.mxu0 0.0
      %861 = vmatpush1.msra.mxu0 %v808
      %862 = vmatprep.subr.mxu0 0.0
      %863 = vmatpush1.msra.mxu0 %v809
      %864 = vmatprep.subr.mxu0 0.0
      %865 = vmatpush1.msra.mxu0 %v810
      %866 = vmatprep.subr.mxu0 0.0
      %867 = vmatpush1.msra.mxu0 %v811
      %868 = vmatprep.subr.mxu0 0.0
      %869 = vmatpush1.msra.mxu0 %v812
      %870 = vmatprep.subr.mxu0 0.0
      %871 = vmatpush1.msra.mxu0 %v813
      %872 = vmatprep.subr.mxu0 0.0
      %873 = vmatpush1.msra.mxu0 %v814
      %874 = vmatprep.subr.mxu0 0.0
      %875 = vmatpush1.msra.mxu0 %v815
      %876 = vmatprep.subr.mxu0 0.0
      %877 = vmatpush1.msra.mxu0 %v816
      %878 = vmatprep.subr.mxu0 0.0
      %879 = vmatpush1.msra.mxu0 %v817
      %880 = vmatprep.subr.mxu0 0.0
      %881 = vmatpush1.msra.mxu0 %v818
      %882 = vmatprep.subr.mxu0 0.0
      %883 = vmatpush1.msra.mxu0 %v819
      %884 = vmatprep.mubr.f32.mxu0 %v786
      %885 = vmatmul.mubr.f32.gmra.mrb[0].mxu0 %v785
      %v886 = vpop.f32.mrb[0].mxu0
      %v887 = vadd.f32 0.0, %v886
      %v888 = vpop.f32.mrb[0].mxu0
      %889 = vdwg.mxu0
      %v890 = vadd.f32 %v787, %v887
      %vm891 = vcmask 74752
      %892 = vst.msk [vmem:[#allocation2] sm:$0x3] %vm891, %v890
      %v893 = vld [vmem:[#allocation2] sm:$0x3]
      %894 = vst.msk [vmem:[%s264] sm:$0x3] %vm891, %v893
      %p895 = scmp.lt.s32.totalorder %s18, 1
      %s896 = scalar_select %p895, %s18, 1
      %s897 = smul.addr %s896, 2
      %s898 = scalar_lea.vmem %s3, %s897
      // Predicated region
      $region37: #{hybrid_reid_forward.3} parent=31 // pred_check
        %p899 = pneg %p134
      $region38: #{hybrid_reid_forward.3} parent=31 // pred_check_branch
        %901 = sbr.rel (%p899) target = $region40
      $region39: #{hybrid_reid_forward.3} parent=31 // pred_region
        _
      $region40: #{hybrid_reid_forward.3} parent=31 // pred_fallthru
        _
    $region32: #{hybrid_reid_forward.3} parent=5 // pred_fallthru
      _
    %p902 = scmp.le.s32.totalorder 2, %s9
    // Predicated region
    $region41: #{hybrid_reid_forward.3} parent=5 // pred_check
      %p903 = pneg %p902
    $region42: #{hybrid_reid_forward.3} parent=5 // pred_check_branch
      %905 = sbr.rel (%p903) target = $region44
    $region43: #{hybrid_reid_forward.3} parent=5 // pred_region
      %s906 = ssub.s32 %s9, 2
      // Predicated region
      $region45: #{hybrid_reid_forward.3} parent=43 // pred_check
        %p907 = pneg %p140
      $region46: #{hybrid_reid_forward.3} parent=43 // pred_check_branch
        %909 = sbr.rel (%p907) target = $region48
      $region47: #{hybrid_reid_forward.3} parent=43 // pred_region
        %p910 = scmp.lt.s32.totalorder %s20, 1
        %s911 = scalar_select %p910, %s20, 1
        %s912 = smul.addr %s911, 2
        %s913 = scalar_lea.vmem %s3, %s912
      $region48: #{hybrid_reid_forward.3} parent=43 // pred_fallthru
        _
    $region44: #{hybrid_reid_forward.3} parent=5 // pred_fallthru
      _
  $region6: #{hybrid_reid_forward.3} parent=0 // loop_footer
    %s13 = sadd.s32 1, %s9
  $region7: #{hybrid_reid_forward.3} parent=0 // loop_footer_branch
    %8 = sbr.rel target = $region3
  $region8: #{hybrid_reid_forward.3} parent=0 // loop_exit
    _

// kernel: hybrid_reid_forward.2
$region0: #{hybrid_reid_forward.2}
  #allocation0 [shape = 'u32[]', space=smem, size = 0x4, offset = 0x4, fixed_abs, tag = 'smem constant byte address 0x4 - core index']
  #allocation1 [shape = 'u32[144,128]{1,0:T(1,128)}', space=vmem, size = 0x12000, scoped, tag = 'internal scratch']
  %s0 = inlined_call_operand.vmem [shape: f32[512,27], index: 0, kind: input, shape index: {}]
  %s1 = inlined_call_operand.hbm [shape: f32[27,32], index: 1, kind: input, shape index: {}]
  %s2 = inlined_call_operand.hbm [shape: f32[1,32], index: 2, kind: input, shape index: {}]
  %s3 = inlined_call_operand.hbm [shape: bf16[32,2048], index: 3, kind: input, shape index: {}]
  %s4 = inlined_call_operand.hbm [shape: f32[1,2048], index: 4, kind: input, shape index: {}]
  %s5 = inlined_call_operand.vmem [shape: f32[2,1,2048], index: 5, kind: output, shape index: {}]
  %s6 = sld [smem:[#allocation0]]
  $region69: #{hybrid_reid_forward.2} parent=0
    _
  %s8 = ssub.s32 1, %s6
  %s9 = scalar_select 0, %s8, %s6
  $region1: #{hybrid_reid_forward.2} parent=0
    #allocation2 [shape = 'u8[16384]{0}', space=vmem, size = 0x4000, scoped, tag = 'input window, operand 1, single buffered']
    #allocation3 [shape = 's32[2]{0}', space=sflag, size = 0x8, scoped, tag = 'scoped memory for hybrid_reid_forward.2']
    #allocation4 [shape = 'u8[512]{0}', space=vmem, size = 0x400, scoped, tag = 'input window, operand 2, single buffered']
    #allocation5 [shape = 's32[1]{0}', space=sflag, size = 0x4, scoped, tag = 'scoped memory for hybrid_reid_forward.2']
    #allocation6 [shape = 'u8[131072]{0}', space=vmem, size = 0x20000, scoped, tag = 'input window, operand 3, single buffered']
    #allocation7 [shape = 'u8[8192]{0}', space=vmem, size = 0x2000, scoped, tag = 'input window, operand 4, single buffered']
    #allocation8 [shape = 's32[1]{0}', space=sflag, size = 0x4, scoped, tag = 'scoped memory for hybrid_reid_forward.2']
    %10 = vsyncpa [#allocation3], 0
    %11 = vsyncpa [#allocation5], 0
    %12 = vsyncpa [#allocation8], 0
    loop: start=0, step=1, limit=4
    $region2: #{hybrid_reid_forward.2} parent=1 // loop_pre_header
      _
    $region3: #{hybrid_reid_forward.2} parent=1 // loop_header
      %s14 = sphi 0, %s18
      %p15 = scmp.ge.s32.totalorder %s14, 4
      %s24 = sphi 0, %s26
      %s27 = sphi 0, %s24
      %s28 = sphi 0, %s27
      %s44 = sphi 0, %s28
      %s48 = sphi 0, %s48
      %s50 = sphi 0, %s48
      %s51 = sphi 0, %s50
      %s65 = sphi 0, %s51
      %s69 = sphi 0, %s69
      %s71 = sphi 0, %s69
      %s72 = sphi 0, %s71
      %s86 = sphi 0, %s72
      %s90 = sphi 0, %s90
      %s92 = sphi 0, %s90
      %s93 = sphi 0, %s92
      %s107 = sphi 0, %s93
      %s111 = sphi 0, %s111
      %s113 = sphi 0, %s111
      %s114 = sphi 0, %s113
      %s128 = sphi 0, %s114
      %s134 = sphi 0, %s136
      %s137 = sphi 0, %s134
      %s138 = sphi 0, %s137
      %s154 = sphi 0, %s138
    $region4: #{hybrid_reid_forward.2} parent=1 // loop_header_branch
      %17 = sbr.rel (%p15) target = $region8
    $region5: #{hybrid_reid_forward.2} parent=1 // loop_body
      %s19 = ssub.s32 %s14, 1
      %s20 = ssub.s32 %s14, 2
      %s21 = sadd.s32 %s14, 1
      %s22 = ssub.s32 %s14, %s21
      %p23 = scmp.eq.s32.totalorder %s22, 0
      %s25 = sadd.s32 %s24, 1
      %s26 = scalar_select %p23, %s24, %s25
      %p29 = pneg %p23
      %p30 = scmp.eq.s32.totalorder %s14, 1
      %p31 = por %p29, %p30
      %p32 = scmp.ne.s32.totalorder %s24, %s27
      %p33 = scmp.eq.s32.totalorder %s14, 0
      %p34 = por %p32, %p33
      %p35 = scmp.ne.s32.totalorder %s24, %s27
      %p36 = scmp.eq.s32.totalorder %s19, 1
      %p37 = por %p35, %p36
      %p38 = scmp.ne.s32.totalorder %s27, %s28
      %p39 = scmp.eq.s32.totalorder %s19, 0
      %p40 = por %p38, %p39
      %p41 = scmp.ne.s32.totalorder %s27, %s28
      %p42 = scmp.eq.s32.totalorder %s20, 1
      %p43 = por %p41, %p42
      %p45 = scmp.ne.s32.totalorder %s28, %s44
      %p46 = scmp.eq.s32.totalorder %s20, 0
      %p47 = por %p45, %p46
      %s49 = sadd.s32 %s48, 1
      %p52 = scmp.eq.s32.totalorder %s14, 1
      %p53 = scmp.ne.s32.totalorder %s48, %s50
      %p54 = scmp.eq.s32.totalorder %s14, 0
      %p55 = por %p53, %p54
      %p56 = scmp.ne.s32.totalorder %s48, %s50
      %p57 = scmp.eq.s32.totalorder %s19, 1
      %p58 = por %p56, %p57
      %p59 = scmp.ne.s32.totalorder %s50, %s51
      %p60 = scmp.eq.s32.totalorder %s19, 0
      %p61 = por %p59, %p60
      %p62 = scmp.ne.s32.totalorder %s50, %s51
      %p63 = scmp.eq.s32.totalorder %s20, 1
      %p64 = por %p62, %p63
      %p66 = scmp.ne.s32.totalorder %s51, %s65
      %p67 = scmp.eq.s32.totalorder %s20, 0
      %p68 = por %p66, %p67
      %s70 = sadd.s32 %s69, 1
      %p73 = scmp.eq.s32.totalorder %s14, 1
      %p74 = scmp.ne.s32.totalorder %s69, %s71
      %p75 = scmp.eq.s32.totalorder %s14, 0
      %p76 = por %p74, %p75
      %p77 = scmp.ne.s32.totalorder %s69, %s71
      %p78 = scmp.eq.s32.totalorder %s19, 1
      %p79 = por %p77, %p78
      %p80 = scmp.ne.s32.totalorder %s71, %s72
      %p81 = scmp.eq.s32.totalorder %s19, 0
      %p82 = por %p80, %p81
      %p83 = scmp.ne.s32.totalorder %s71, %s72
      %p84 = scmp.eq.s32.totalorder %s20, 1
      %p85 = por %p83, %p84
      %p87 = scmp.ne.s32.totalorder %s72, %s86
      %p88 = scmp.eq.s32.totalorder %s20, 0
      %p89 = por %p87, %p88
      %s91 = sadd.s32 %s90, 1
      %p94 = scmp.eq.s32.totalorder %s14, 1
      %p95 = scmp.ne.s32.totalorder %s90, %s92
      %p96 = scmp.eq.s32.totalorder %s14, 0
      %p97 = por %p95, %p96
      %p98 = scmp.ne.s32.totalorder %s90, %s92
      %p99 = scmp.eq.s32.totalorder %s19, 1
      %p100 = por %p98, %p99
      %p101 = scmp.ne.s32.totalorder %s92, %s93
      %p102 = scmp.eq.s32.totalorder %s19, 0
      %p103 = por %p101, %p102
      %p104 = scmp.ne.s32.totalorder %s92, %s93
      %p105 = scmp.eq.s32.totalorder %s20, 1
      %p106 = por %p104, %p105
      %p108 = scmp.ne.s32.totalorder %s93, %s107
      %p109 = scmp.eq.s32.totalorder %s20, 0
      %p110 = por %p108, %p109
      %s112 = sadd.s32 %s111, 1
      %p115 = scmp.eq.s32.totalorder %s14, 1
      %p116 = scmp.ne.s32.totalorder %s111, %s113
      %p117 = scmp.eq.s32.totalorder %s14, 0
      %p118 = por %p116, %p117
      %p119 = scmp.ne.s32.totalorder %s111, %s113
      %p120 = scmp.eq.s32.totalorder %s19, 1
      %p121 = por %p119, %p120
      %p122 = scmp.ne.s32.totalorder %s113, %s114
      %p123 = scmp.eq.s32.totalorder %s19, 0
      %p124 = por %p122, %p123
      %p125 = scmp.ne.s32.totalorder %s113, %s114
      %p126 = scmp.eq.s32.totalorder %s20, 1
      %p127 = por %p125, %p126
      %p129 = scmp.ne.s32.totalorder %s114, %s128
      %p130 = scmp.eq.s32.totalorder %s20, 0
      %p131 = por %p129, %p130
      %s132 = ssub.s32 %s14, %s21
      %p133 = scmp.eq.s32.totalorder %s132, 0
      %s135 = sadd.s32 %s134, 1
      %s136 = scalar_select %p133, %s134, %s135
      %p139 = pneg %p133
      %p140 = scmp.eq.s32.totalorder %s14, 1
      %p141 = por %p139, %p140
      %p142 = scmp.ne.s32.totalorder %s134, %s137
      %p143 = scmp.eq.s32.totalorder %s14, 0
      %p144 = por %p142, %p143
      %p145 = scmp.ne.s32.totalorder %s134, %s137
      %p146 = scmp.eq.s32.totalorder %s19, 1
      %p147 = por %p145, %p146
      %p148 = scmp.ne.s32.totalorder %s137, %s138
      %p149 = scmp.eq.s32.totalorder %s19, 0
      %p150 = por %p148, %p149
      %p151 = scmp.ne.s32.totalorder %s137, %s138
      %p152 = scmp.eq.s32.totalorder %s20, 1
      %p153 = por %p151, %p152
      %p155 = scmp.ne.s32.totalorder %s138, %s154
      %p156 = scmp.eq.s32.totalorder %s20, 0
      %p157 = por %p155, %p156
      %p158 = scmp.le.s32.totalorder 1, %s14
      %p159 = scmp.lt.s32.totalorder %s14, 3
      %p160 = pnand %p158, %p159
      %p161 = pneg %p160
      // Predicated region
      $region9: #{hybrid_reid_forward.2} parent=5 // pred_check
        _
      $region10: #{hybrid_reid_forward.2} parent=5 // pred_check_branch
        %163 = sbr.rel (%p160) target = $region12
      $region11: #{hybrid_reid_forward.2} parent=5 // pred_region
        %s164 = ssub.s32 %s14, 1
        // Predicated region
        $region13: #{hybrid_reid_forward.2} parent=11 // pred_check
          %p165 = pneg %p61
        $region14: #{hybrid_reid_forward.2} parent=11 // pred_check_branch
          %167 = sbr.rel (%p165) target = $region16
        $region15: #{hybrid_reid_forward.2} parent=11 // pred_region
          %s169 = ssub.s32 512, 512
          %170 = vsyncadd [#allocation3], %s169
          %s171 = sshll.u32 [#allocation2], 4
          %s172 = int_to_ptr.vmem [resolvable:$true] %s171
          %177 = dma.hbm_to_vmem [thread:$0]  %s1, 512, %s172, [#allocation3], 128, 128, 8
        $region16: #{hybrid_reid_forward.2} parent=11 // pred_fallthru
          _
        // Predicated region
        $region17: #{hybrid_reid_forward.2} parent=11 // pred_check
          %p178 = pneg %p82
        $region18: #{hybrid_reid_forward.2} parent=11 // pred_check_branch
          %180 = sbr.rel (%p178) target = $region20
        $region19: #{hybrid_reid_forward.2} parent=11 // pred_region
          %s182 = ssub.s32 16, 16
          %183 = vsyncadd [#allocation5], %s182
          %s185 = sshll.u32 [#allocation4], 4
          %s186 = int_to_ptr.vmem [resolvable:$true] %s185
          %188 = dma.hbm_to_vmem [thread:$0]  %s2, 16, %s186, [#allocation5]
        $region20: #{hybrid_reid_forward.2} parent=11 // pred_fallthru
          _
        // Predicated region
        $region21: #{hybrid_reid_forward.2} parent=11 // pred_check
          %p189 = pneg %p103
        $region22: #{hybrid_reid_forward.2} parent=11 // pred_check_branch
          %191 = sbr.rel (%p189) target = $region24
        $region23: #{hybrid_reid_forward.2} parent=11 // pred_region
          %s193 = ssub.s32 4096, 4096
          %194 = vsyncadd [#allocation5], %s193
          %s195 = sshll.u32 [#allocation6], 4
          %s196 = int_to_ptr.vmem [resolvable:$true] %s195
          %201 = dma.hbm_to_vmem [thread:$0]  %s3, 4096, %s196, [#allocation5], 1024, 1024, 64
        $region24: #{hybrid_reid_forward.2} parent=11 // pred_fallthru
          _
        // Predicated region
        $region25: #{hybrid_reid_forward.2} parent=11 // pred_check
          %p202 = pneg %p124
        $region26: #{hybrid_reid_forward.2} parent=11 // pred_check_branch
          %204 = sbr.rel (%p202) target = $region28
        $region27: #{hybrid_reid_forward.2} parent=11 // pred_region
          %s206 = ssub.s32 256, 256
          %207 = vsyncadd [#allocation8], %s206
          %s209 = sshll.u32 [#allocation7], 4
          %s210 = int_to_ptr.vmem [resolvable:$true] %s209
          %212 = dma.hbm_to_vmem [thread:$0]  %s4, 256, %s210, [#allocation8]
        $region28: #{hybrid_reid_forward.2} parent=11 // pred_fallthru
          _
      $region12: #{hybrid_reid_forward.2} parent=5 // pred_fallthru
        _
      %p213 = scmp.lt.s32.totalorder %s14, 2
      // Predicated region
      $region29: #{hybrid_reid_forward.2} parent=5 // pred_check
        %p214 = pneg %p213
      $region30: #{hybrid_reid_forward.2} parent=5 // pred_check_branch
        %216 = sbr.rel (%p214) target = $region32
      $region31: #{hybrid_reid_forward.2} parent=5 // pred_region
        // Predicated region
        $region33: #{hybrid_reid_forward.2} parent=31 // pred_check
          %p217 = pneg %p34
        $region34: #{hybrid_reid_forward.2} parent=31 // pred_check_branch
          %219 = sbr.rel (%p217) target = $region36
        $region35: #{hybrid_reid_forward.2} parent=31 // pred_region
          %s220 = smul.u32 32, %s14
          %p221 = scmp.lt.s32.totalorder %s220, 63
          %s222 = scalar_select %p221, %s220, 63
          %s223 = smul.addr %s222, 8
          %s224 = scalar_lea.vmem %s0, %s223
          %s225 = smul.u32 32, %s14
        $region36: #{hybrid_reid_forward.2} parent=31 // pred_fallthru
          _
      $region32: #{hybrid_reid_forward.2} parent=5 // pred_fallthru
        _
      %p226 = scmp.le.s32.totalorder 1, %s14
      %p227 = scmp.lt.s32.totalorder %s14, 3
      %p228 = pnand %p226, %p227
      %p229 = pneg %p228
      // Predicated region
      $region37: #{hybrid_reid_forward.2} parent=5 // pred_check
        _
      $region38: #{hybrid_reid_forward.2} parent=5 // pred_check_branch
        %231 = sbr.rel (%p228) target = $region40
      $region39: #{hybrid_reid_forward.2} parent=5 // pred_region
        %s232 = ssub.s32 %s14, 1
        // Predicated region
        $region41: #{hybrid_reid_forward.2} parent=39 // pred_check
          %p233 = pneg %p61
        $region42: #{hybrid_reid_forward.2} parent=39 // pred_check_branch
          %235 = sbr.rel (%p233) target = $region44
        $region43: #{hybrid_reid_forward.2} parent=39 // pred_region
          %236 = dma.done [#allocation3], 512
        $region44: #{hybrid_reid_forward.2} parent=39 // pred_fallthru
          _
        // Predicated region
        $region45: #{hybrid_reid_forward.2} parent=39 // pred_check
          %p237 = pneg %p82
        $region46: #{hybrid_reid_forward.2} parent=39 // pred_check_branch
          %239 = sbr.rel (%p237) target = $region48
        $region47: #{hybrid_reid_forward.2} parent=39 // pred_region
          %240 = dma.done [#allocation5], 16
        $region48: #{hybrid_reid_forward.2} parent=39 // pred_fallthru
          _
        // Predicated region
        $region49: #{hybrid_reid_forward.2} parent=39 // pred_check
          %p241 = pneg %p103
        $region50: #{hybrid_reid_forward.2} parent=39 // pred_check_branch
          %243 = sbr.rel (%p241) target = $region52
        $region51: #{hybrid_reid_forward.2} parent=39 // pred_region
          %244 = dma.done [#allocation5], 4096
        $region52: #{hybrid_reid_forward.2} parent=39 // pred_fallthru
          _
        // Predicated region
        $region53: #{hybrid_reid_forward.2} parent=39 // pred_check
          %p245 = pneg %p124
        $region54: #{hybrid_reid_forward.2} parent=39 // pred_check_branch
          %247 = sbr.rel (%p245) target = $region56
        $region55: #{hybrid_reid_forward.2} parent=39 // pred_region
          %248 = dma.done [#allocation8], 256
        $region56: #{hybrid_reid_forward.2} parent=39 // pred_fallthru
          _
        %s249 = smul.u32 32, %s19
        %p250 = scmp.lt.s32.totalorder %s249, 63
        %s251 = scalar_select %p250, %s249, 63
        %s252 = smul.addr %s251, 8
        %s253 = scalar_lea.vmem %s0, %s252
        %p254 = pneg %p40
        %p255 = pneg %p37
        %p256 = pneg %p61
        %p257 = pneg %p58
        %p258 = pneg %p82
        %p259 = pneg %p79
        %p260 = pneg %p103
        %p261 = pneg %p100
        %p262 = pneg %p124
        %p263 = pneg %p121
        %p264 = pneg %p150
        %p265 = pneg %p147
        %p266 = scmp.lt.s32.totalorder %s19, 1
        %s267 = scalar_select %p266, %s19, 1
        %s268 = smul.addr %s267, 16
        %s269 = scalar_lea.vmem %s5, %s268
        %s270 = smul.u32 32, %s19
        %p271 = scmp.lt.s32.totalorder %s270, 63
        %s272 = scalar_select %p271, %s270, 63
        %s273 = smul.addr %s272, 8
        %s274 = scalar_lea.vmem %s0, %s273
        %s275 = smul.u32 32, %s19
        %p276 = scmp.lt.s32.totalorder %s19, 1
        %s277 = scalar_select %p276, %s19, 1
        %s278 = smul.addr %s277, 16
        %s279 = scalar_lea.vmem %s5, %s278
        %v281 = vld [vmem:[%s274] sm:$0xff]
        %v282 = vld [vmem:[%s274 + $0x8] sm:$0xff]
        %v283 = vld [vmem:[%s274 + $0x10] sm:$0xff]
        %v284 = vld [vmem:[%s274 + $0x18] sm:$0xff]
        %v285 = vld [vmem:[%s274 + $0x20] sm:$0xff]
        %v286 = vld [vmem:[%s274 + $0x28] sm:$0xff]
        %v287 = vld [vmem:[%s274 + $0x30] sm:$0xff]
        %v288 = vld [vmem:[%s274 + $0x38] sm:$0xff]
        %v289 = vld [vmem:[%s274 + $0x40] sm:$0xff]
        %v290 = vld [vmem:[%s274 + $0x48] sm:$0xff]
        %v291 = vld [vmem:[%s274 + $0x50] sm:$0xff]
        %v292 = vld [vmem:[%s274 + $0x58] sm:$0xff]
        %v293 = vld [vmem:[%s274 + $0x60] sm:$0xff]
        %v294 = vld [vmem:[%s274 + $0x68] sm:$0xff]
        %v295 = vld [vmem:[%s274 + $0x70] sm:$0xff]
        %v296 = vld [vmem:[%s274 + $0x78] sm:$0xff]
        %v297 = vld [vmem:[%s274 + $0x80] sm:$0xff]
        %v298 = vld [vmem:[%s274 + $0x88] sm:$0xff]
        %v299 = vld [vmem:[%s274 + $0x90] sm:$0xff]
        %v300 = vld [vmem:[%s274 + $0x98] sm:$0xff]
        %v301 = vld [vmem:[%s274 + $0xa0] sm:$0xff]
        %v302 = vld [vmem:[%s274 + $0xa8] sm:$0xff]
        %v303 = vld [vmem:[%s274 + $0xb0] sm:$0xff]
        %v304 = vld [vmem:[%s274 + $0xb8] sm:$0xff]
        %v305 = vld [vmem:[%s274 + $0xc0] sm:$0xff]
        %v306 = vld [vmem:[%s274 + $0xc8] sm:$0xff]
        %v307 = vld [vmem:[%s274 + $0xd0] sm:$0xff]
        %v308 = vld [vmem:[%s274 + $0xd8] sm:$0xff]
        %v309 = vld [vmem:[%s274 + $0xe0] sm:$0xff]
        %v310 = vld [vmem:[%s274 + $0xe8] sm:$0xff]
        %v311 = vld [vmem:[%s274 + $0xf0] sm:$0xff]
        %v312 = vld [vmem:[%s274 + $0xf8] sm:$0xff]
        %v313 = vld [vmem:[#allocation2] sm:$0xff]
        %v314 = vld [vmem:[#allocation2 + $0x8] sm:$0xff]
        %v315 = vld [vmem:[#allocation2 + $0x10] sm:$0xff]
        %v316 = vld [vmem:[#allocation2 + $0x18] sm:$0x7]
        %v317 = vld [vmem:[#allocation4] sm:$0x1]
        %v319 = vlaneseq
        %v320 = vshrl.u32 %v319, 7
        %v321 = vsub.s32 0, %v320
        %v322 = vrot.slane %v317, %v321
        %vm324 = vcmask 220160
        %v326 = vsel %vm324, %v281, 0
        %v329 = vsel %vm324, %v282, 0
        %v332 = vsel %vm324, %v283, 0
        %v335 = vsel %vm324, %v284, 0
        %v338 = vsel %vm324, %v285, 0
        %v341 = vsel %vm324, %v286, 0
        %v344 = vsel %vm324, %v287, 0
        %v347 = vsel %vm324, %v288, 0
        %v350 = vsel %vm324, %v289, 0
        %v353 = vsel %vm324, %v290, 0
        %v356 = vsel %vm324, %v291, 0
        %v359 = vsel %vm324, %v292, 0
        %v362 = vsel %vm324, %v293, 0
        %v365 = vsel %vm324, %v294, 0
        %v368 = vsel %vm324, %v295, 0
        %v371 = vsel %vm324, %v296, 0
        %v374 = vsel %vm324, %v297, 0
        %v377 = vsel %vm324, %v298, 0
        %v380 = vsel %vm324, %v299, 0
        %v383 = vsel %vm324, %v300, 0
        %v386 = vsel %vm324, %v301, 0
        %v389 = vsel %vm324, %v302, 0
        %v392 = vsel %vm324, %v303, 0
        %v395 = vsel %vm324, %v304, 0
        %v398 = vsel %vm324, %v305, 0
        %v401 = vsel %vm324, %v306, 0
        %v404 = vsel %vm324, %v307, 0
        %v407 = vsel %vm324, %v308, 0
        %v410 = vsel %vm324, %v309, 0
        %v413 = vsel %vm324, %v310, 0
        %v416 = vsel %vm324, %v311, 0
        %v419 = vsel %vm324, %v312, 0
        %vm421 = vcmask 1042432
        %v423 = vsel %vm421, %v316, 0
        %425 = vmatprep.subr.mxu0 0.0
        %426 = vmatpush1.msra.mxu0 %v313
        %427 = vmatprep.subr.mxu0 0.0
        %428 = vmatpush1.msra.mxu0 %v314
        %429 = vmatprep.subr.mxu0 0.0
        %430 = vmatpush1.msra.mxu0 %v315
        %431 = vmatprep.subr.mxu0 0.0
        %432 = vmatpush1.msra.mxu0 %v423
        %433 = vmatprep.subr.mxu0 0.0
        %434 = vmatpush1.msra.mxu0 0.0
        %435 = vmatprep.subr.mxu0 0.0
        %436 = vmatpush1.msra.mxu0 0.0
        %437 = vmatprep.subr.mxu0 0.0
        %438 = vmatpush1.msra.mxu0 0.0
        %439 = vmatprep.subr.mxu0 0.0
        %440 = vmatpush1.msra.mxu0 0.0
        %441 = vmatprep.subr.mxu0 0.0
        %442 = vmatpush1.msra.mxu0 0.0
        %443 = vmatprep.subr.mxu0 0.0
        %444 = vmatpush1.msra.mxu0 0.0
        %445 = vmatprep.subr.mxu0 0.0
        %446 = vmatpush1.msra.mxu0 0.0
        %447 = vmatprep.subr.mxu0 0.0
        %448 = vmatpush1.msra.mxu0 0.0
        %449 = vmatprep.subr.mxu0 0.0
        %450 = vmatpush1.msra.mxu0 0.0
        %451 = vmatprep.subr.mxu0 0.0
        %452 = vmatpush1.msra.mxu0 0.0
        %453 = vmatprep.subr.mxu0 0.0
        %454 = vmatpush1.msra.mxu0 0.0
        %455 = vmatprep.subr.mxu0 0.0
        %456 = vmatpush1.msra.mxu0 0.0
        %457 = vmatprep.subr.mxu0 0.0
        %458 = vmatpush1.msra.mxu0 0.0
        %459 = vmatprep.subr.mxu0 0.0
        %460 = vmatpush1.msra.mxu0 0.0
        %461 = vmatprep.subr.mxu0 0.0
        %462 = vmatpush1.msra.mxu0 0.0
        %463 = vmatprep.subr.mxu0 0.0
        %464 = vmatpush1.msra.mxu0 0.0
        %465 = vmatprep.subr.mxu0 0.0
        %466 = vmatpush1.msra.mxu0 0.0
        %467 = vmatprep.subr.mxu0 0.0
        %468 = vmatpush1.msra.mxu0 0.0
        %469 = vmatprep.subr.mxu0 0.0
        %470 = vmatpush1.msra.mxu0 0.0
        %471 = vmatprep.subr.mxu0 0.0
        %472 = vmatpush1.msra.mxu0 0.0
        %473 = vmatprep.subr.mxu0 0.0
        %474 = vmatpush1.msra.mxu0 0.0
        %475 = vmatprep.subr.mxu0 0.0
        %476 = vmatpush1.msra.mxu0 0.0
        %477 = vmatprep.subr.mxu0 0.0
        %478 = vmatpush1.msra.mxu0 0.0
        %479 = vmatprep.subr.mxu0 0.0
        %480 = vmatpush1.msra.mxu0 0.0
        %481 = vmatprep.subr.mxu0 0.0
        %482 = vmatpush1.msra.mxu0 0.0
        %483 = vmatprep.subr.mxu0 0.0
        %484 = vmatpush1.msra.mxu0 0.0
        %485 = vmatprep.subr.mxu0 0.0
        %486 = vmatpush1.msra.mxu0 0.0
        %487 = vmatprep.subr.mxu0 0.0
        %488 = vmatpush1.msra.mxu0 0.0
        %489 = vmatprep.mubr.f32.mxu0 0.0
        %490 = vmatmul.mubr.f32.gmra.mrb[0].mxu0 %v326
        %v491 = vpop.f32.mrb[0].mxu0
        %v492 = vadd.f32 %v322, %v491
        %v493 = vpop.f32.mrb[0].mxu0
        %494 = vmatprep.mubr.f32.mxu0 0.0
        %495 = vmatmul.mubr.f32.gmra.mrb[0].mxu0 %v329
        %v496 = vpop.f32.mrb[0].mxu0
        %v497 = vadd.f32 %v322, %v496
        %v498 = vpop.f32.mrb[0].mxu0
        %499 = vmatprep.mubr.f32.mxu0 0.0
        %500 = vmatmul.mubr.f32.gmra.mrb[0].mxu0 %v332
        %v501 = vpop.f32.mrb[0].mxu0
        %v502 = vadd.f32 %v322, %v501
        %v503 = vpop.f32.mrb[0].mxu0
        %504 = vmatprep.mubr.f32.mxu0 0.0
        %505 = vmatmul.mubr.f32.gmra.mrb[0].mxu0 %v335
        %v506 = vpop.f32.mrb[0].mxu0
        %v507 = vadd.f32 %v322, %v506
        %v508 = vpop.f32.mrb[0].mxu0
        %509 = vmatprep.mubr.f32.mxu0 0.0
        %510 = vmatmul.mubr.f32.gmra.mrb[0].mxu0 %v338
        %v511 = vpop.f32.mrb[0].mxu0
        %v512 = vadd.f32 %v322, %v511
        %v513 = vpop.f32.mrb[0].mxu0
        %514 = vmatprep.mubr.f32.mxu0 0.0
        %515 = vmatmul.mubr.f32.gmra.mrb[0].mxu0 %v341
        %v516 = vpop.f32.mrb[0].mxu0
        %v517 = vadd.f32 %v322, %v516
        %v518 = vpop.f32.mrb[0].mxu0
        %519 = vmatprep.mubr.f32.mxu0 0.0
        %520 = vmatmul.mubr.f32.gmra.mrb[0].mxu0 %v344
        %v521 = vpop.f32.mrb[0].mxu0
        %v522 = vadd.f32 %v322, %v521
        %v523 = vpop.f32.mrb[0].mxu0
        %524 = vmatprep.mubr.f32.mxu0 0.0
        %525 = vmatmul.mubr.f32.gmra.mrb[0].mxu0 %v347
        %v526 = vpop.f32.mrb[0].mxu0
        %v527 = vadd.f32 %v322, %v526
        %v528 = vpop.f32.mrb[0].mxu0
        %529 = vmatprep.mubr.f32.mxu0 0.0
        %530 = vmatmul.mubr.f32.gmra.mrb[0].mxu0 %v350
        %v531 = vpop.f32.mrb[0].mxu0
        %v532 = vadd.f32 %v322, %v531
        %v533 = vpop.f32.mrb[0].mxu0
        %534 = vmatprep.mubr.f32.mxu0 0.0
        %535 = vmatmul.mubr.f32.gmra.mrb[0].mxu0 %v353
        %v536 = vpop.f32.mrb[0].mxu0
        %v537 = vadd.f32 %v322, %v536
        %v538 = vpop.f32.mrb[0].mxu0
        %539 = vmatprep.mubr.f32.mxu0 0.0
        %540 = vmatmul.mubr.f32.gmra.mrb[0].mxu0 %v356
        %v541 = vpop.f32.mrb[0].mxu0
        %v542 = vadd.f32 %v322, %v541
        %v543 = vpop.f32.mrb[0].mxu0
        %544 = vmatprep.mubr.f32.mxu0 0.0
        %545 = vmatmul.mubr.f32.gmra.mrb[0].mxu0 %v359
        %v546 = vpop.f32.mrb[0].mxu0
        %v547 = vadd.f32 %v322, %v546
        %v548 = vpop.f32.mrb[0].mxu0
        %549 = vmatprep.mubr.f32.mxu0 0.0
        %550 = vmatmul.mubr.f32.gmra.mrb[0].mxu0 %v362
        %v551 = vpop.f32.mrb[0].mxu0
        %v552 = vadd.f32 %v322, %v551
        %v553 = vpop.f32.mrb[0].mxu0
        %554 = vmatprep.mubr.f32.mxu0 0.0
        %555 = vmatmul.mubr.f32.gmra.mrb[0].mxu0 %v365
        %v556 = vpop.f32.mrb[0].mxu0
        %v557 = vadd.f32 %v322, %v556
        %v558 = vpop.f32.mrb[0].mxu0
        %559 = vmatprep.mubr.f32.mxu0 0.0
        %560 = vmatmul.mubr.f32.gmra.mrb[0].mxu0 %v368
        %v561 = vpop.f32.mrb[0].mxu0
        %v562 = vadd.f32 %v322, %v561
        %v563 = vpop.f32.mrb[0].mxu0
        %564 = vmatprep.mubr.f32.mxu0 0.0
        %565 = vmatmul.mubr.f32.gmra.mrb[0].mxu0 %v371
        %v566 = vpop.f32.mrb[0].mxu0
        %v567 = vadd.f32 %v322, %v566
        %v568 = vpop.f32.mrb[0].mxu0
        %569 = vmatprep.mubr.f32.mxu0 0.0
        %570 = vmatmul.mubr.f32.gmra.mrb[0].mxu0 %v374
        %v571 = vpop.f32.mrb[0].mxu0
        %v572 = vadd.f32 %v322, %v571
        %v573 = vpop.f32.mrb[0].mxu0
        %574 = vmatprep.mubr.f32.mxu0 0.0
        %575 = vmatmul.mubr.f32.gmra.mrb[0].mxu0 %v377
        %v576 = vpop.f32.mrb[0].mxu0
        %v577 = vadd.f32 %v322, %v576
        %v578 = vpop.f32.mrb[0].mxu0
        %579 = vmatprep.mubr.f32.mxu0 0.0
        %580 = vmatmul.mubr.f32.gmra.mrb[0].mxu0 %v380
        %v581 = vpop.f32.mrb[0].mxu0
        %v582 = vadd.f32 %v322, %v581
        %v583 = vpop.f32.mrb[0].mxu0
        %584 = vmatprep.mubr.f32.mxu0 0.0
        %585 = vmatmul.mubr.f32.gmra.mrb[0].mxu0 %v383
        %v586 = vpop.f32.mrb[0].mxu0
        %v587 = vadd.f32 %v322, %v586
        %v588 = vpop.f32.mrb[0].mxu0
        %589 = vmatprep.mubr.f32.mxu0 0.0
        %590 = vmatmul.mubr.f32.gmra.mrb[0].mxu0 %v386
        %v591 = vpop.f32.mrb[0].mxu0
        %v592 = vadd.f32 %v322, %v591
        %v593 = vpop.f32.mrb[0].mxu0
        %594 = vmatprep.mubr.f32.mxu0 0.0
        %595 = vmatmul.mubr.f32.gmra.mrb[0].mxu0 %v389
        %v596 = vpop.f32.mrb[0].mxu0
        %v597 = vadd.f32 %v322, %v596
        %v598 = vpop.f32.mrb[0].mxu0
        %599 = vmatprep.mubr.f32.mxu0 0.0
        %600 = vmatmul.mubr.f32.gmra.mrb[0].mxu0 %v392
        %v601 = vpop.f32.mrb[0].mxu0
        %v602 = vadd.f32 %v322, %v601
        %v603 = vpop.f32.mrb[0].mxu0
        %604 = vmatprep.mubr.f32.mxu0 0.0
        %605 = vmatmul.mubr.f32.gmra.mrb[0].mxu0 %v395
        %v606 = vpop.f32.mrb[0].mxu0
        %v607 = vadd.f32 %v322, %v606
        %v608 = vpop.f32.mrb[0].mxu0
        %609 = vmatprep.mubr.f32.mxu0 0.0
        %610 = vmatmul.mubr.f32.gmra.mrb[0].mxu0 %v398
        %v611 = vpop.f32.mrb[0].mxu0
        %v612 = vadd.f32 %v322, %v611
        %v613 = vpop.f32.mrb[0].mxu0
        %614 = vmatprep.mubr.f32.mxu0 0.0
        %615 = vmatmul.mubr.f32.gmra.mrb[0].mxu0 %v401
        %v616 = vpop.f32.mrb[0].mxu0
        %v617 = vadd.f32 %v322, %v616
        %v618 = vpop.f32.mrb[0].mxu0
        %619 = vmatprep.mubr.f32.mxu0 0.0
        %620 = vmatmul.mubr.f32.gmra.mrb[0].mxu0 %v404
        %v621 = vpop.f32.mrb[0].mxu0
        %v622 = vadd.f32 %v322, %v621
        %v623 = vpop.f32.mrb[0].mxu0
        %624 = vmatprep.mubr.f32.mxu0 0.0
        %625 = vmatmul.mubr.f32.gmra.mrb[0].mxu0 %v407
        %v626 = vpop.f32.mrb[0].mxu0
        %v627 = vadd.f32 %v322, %v626
        %v628 = vpop.f32.mrb[0].mxu0
        %629 = vmatprep.mubr.f32.mxu0 0.0
        %630 = vmatmul.mubr.f32.gmra.mrb[0].mxu0 %v410
        %v631 = vpop.f32.mrb[0].mxu0
        %v632 = vadd.f32 %v322, %v631
        %v633 = vpop.f32.mrb[0].mxu0
        %634 = vmatprep.mubr.f32.mxu0 0.0
        %635 = vmatmul.mubr.f32.gmra.mrb[0].mxu0 %v413
        %v636 = vpop.f32.mrb[0].mxu0
        %v637 = vadd.f32 %v322, %v636
        %v638 = vpop.f32.mrb[0].mxu0
        %639 = vmatprep.mubr.f32.mxu0 0.0
        %640 = vmatmul.mubr.f32.gmra.mrb[0].mxu0 %v416
        %v641 = vpop.f32.mrb[0].mxu0
        %v642 = vadd.f32 %v322, %v641
        %v643 = vpop.f32.mrb[0].mxu0
        %644 = vmatprep.mubr.f32.mxu0 0.0
        %645 = vmatmul.mubr.f32.gmra.mrb[0].mxu0 %v419
        %v646 = vpop.f32.mrb[0].mxu0
        %v647 = vadd.f32 %v322, %v646
        %v648 = vpop.f32.mrb[0].mxu0
        %649 = vdwg.mxu0
        %v650 = vmax.f32 %v492, 0.0
        %v651 = vmax.f32 %v497, 0.0
        %v652 = vmax.f32 %v502, 0.0
        %v653 = vmax.f32 %v507, 0.0
        %v654 = vmax.f32 %v512, 0.0
        %v655 = vmax.f32 %v517, 0.0
        %v656 = vmax.f32 %v522, 0.0
        %v657 = vmax.f32 %v527, 0.0
        %v658 = vmax.f32 %v532, 0.0
        %v659 = vmax.f32 %v537, 0.0
        %v660 = vmax.f32 %v542, 0.0
        %v661 = vmax.f32 %v547, 0.0
        %v662 = vmax.f32 %v552, 0.0
        %v663 = vmax.f32 %v557, 0.0
        %v664 = vmax.f32 %v562, 0.0
        %v665 = vmax.f32 %v567, 0.0
        %v666 = vmax.f32 %v572, 0.0
        %v667 = vmax.f32 %v577, 0.0
        %v668 = vmax.f32 %v582, 0.0
        %v669 = vmax.f32 %v587, 0.0
        %v670 = vmax.f32 %v592, 0.0
        %v671 = vmax.f32 %v597, 0.0
        %v672 = vmax.f32 %v602, 0.0
        %v673 = vmax.f32 %v607, 0.0
        %v674 = vmax.f32 %v612, 0.0
        %v675 = vmax.f32 %v617, 0.0
        %v676 = vmax.f32 %v622, 0.0
        %v677 = vmax.f32 %v627, 0.0
        %v678 = vmax.f32 %v632, 0.0
        %v679 = vmax.f32 %v637, 0.0
        %v680 = vmax.f32 %v642, 0.0
        %v681 = vmax.f32 %v647, 0.0
        %v682 = vpack.c.bf16 %v651, %v650
        %v683 = vpack.c.bf16 %v653, %v652
        %v684 = vpack.c.bf16 %v655, %v654
        %v685 = vpack.c.bf16 %v657, %v656
        %v686 = vpack.c.bf16 %v659, %v658
        %v687 = vpack.c.bf16 %v661, %v660
        %v688 = vpack.c.bf16 %v663, %v662
        %v689 = vpack.c.bf16 %v665, %v664
        %v690 = vpack.c.bf16 %v667, %v666
        %v691 = vpack.c.bf16 %v669, %v668
        %v692 = vpack.c.bf16 %v671, %v670
        %v693 = vpack.c.bf16 %v673, %v672
        %v694 = vpack.c.bf16 %v675, %v674
        %v695 = vpack.c.bf16 %v677, %v676
        %v696 = vpack.c.bf16 %v679, %v678
        %v697 = vpack.c.bf16 %v681, %v680
        %v698 = vld [vmem:[#allocation6] sm:$0xff]
        %v699 = vld [vmem:[#allocation6 + $0x8] sm:$0xff]
        %v700 = vld [vmem:[#allocation6 + $0x10] sm:$0xff]
        %v701 = vld [vmem:[#allocation6 + $0x18] sm:$0xff]
        %v702 = vld [vmem:[#allocation6 + $0x20] sm:$0xff]
        %v703 = vld [vmem:[#allocation6 + $0x28] sm:$0xff]
        %v704 = vld [vmem:[#allocation6 + $0x30] sm:$0xff]
        %v705 = vld [vmem:[#allocation6 + $0x38] sm:$0xff]
        %v706 = vld [vmem:[#allocation6 + $0x40] sm:$0xff]
        %v707 = vld [vmem:[#allocation6 + $0x48] sm:$0xff]
        %v708 = vld [vmem:[#allocation6 + $0x50] sm:$0xff]
        %v709 = vld [vmem:[#allocation6 + $0x58] sm:$0xff]
        %v710 = vld [vmem:[#allocation6 + $0x60] sm:$0xff]
        %v711 = vld [vmem:[#allocation6 + $0x68] sm:$0xff]
        %v712 = vld [vmem:[#allocation6 + $0x70] sm:$0xff]
        %v713 = vld [vmem:[#allocation6 + $0x78] sm:$0xff]
        %v714 = vld [vmem:[#allocation6 + $0x80] sm:$0xff]
        %v715 = vld [vmem:[#allocation6 + $0x88] sm:$0xff]
        %v716 = vld [vmem:[#allocation6 + $0x90] sm:$0xff]
        %v717 = vld [vmem:[#allocation6 + $0x98] sm:$0xff]
        %v718 = vld [vmem:[#allocation6 + $0xa0] sm:$0xff]
        %v719 = vld [vmem:[#allocation6 + $0xa8] sm:$0xff]
        %v720 = vld [vmem:[#allocation6 + $0xb0] sm:$0xff]
        %v721 = vld [vmem:[#allocation6 + $0xb8] sm:$0xff]
        %v722 = vld [vmem:[#allocation6 + $0xc0] sm:$0xff]
        %v723 = vld [vmem:[#allocation6 + $0xc8] sm:$0xff]
        %v724 = vld [vmem:[#allocation6 + $0xd0] sm:$0xff]
        %v725 = vld [vmem:[#allocation6 + $0xd8] sm:$0xff]
        %v726 = vld [vmem:[#allocation6 + $0xe0] sm:$0xff]
        %v727 = vld [vmem:[#allocation6 + $0xe8] sm:$0xff]
        %v728 = vld [vmem:[#allocation6 + $0xf0] sm:$0xff]
        %v729 = vld [vmem:[#allocation6 + $0xf8] sm:$0xff]
        %v730 = vld [vmem:[#allocation7] sm:$0xff]
        %v731 = vld [vmem:[#allocation7 + $0x8] sm:$0xff]
        %v734 = vlaneseq
        %v735 = vshrl.u32 %v734, 7
        %v736 = vsub.s32 0, %v735
        %v737 = vrot.slane %v730, %v736
        %v738 = vlaneseq
        %v739 = vshrl.u32 %v738, 7
        %v740 = vsub.s32 1, %v739
        %v741 = vrot.slane %v730, %v740
        %v742 = vlaneseq
        %v743 = vshrl.u32 %v742, 7
        %v744 = vsub.s32 2, %v743
        %v745 = vrot.slane %v730, %v744
        %v746 = vlaneseq
        %v747 = vshrl.u32 %v746, 7
        %v748 = vsub.s32 3, %v747
        %v749 = vrot.slane %v730, %v748
        %v750 = vlaneseq
        %v751 = vshrl.u32 %v750, 7
        %v752 = vsub.s32 4, %v751
        %v753 = vrot.slane %v730, %v752
        %v754 = vlaneseq
        %v755 = vshrl.u32 %v754, 7
        %v756 = vsub.s32 5, %v755
        %v757 = vrot.slane %v730, %v756
        %v758 = vlaneseq
        %v759 = vshrl.u32 %v758, 7
        %v760 = vsub.s32 6, %v759
        %v761 = vrot.slane %v730, %v760
        %v762 = vlaneseq
        %v763 = vshrl.u32 %v762, 7
        %v764 = vsub.s32 7, %v763
        %v765 = vrot.slane %v730, %v764
        %v766 = vlaneseq
        %v767 = vshrl.u32 %v766, 7
        %v768 = vsub.s32 0, %v767
        %v769 = vrot.slane %v731, %v768
        %v770 = vlaneseq
        %v771 = vshrl.u32 %v770, 7
        %v772 = vsub.s32 1, %v771
        %v773 = vrot.slane %v731, %v772
        %v774 = vlaneseq
        %v775 = vshrl.u32 %v774, 7
        %v776 = vsub.s32 2, %v775
        %v777 = vrot.slane %v731, %v776
        %v778 = vlaneseq
        %v779 = vshrl.u32 %v778, 7
        %v780 = vsub.s32 3, %v779
        %v781 = vrot.slane %v731, %v780
        %v782 = vlaneseq
        %v783 = vshrl.u32 %v782, 7
        %v784 = vsub.s32 4, %v783
        %v785 = vrot.slane %v731, %v784
        %v786 = vlaneseq
        %v787 = vshrl.u32 %v786, 7
        %v788 = vsub.s32 5, %v787
        %v789 = vrot.slane %v731, %v788
        %v790 = vlaneseq
        %v791 = vshrl.u32 %v790, 7
        %v792 = vsub.s32 6, %v791
        %v793 = vrot.slane %v731, %v792
        %v794 = vlaneseq
        %v795 = vshrl.u32 %v794, 7
        %v796 = vsub.s32 7, %v795
        %v797 = vrot.slane %v731, %v796
        %v846 = vunpack.c.l.b16 %v698
        %v847 = vunpack.c.h.b16 %v698
        %v848 = vunpack.c.l.b16 %v699
        %v849 = vunpack.c.h.b16 %v699
        %v850 = vunpack.c.l.b16 %v700
        %v851 = vunpack.c.h.b16 %v700
        %v852 = vunpack.c.l.b16 %v701
        %v853 = vunpack.c.h.b16 %v701
        %v854 = vunpack.c.l.b16 %v702
        %v855 = vunpack.c.h.b16 %v702
        %v856 = vunpack.c.l.b16 %v703
        %v857 = vunpack.c.h.b16 %v703
        %v858 = vunpack.c.l.b16 %v704
        %v859 = vunpack.c.h.b16 %v704
        %v860 = vunpack.c.l.b16 %v705
        %v861 = vunpack.c.h.b16 %v705
        %v862 = vunpack.c.l.b16 %v706
        %v863 = vunpack.c.h.b16 %v706
        %v864 = vunpack.c.l.b16 %v707
        %v865 = vunpack.c.h.b16 %v707
        %v866 = vunpack.c.l.b16 %v708
        %v867 = vunpack.c.h.b16 %v708
        %v868 = vunpack.c.l.b16 %v709
        %v869 = vunpack.c.h.b16 %v709
        %v870 = vunpack.c.l.b16 %v710
        %v871 = vunpack.c.h.b16 %v710
        %v872 = vunpack.c.l.b16 %v711
        %v873 = vunpack.c.h.b16 %v711
        %v874 = vunpack.c.l.b16 %v712
        %v875 = vunpack.c.h.b16 %v712
        %v876 = vunpack.c.l.b16 %v713
        %v877 = vunpack.c.h.b16 %v713
        %v878 = vunpack.c.l.b16 %v714
        %v879 = vunpack.c.h.b16 %v714
        %v880 = vunpack.c.l.b16 %v715
        %v881 = vunpack.c.h.b16 %v715
        %v882 = vunpack.c.l.b16 %v716
        %v883 = vunpack.c.h.b16 %v716
        %v884 = vunpack.c.l.b16 %v717
        %v885 = vunpack.c.h.b16 %v717
        %v886 = vunpack.c.l.b16 %v718
        %v887 = vunpack.c.h.b16 %v718
        %v888 = vunpack.c.l.b16 %v719
        %v889 = vunpack.c.h.b16 %v719
        %v890 = vunpack.c.l.b16 %v720
        %v891 = vunpack.c.h.b16 %v720
        %v892 = vunpack.c.l.b16 %v721
        %v893 = vunpack.c.h.b16 %v721
        %v894 = vunpack.c.l.b16 %v722
        %v895 = vunpack.c.h.b16 %v722
        %v896 = vunpack.c.l.b16 %v723
        %v897 = vunpack.c.h.b16 %v723
        %v898 = vunpack.c.l.b16 %v724
        %v899 = vunpack.c.h.b16 %v724
        %v900 = vunpack.c.l.b16 %v725
        %v901 = vunpack.c.h.b16 %v725
        %v902 = vunpack.c.l.b16 %v726
        %v903 = vunpack.c.h.b16 %v726
        %v904 = vunpack.c.l.b16 %v727
        %v905 = vunpack.c.h.b16 %v727
        %v906 = vunpack.c.l.b16 %v728
        %v907 = vunpack.c.h.b16 %v728
        %v908 = vunpack.c.l.b16 %v729
        %v909 = vunpack.c.h.b16 %v729
        %v910 = vpack.c.b16 %v862, %v846
        %v911 = vpack.c.b16 %v863, %v847
        %v912 = vpack.c.b16 %v864, %v848
        %v913 = vpack.c.b16 %v865, %v849
        %v914 = vpack.c.b16 %v866, %v850
        %v915 = vpack.c.b16 %v867, %v851
        %v916 = vpack.c.b16 %v868, %v852
        %v917 = vpack.c.b16 %v869, %v853
        %v918 = vpack.c.b16 %v870, %v854
        %v919 = vpack.c.b16 %v871, %v855
        %v920 = vpack.c.b16 %v872, %v856
        %v921 = vpack.c.b16 %v873, %v857
        %v922 = vpack.c.b16 %v874, %v858
        %v923 = vpack.c.b16 %v875, %v859
        %v924 = vpack.c.b16 %v876, %v860
        %v925 = vpack.c.b16 %v877, %v861
        %v926 = vpack.c.b16 %v894, %v878
        %v927 = vpack.c.b16 %v895, %v879
        %v928 = vpack.c.b16 %v896, %v880
        %v929 = vpack.c.b16 %v897, %v881
        %v930 = vpack.c.b16 %v898, %v882
        %v931 = vpack.c.b16 %v899, %v883
        %v932 = vpack.c.b16 %v900, %v884
        %v933 = vpack.c.b16 %v901, %v885
        %v934 = vpack.c.b16 %v902, %v886
        %v935 = vpack.c.b16 %v903, %v887
        %v936 = vpack.c.b16 %v904, %v888
        %v937 = vpack.c.b16 %v905, %v889
        %v938 = vpack.c.b16 %v906, %v890
        %v939 = vpack.c.b16 %v907, %v891
        %v940 = vpack.c.b16 %v908, %v892
        %v941 = vpack.c.b16 %v909, %v893
        %vm974 = vcmask 261120
        %v976 = vsel %vm974, %v682, 0
        %v979 = vsel %vm974, %v683, 0
        %v982 = vsel %vm974, %v684, 0
        %v985 = vsel %vm974, %v685, 0
        %v988 = vsel %vm974, %v686, 0
        %v991 = vsel %vm974, %v687, 0
        %v994 = vsel %vm974, %v688, 0
        %v997 = vsel %vm974, %v689, 0
        %v1000 = vsel %vm974, %v690, 0
        %v1003 = vsel %vm974, %v691, 0
        %v1006 = vsel %vm974, %v692, 0
        %v1009 = vsel %vm974, %v693, 0
        %v1012 = vsel %vm974, %v694, 0
        %v1015 = vsel %vm974, %v695, 0
        %v1018 = vsel %vm974, %v696, 0
        %v1021 = vsel %vm974, %v697, 0
        %1023 = vmatprep.subr.bf16.mxu0 %v911
        %1024 = vmatpush1.bf16.msra.mxu0 %v910
        %1025 = vmatprep.subr.bf16.mxu0 %v927
        %1026 = vmatpush1.bf16.msra.mxu0 %v926
        %1027 = vmatprep.subr.bf16.mxu0 0
        %1028 = vmatpush1.bf16.msra.mxu0 0
        %1029 = vmatprep.subr.bf16.mxu0 0
        %1030 = vmatpush1.bf16.msra.mxu0 0
        %1031 = vmatprep.subr.bf16.mxu0 0
        %1032 = vmatpush1.bf16.msra.mxu0 0
        %1033 = vmatprep.subr.bf16.mxu0 0
        %1034 = vmatpush1.bf16.msra.mxu0 0
        %1035 = vmatprep.subr.bf16.mxu0 0
        %1036 = vmatpush1.bf16.msra.mxu0 0
        %1037 = vmatprep.subr.bf16.mxu0 0
        %1038 = vmatpush1.bf16.msra.mxu0 0
        %1039 = vmatprep.subr.bf16.mxu0 0
        %1040 = vmatpush1.bf16.msra.mxu0 0
        %1041 = vmatprep.subr.bf16.mxu0 0
        %1042 = vmatpush1.bf16.msra.mxu0 0
        %1043 = vmatprep.subr.bf16.mxu0 0
        %1044 = vmatpush1.bf16.msra.mxu0 0
        %1045 = vmatprep.subr.bf16.mxu0 0
        %1046 = vmatpush1.bf16.msra.mxu0 0
        %1047 = vmatprep.subr.bf16.mxu0 0
        %1048 = vmatpush1.bf16.msra.mxu0 0
        %1049 = vmatprep.subr.bf16.mxu0 0
        %1050 = vmatpush1.bf16.msra.mxu0 0
        %1051 = vmatprep.subr.bf16.mxu0 0
        %1052 = vmatpush1.bf16.msra.mxu0 0
        %1053 = vmatprep.subr.bf16.mxu0 0
        %1054 = vmatpush1.bf16.msra.mxu0 0
        %1055 = vmatprep.mubr.bf16.mxu0 0
        %1056 = vmatmul.mubr.bf16.gmra.mrb[0].mxu0 %v976
        %v1057 = vpop.f32.mrb[0].mxu0
        %v1058 = vadd.f32 %v737, %v1057
        %v1059 = vpop.f32.mrb[0].mxu0
        %v1060 = vadd.f32 %v741, %v1059
        %v1061 = vpop.f32.mrb[0].mxu0
        %v1062 = vadd.f32 %v737, %v1061
        %v1063 = vpop.f32.mrb[0].mxu0
        %v1064 = vadd.f32 %v741, %v1063
        %1065 = vmatprep.mubr.bf16.mxu0 0
        %1066 = vmatmul.mubr.bf16.gmra.mrb[0].mxu0 %v979
        %v1067 = vpop.f32.mrb[0].mxu0
        %v1068 = vadd.f32 %v737, %v1067
        %v1069 = vpop.f32.mrb[0].mxu0
        %v1070 = vadd.f32 %v741, %v1069
        %v1071 = vpop.f32.mrb[0].mxu0
        %v1072 = vadd.f32 %v737, %v1071
        %v1073 = vpop.f32.mrb[0].mxu0
        %v1074 = vadd.f32 %v741, %v1073
        %1075 = vmatprep.mubr.bf16.mxu0 0
        %1076 = vmatmul.mubr.bf16.gmra.mrb[0].mxu0 %v982
        %v1077 = vpop.f32.mrb[0].mxu0
        %v1078 = vadd.f32 %v737, %v1077
        %v1079 = vpop.f32.mrb[0].mxu0
        %v1080 = vadd.f32 %v741, %v1079
        %v1081 = vpop.f32.mrb[0].mxu0
        %v1082 = vadd.f32 %v737, %v1081
        %v1083 = vpop.f32.mrb[0].mxu0
        %v1084 = vadd.f32 %v741, %v1083
        %1085 = vmatprep.mubr.bf16.mxu0 0
        %1086 = vmatmul.mubr.bf16.gmra.mrb[0].mxu0 %v985
        %v1087 = vpop.f32.mrb[0].mxu0
        %v1088 = vadd.f32 %v737, %v1087
        %v1089 = vpop.f32.mrb[0].mxu0
        %v1090 = vadd.f32 %v741, %v1089
        %v1091 = vpop.f32.mrb[0].mxu0
        %v1092 = vadd.f32 %v737, %v1091
        %v1093 = vpop.f32.mrb[0].mxu0
        %v1094 = vadd.f32 %v741, %v1093
        %1095 = vmatprep.mubr.bf16.mxu0 0
        %1096 = vmatmul.mubr.bf16.gmra.mrb[0].mxu0 %v988
        %v1097 = vpop.f32.mrb[0].mxu0
        %v1098 = vadd.f32 %v737, %v1097
        %v1099 = vpop.f32.mrb[0].mxu0
        %v1100 = vadd.f32 %v741, %v1099
        %v1101 = vpop.f32.mrb[0].mxu0
        %v1102 = vadd.f32 %v737, %v1101
        %v1103 = vpop.f32.mrb[0].mxu0
        %v1104 = vadd.f32 %v741, %v1103
        %1105 = vmatprep.mubr.bf16.mxu0 0
        %1106 = vmatmul.mubr.bf16.gmra.mrb[0].mxu0 %v991
        %v1107 = vpop.f32.mrb[0].mxu0
        %v1108 = vadd.f32 %v737, %v1107
        %v1109 = vpop.f32.mrb[0].mxu0
        %v1110 = vadd.f32 %v741, %v1109
        %v1111 = vpop.f32.mrb[0].mxu0
        %v1112 = vadd.f32 %v737, %v1111
        %v1113 = vpop.f32.mrb[0].mxu0
        %v1114 = vadd.f32 %v741, %v1113
        %1115 = vmatprep.mubr.bf16.mxu0 0
        %1116 = vmatmul.mubr.bf16.gmra.mrb[0].mxu0 %v994
        %v1117 = vpop.f32.mrb[0].mxu0
        %v1118 = vadd.f32 %v737, %v1117
        %v1119 = vpop.f32.mrb[0].mxu0
        %v1120 = vadd.f32 %v741, %v1119
        %v1121 = vpop.f32.mrb[0].mxu0
        %v1122 = vadd.f32 %v737, %v1121
        %v1123 = vpop.f32.mrb[0].mxu0
        %v1124 = vadd.f32 %v741, %v1123
        %1125 = vmatprep.mubr.bf16.mxu0 0
        %1126 = vmatmul.mubr.bf16.gmra.mrb[0].mxu0 %v997
        %v1127 = vpop.f32.mrb[0].mxu0
        %v1128 = vadd.f32 %v737, %v1127
        %v1129 = vpop.f32.mrb[0].mxu0
        %v1130 = vadd.f32 %v741, %v1129
        %v1131 = vpop.f32.mrb[0].mxu0
        %v1132 = vadd.f32 %v737, %v1131
        %v1133 = vpop.f32.mrb[0].mxu0
        %v1134 = vadd.f32 %v741, %v1133
        %1135 = vmatprep.mubr.bf16.mxu0 0
        %1136 = vmatmul.mubr.bf16.gmra.mrb[0].mxu0 %v1000
        %v1137 = vpop.f32.mrb[0].mxu0
        %v1138 = vadd.f32 %v737, %v1137
        %v1139 = vpop.f32.mrb[0].mxu0
        %v1140 = vadd.f32 %v741, %v1139
        %v1141 = vpop.f32.mrb[0].mxu0
        %v1142 = vadd.f32 %v737, %v1141
        %v1143 = vpop.f32.mrb[0].mxu0
        %v1144 = vadd.f32 %v741, %v1143
        %1145 = vmatprep.mubr.bf16.mxu0 0
        %1146 = vmatmul.mubr.bf16.gmra.mrb[0].mxu0 %v1003
        %v1147 = vpop.f32.mrb[0].mxu0
        %v1148 = vadd.f32 %v737, %v1147
        %v1149 = vpop.f32.mrb[0].mxu0
        %v1150 = vadd.f32 %v741, %v1149
        %v1151 = vpop.f32.mrb[0].mxu0
        %v1152 = vadd.f32 %v737, %v1151
        %v1153 = vpop.f32.mrb[0].mxu0
        %v1154 = vadd.f32 %v741, %v1153
        %1155 = vmatprep.mubr.bf16.mxu0 0
        %1156 = vmatmul.mubr.bf16.gmra.mrb[0].mxu0 %v1006
        %v1157 = vpop.f32.mrb[0].mxu0
        %v1158 = vadd.f32 %v737, %v1157
        %v1159 = vpop.f32.mrb[0].mxu0
        %v1160 = vadd.f32 %v741, %v1159
        %v1161 = vpop.f32.mrb[0].mxu0
        %v1162 = vadd.f32 %v737, %v1161
        %v1163 = vpop.f32.mrb[0].mxu0
        %v1164 = vadd.f32 %v741, %v1163
        %1165 = vmatprep.mubr.bf16.mxu0 0
        %1166 = vmatmul.mubr.bf16.gmra.mrb[0].mxu0 %v1009
        %v1167 = vpop.f32.mrb[0].mxu0
        %v1168 = vadd.f32 %v737, %v1167
        %v1169 = vpop.f32.mrb[0].mxu0
        %v1170 = vadd.f32 %v741, %v1169
        %v1171 = vpop.f32.mrb[0].mxu0
        %v1172 = vadd.f32 %v737, %v1171
        %v1173 = vpop.f32.mrb[0].mxu0
        %v1174 = vadd.f32 %v741, %v1173
        %1175 = vmatprep.mubr.bf16.mxu0 0
        %1176 = vmatmul.mubr.bf16.gmra.mrb[0].mxu0 %v1012
        %v1177 = vpop.f32.mrb[0].mxu0
        %v1178 = vadd.f32 %v737, %v1177
        %v1179 = vpop.f32.mrb[0].mxu0
        %v1180 = vadd.f32 %v741, %v1179
        %v1181 = vpop.f32.mrb[0].mxu0
        %v1182 = vadd.f32 %v737, %v1181
        %v1183 = vpop.f32.mrb[0].mxu0
        %v1184 = vadd.f32 %v741, %v1183
        %1185 = vmatprep.mubr.bf16.mxu0 0
        %1186 = vmatmul.mubr.bf16.gmra.mrb[0].mxu0 %v1015
        %v1187 = vpop.f32.mrb[0].mxu0
        %v1188 = vadd.f32 %v737, %v1187
        %v1189 = vpop.f32.mrb[0].mxu0
        %v1190 = vadd.f32 %v741, %v1189
        %v1191 = vpop.f32.mrb[0].mxu0
        %v1192 = vadd.f32 %v737, %v1191
        %v1193 = vpop.f32.mrb[0].mxu0
        %v1194 = vadd.f32 %v741, %v1193
        %1195 = vmatprep.mubr.bf16.mxu0 0
        %1196 = vmatmul.mubr.bf16.gmra.mrb[0].mxu0 %v1018
        %v1197 = vpop.f32.mrb[0].mxu0
        %v1198 = vadd.f32 %v737, %v1197
        %v1199 = vpop.f32.mrb[0].mxu0
        %v1200 = vadd.f32 %v741, %v1199
        %v1201 = vpop.f32.mrb[0].mxu0
        %v1202 = vadd.f32 %v737, %v1201
        %v1203 = vpop.f32.mrb[0].mxu0
        %v1204 = vadd.f32 %v741, %v1203
        %1205 = vmatprep.mubr.bf16.mxu0 0
        %1206 = vmatmul.mubr.bf16.gmra.mrb[0].mxu0 %v1021
        %v1207 = vpop.f32.mrb[0].mxu0
        %v1208 = vadd.f32 %v737, %v1207
        %v1209 = vpop.f32.mrb[0].mxu0
        %v1210 = vadd.f32 %v741, %v1209
        %v1211 = vpop.f32.mrb[0].mxu0
        %v1212 = vadd.f32 %v737, %v1211
        %v1213 = vpop.f32.mrb[0].mxu0
        %v1214 = vadd.f32 %v741, %v1213
        %1215 = vdwg.mxu0
        %1216 = vmatprep.subr.bf16.mxu0 %v913
        %1217 = vmatpush1.bf16.msra.mxu0 %v912
        %1218 = vmatprep.subr.bf16.mxu0 %v929
        %1219 = vmatpush1.bf16.msra.mxu0 %v928
        %1220 = vmatprep.subr.bf16.mxu0 0
        %1221 = vmatpush1.bf16.msra.mxu0 0
        %1222 = vmatprep.subr.bf16.mxu0 0
        %1223 = vmatpush1.bf16.msra.mxu0 0
        %1224 = vmatprep.subr.bf16.mxu0 0
        %1225 = vmatpush1.bf16.msra.mxu0 0
        %1226 = vmatprep.subr.bf16.mxu0 0
        %1227 = vmatpush1.bf16.msra.mxu0 0
        %1228 = vmatprep.subr.bf16.mxu0 0
        %1229 = vmatpush1.bf16.msra.mxu0 0
        %1230 = vmatprep.subr.bf16.mxu0 0
        %1231 = vmatpush1.bf16.msra.mxu0 0
        %1232 = vmatprep.subr.bf16.mxu0 0
        %1233 = vmatpush1.bf16.msra.mxu0 0
        %1234 = vmatprep.subr.bf16.mxu0 0
        %1235 = vmatpush1.bf16.msra.mxu0 0
        %1236 = vmatprep.subr.bf16.mxu0 0
        %1237 = vmatpush1.bf16.msra.mxu0 0
        %1238 = vmatprep.subr.bf16.mxu0 0
        %1239 = vmatpush1.bf16.msra.mxu0 0
        %1240 = vmatprep.subr.bf16.mxu0 0
        %1241 = vmatpush1.bf16.msra.mxu0 0
        %1242 = vmatprep.subr.bf16.mxu0 0
        %1243 = vmatpush1.bf16.msra.mxu0 0
        %1244 = vmatprep.subr.bf16.mxu0 0
        %1245 = vmatpush1.bf16.msra.mxu0 0
        %1246 = vmatprep.subr.bf16.mxu0 0
        %1247 = vmatpush1.bf16.msra.mxu0 0
        %1248 = vmatprep.mubr.bf16.mxu0 0
        %1249 = vmatmul.mubr.bf16.gmra.mrb[0].mxu0 %v976
        %v1250 = vpop.f32.mrb[0].mxu0
        %v1251 = vadd.f32 %v745, %v1250
        %v1252 = vpop.f32.mrb[0].mxu0
        %v1253 = vadd.f32 %v749, %v1252
        %v1254 = vpop.f32.mrb[0].mxu0
        %v1255 = vadd.f32 %v745, %v1254
        %v1256 = vpop.f32.mrb[0].mxu0
        %v1257 = vadd.f32 %v749, %v1256
        %1258 = vmatprep.mubr.bf16.mxu0 0
        %1259 = vmatmul.mubr.bf16.gmra.mrb[0].mxu0 %v979
        %v1260 = vpop.f32.mrb[0].mxu0
        %v1261 = vadd.f32 %v745, %v1260
        %v1262 = vpop.f32.mrb[0].mxu0
        %v1263 = vadd.f32 %v749, %v1262
        %v1264 = vpop.f32.mrb[0].mxu0
        %v1265 = vadd.f32 %v745, %v1264
        %v1266 = vpop.f32.mrb[0].mxu0
        %v1267 = vadd.f32 %v749, %v1266
        %1268 = vmatprep.mubr.bf16.mxu0 0
        %1269 = vmatmul.mubr.bf16.gmra.mrb[0].mxu0 %v982
        %v1270 = vpop.f32.mrb[0].mxu0
        %v1271 = vadd.f32 %v745, %v1270
        %v1272 = vpop.f32.mrb[0].mxu0
        %v1273 = vadd.f32 %v749, %v1272
        %v1274 = vpop.f32.mrb[0].mxu0
        %v1275 = vadd.f32 %v745, %v1274
        %v1276 = vpop.f32.mrb[0].mxu0
        %v1277 = vadd.f32 %v749, %v1276
        %1278 = vmatprep.mubr.bf16.mxu0 0
        %1279 = vmatmul.mubr.bf16.gmra.mrb[0].mxu0 %v985
        %v1280 = vpop.f32.mrb[0].mxu0
        %v1281 = vadd.f32 %v745, %v1280
        %v1282 = vpop.f32.mrb[0].mxu0
        %v1283 = vadd.f32 %v749, %v1282
        %v1284 = vpop.f32.mrb[0].mxu0
        %v1285 = vadd.f32 %v745, %v1284
        %v1286 = vpop.f32.mrb[0].mxu0
        %v1287 = vadd.f32 %v749, %v1286
        %1288 = vmatprep.mubr.bf16.mxu0 0
        %1289 = vmatmul.mubr.bf16.gmra.mrb[0].mxu0 %v988
        %v1290 = vpop.f32.mrb[0].mxu0
        %v1291 = vadd.f32 %v745, %v1290
        %v1292 = vpop.f32.mrb[0].mxu0
        %v1293 = vadd.f32 %v749, %v1292
        %v1294 = vpop.f32.mrb[0].mxu0
        %v1295 = vadd.f32 %v745, %v1294
        %v1296 = vpop.f32.mrb[0].mxu0
        %v1297 = vadd.f32 %v749, %v1296
        %1298 = vmatprep.mubr.bf16.mxu0 0
        %1299 = vmatmul.mubr.bf16.gmra.mrb[0].mxu0 %v991
        %v1300 = vpop.f32.mrb[0].mxu0
        %v1301 = vadd.f32 %v745, %v1300
        %v1302 = vpop.f32.mrb[0].mxu0
        %v1303 = vadd.f32 %v749, %v1302
        %v1304 = vpop.f32.mrb[0].mxu0
        %v1305 = vadd.f32 %v745, %v1304
        %v1306 = vpop.f32.mrb[0].mxu0
        %v1307 = vadd.f32 %v749, %v1306
        %1308 = vmatprep.mubr.bf16.mxu0 0
        %1309 = vmatmul.mubr.bf16.gmra.mrb[0].mxu0 %v994
        %v1310 = vpop.f32.mrb[0].mxu0
        %v1311 = vadd.f32 %v745, %v1310
        %v1312 = vpop.f32.mrb[0].mxu0
        %v1313 = vadd.f32 %v749, %v1312
        %v1314 = vpop.f32.mrb[0].mxu0
        %v1315 = vadd.f32 %v745, %v1314
        %v1316 = vpop.f32.mrb[0].mxu0
        %v1317 = vadd.f32 %v749, %v1316
        %1318 = vmatprep.mubr.bf16.mxu0 0
        %1319 = vmatmul.mubr.bf16.gmra.mrb[0].mxu0 %v997
        %v1320 = vpop.f32.mrb[0].mxu0
        %v1321 = vadd.f32 %v745, %v1320
        %v1322 = vpop.f32.mrb[0].mxu0
        %v1323 = vadd.f32 %v749, %v1322
        %v1324 = vpop.f32.mrb[0].mxu0
        %v1325 = vadd.f32 %v745, %v1324
        %v1326 = vpop.f32.mrb[0].mxu0
        %v1327 = vadd.f32 %v749, %v1326
        %1328 = vmatprep.mubr.bf16.mxu0 0
        %1329 = vmatmul.mubr.bf16.gmra.mrb[0].mxu0 %v1000
        %v1330 = vpop.f32.mrb[0].mxu0
        %v1331 = vadd.f32 %v745, %v1330
        %v1332 = vpop.f32.mrb[0].mxu0
        %v1333 = vadd.f32 %v749, %v1332
        %v1334 = vpop.f32.mrb[0].mxu0
        %v1335 = vadd.f32 %v745, %v1334
        %v1336 = vpop.f32.mrb[0].mxu0
        %v1337 = vadd.f32 %v749, %v1336
        %1338 = vmatprep.mubr.bf16.mxu0 0
        %1339 = vmatmul.mubr.bf16.gmra.mrb[0].mxu0 %v1003
        %v1340 = vpop.f32.mrb[0].mxu0
        %v1341 = vadd.f32 %v745, %v1340
        %v1342 = vpop.f32.mrb[0].mxu0
        %v1343 = vadd.f32 %v749, %v1342
        %v1344 = vpop.f32.mrb[0].mxu0
        %v1345 = vadd.f32 %v745, %v1344
        %v1346 = vpop.f32.mrb[0].mxu0
        %v1347 = vadd.f32 %v749, %v1346
        %1348 = vmatprep.mubr.bf16.mxu0 0
        %1349 = vmatmul.mubr.bf16.gmra.mrb[0].mxu0 %v1006
        %v1350 = vpop.f32.mrb[0].mxu0
        %v1351 = vadd.f32 %v745, %v1350
        %v1352 = vpop.f32.mrb[0].mxu0
        %v1353 = vadd.f32 %v749, %v1352
        %v1354 = vpop.f32.mrb[0].mxu0
        %v1355 = vadd.f32 %v745, %v1354
        %v1356 = vpop.f32.mrb[0].mxu0
        %v1357 = vadd.f32 %v749, %v1356
        %1358 = vmatprep.mubr.bf16.mxu0 0
        %1359 = vmatmul.mubr.bf16.gmra.mrb[0].mxu0 %v1009
        %v1360 = vpop.f32.mrb[0].mxu0
        %v1361 = vadd.f32 %v745, %v1360
        %v1362 = vpop.f32.mrb[0].mxu0
        %v1363 = vadd.f32 %v749, %v1362
        %v1364 = vpop.f32.mrb[0].mxu0
        %v1365 = vadd.f32 %v745, %v1364
        %v1366 = vpop.f32.mrb[0].mxu0
        %v1367 = vadd.f32 %v749, %v1366
        %1368 = vmatprep.mubr.bf16.mxu0 0
        %1369 = vmatmul.mubr.bf16.gmra.mrb[0].mxu0 %v1012
        %v1370 = vpop.f32.mrb[0].mxu0
        %v1371 = vadd.f32 %v745, %v1370
        %v1372 = vpop.f32.mrb[0].mxu0
        %v1373 = vadd.f32 %v749, %v1372
        %v1374 = vpop.f32.mrb[0].mxu0
        %v1375 = vadd.f32 %v745, %v1374
        %v1376 = vpop.f32.mrb[0].mxu0
        %v1377 = vadd.f32 %v749, %v1376
        %1378 = vmatprep.mubr.bf16.mxu0 0
        %1379 = vmatmul.mubr.bf16.gmra.mrb[0].mxu0 %v1015
        %v1380 = vpop.f32.mrb[0].mxu0
        %v1381 = vadd.f32 %v745, %v1380
        %v1382 = vpop.f32.mrb[0].mxu0
        %v1383 = vadd.f32 %v749, %v1382
        %v1384 = vpop.f32.mrb[0].mxu0
        %v1385 = vadd.f32 %v745, %v1384
        %v1386 = vpop.f32.mrb[0].mxu0
        %v1387 = vadd.f32 %v749, %v1386
        %1388 = vmatprep.mubr.bf16.mxu0 0
        %1389 = vmatmul.mubr.bf16.gmra.mrb[0].mxu0 %v1018
        %v1390 = vpop.f32.mrb[0].mxu0
        %v1391 = vadd.f32 %v745, %v1390
        %v1392 = vpop.f32.mrb[0].mxu0
        %v1393 = vadd.f32 %v749, %v1392
        %v1394 = vpop.f32.mrb[0].mxu0
        %v1395 = vadd.f32 %v745, %v1394
        %v1396 = vpop.f32.mrb[0].mxu0
        %v1397 = vadd.f32 %v749, %v1396
        %1398 = vmatprep.mubr.bf16.mxu0 0
        %1399 = vmatmul.mubr.bf16.gmra.mrb[0].mxu0 %v1021
        %v1400 = vpop.f32.mrb[0].mxu0
        %v1401 = vadd.f32 %v745, %v1400
        %v1402 = vpop.f32.mrb[0].mxu0
        %v1403 = vadd.f32 %v749, %v1402
        %v1404 = vpop.f32.mrb[0].mxu0
        %v1405 = vadd.f32 %v745, %v1404
        %v1406 = vpop.f32.mrb[0].mxu0
        %v1407 = vadd.f32 %v749, %v1406
        %1408 = vdwg.mxu0
        %1409 = vmatprep.subr.bf16.mxu0 %v915
        %1410 = vmatpush1.bf16.msra.mxu0 %v914
        %1411 = vmatprep.subr.bf16.mxu0 %v931
        %1412 = vmatpush1.bf16.msra.mxu0 %v930
        %1413 = vmatprep.subr.bf16.mxu0 0
        %1414 = vmatpush1.bf16.msra.mxu0 0
        %1415 = vmatprep.subr.bf16.mxu0 0
        %1416 = vmatpush1.bf16.msra.mxu0 0
        %1417 = vmatprep.subr.bf16.mxu0 0
        %1418 = vmatpush1.bf16.msra.mxu0 0
        %1419 = vmatprep.subr.bf16.mxu0 0
        %1420 = vmatpush1.bf16.msra.mxu0 0
        %1421 = vmatprep.subr.bf16.mxu0 0
        %1422 = vmatpush1.bf16.msra.mxu0 0
        %1423 = vmatprep.subr.bf16.mxu0 0
        %1424 = vmatpush1.bf16.msra.mxu0 0
        %1425 = vmatprep.subr.bf16.mxu0 0
        %1426 = vmatpush1.bf16.msra.mxu0 0
        %1427 = vmatprep.subr.bf16.mxu0 0
        %1428 = vmatpush1.bf16.msra.mxu0 0
        %1429 = vmatprep.subr.bf16.mxu0 0
        %1430 = vmatpush1.bf16.msra.mxu0 0
        %1431 = vmatprep.subr.bf16.mxu0 0
        %1432 = vmatpush1.bf16.msra.mxu0 0
        %1433 = vmatprep.subr.bf16.mxu0 0
        %1434 = vmatpush1.bf16.msra.mxu0 0
        %1435 = vmatprep.subr.bf16.mxu0 0
        %1436 = vmatpush1.bf16.msra.mxu0 0
        %1437 = vmatprep.subr.bf16.mxu0 0
        %1438 = vmatpush1.bf16.msra.mxu0 0
        %1439 = vmatprep.subr.bf16.mxu0 0
        %1440 = vmatpush1.bf16.msra.mxu0 0
        %1441 = vmatprep.mubr.bf16.mxu0 0
        %1442 = vmatmul.mubr.bf16.gmra.mrb[0].mxu0 %v976
        %v1443 = vpop.f32.mrb[0].mxu0
        %v1444 = vadd.f32 %v753, %v1443
        %v1445 = vpop.f32.mrb[0].mxu0
        %v1446 = vadd.f32 %v757, %v1445
        %v1447 = vpop.f32.mrb[0].mxu0
        %v1448 = vadd.f32 %v753, %v1447
        %v1449 = vpop.f32.mrb[0].mxu0
        %v1450 = vadd.f32 %v757, %v1449
        %1451 = vmatprep.mubr.bf16.mxu0 0
        %1452 = vmatmul.mubr.bf16.gmra.mrb[0].mxu0 %v979
        %v1453 = vpop.f32.mrb[0].mxu0
        %v1454 = vadd.f32 %v753, %v1453
        %v1455 = vpop.f32.mrb[0].mxu0
        %v1456 = vadd.f32 %v757, %v1455
        %v1457 = vpop.f32.mrb[0].mxu0
        %v1458 = vadd.f32 %v753, %v1457
        %v1459 = vpop.f32.mrb[0].mxu0
        %v1460 = vadd.f32 %v757, %v1459
        %1461 = vmatprep.mubr.bf16.mxu0 0
        %1462 = vmatmul.mubr.bf16.gmra.mrb[0].mxu0 %v982
        %v1463 = vpop.f32.mrb[0].mxu0
        %v1464 = vadd.f32 %v753, %v1463
        %v1465 = vpop.f32.mrb[0].mxu0
        %v1466 = vadd.f32 %v757, %v1465
        %v1467 = vpop.f32.mrb[0].mxu0
        %v1468 = vadd.f32 %v753, %v1467
        %v1469 = vpop.f32.mrb[0].mxu0
        %v1470 = vadd.f32 %v757, %v1469
        %1471 = vmatprep.mubr.bf16.mxu0 0
        %1472 = vmatmul.mubr.bf16.gmra.mrb[0].mxu0 %v985
        %v1473 = vpop.f32.mrb[0].mxu0
        %v1474 = vadd.f32 %v753, %v1473
        %v1475 = vpop.f32.mrb[0].mxu0
        %v1476 = vadd.f32 %v757, %v1475
        %v1477 = vpop.f32.mrb[0].mxu0
        %v1478 = vadd.f32 %v753, %v1477
        %v1479 = vpop.f32.mrb[0].mxu0
        %v1480 = vadd.f32 %v757, %v1479
        %1481 = vmatprep.mubr.bf16.mxu0 0
        %1482 = vmatmul.mubr.bf16.gmra.mrb[0].mxu0 %v988
        %v1483 = vpop.f32.mrb[0].mxu0
        %v1484 = vadd.f32 %v753, %v1483
        %v1485 = vpop.f32.mrb[0].mxu0
        %v1486 = vadd.f32 %v757, %v1485
        %v1487 = vpop.f32.mrb[0].mxu0
        %v1488 = vadd.f32 %v753, %v1487
        %v1489 = vpop.f32.mrb[0].mxu0
        %v1490 = vadd.f32 %v757, %v1489
        %1491 = vmatprep.mubr.bf16.mxu0 0
        %1492 = vmatmul.mubr.bf16.gmra.mrb[0].mxu0 %v991
        %v1493 = vpop.f32.mrb[0].mxu0
        %v1494 = vadd.f32 %v753, %v1493
        %v1495 = vpop.f32.mrb[0].mxu0
        %v1496 = vadd.f32 %v757, %v1495
        %v1497 = vpop.f32.mrb[0].mxu0
        %v1498 = vadd.f32 %v753, %v1497
        %v1499 = vpop.f32.mrb[0].mxu0
        %v1500 = vadd.f32 %v757, %v1499
        %1501 = vmatprep.mubr.bf16.mxu0 0
        %1502 = vmatmul.mubr.bf16.gmra.mrb[0].mxu0 %v994
        %v1503 = vpop.f32.mrb[0].mxu0
        %v1504 = vadd.f32 %v753, %v1503
        %v1505 = vpop.f32.mrb[0].mxu0
        %v1506 = vadd.f32 %v757, %v1505
        %v1507 = vpop.f32.mrb[0].mxu0
        %v1508 = vadd.f32 %v753, %v1507
        %v1509 = vpop.f32.mrb[0].mxu0
        %v1510 = vadd.f32 %v757, %v1509
        %1511 = vmatprep.mubr.bf16.mxu0 0
        %1512 = vmatmul.mubr.bf16.gmra.mrb[0].mxu0 %v997
        %v1513 = vpop.f32.mrb[0].mxu0
        %v1514 = vadd.f32 %v753, %v1513
        %v1515 = vpop.f32.mrb[0].mxu0
        %v1516 = vadd.f32 %v757, %v1515
        %v1517 = vpop.f32.mrb[0].mxu0
        %v1518 = vadd.f32 %v753, %v1517
        %v1519 = vpop.f32.mrb[0].mxu0
        %v1520 = vadd.f32 %v757, %v1519
        %1521 = vmatprep.mubr.bf16.mxu0 0
        %1522 = vmatmul.mubr.bf16.gmra.mrb[0].mxu0 %v1000
        %v1523 = vpop.f32.mrb[0].mxu0
        %v1524 = vadd.f32 %v753, %v1523
        %v1525 = vpop.f32.mrb[0].mxu0
        %v1526 = vadd.f32 %v757, %v1525
        %v1527 = vpop.f32.mrb[0].mxu0
        %v1528 = vadd.f32 %v753, %v1527
        %v1529 = vpop.f32.mrb[0].mxu0
        %v1530 = vadd.f32 %v757, %v1529
        %1531 = vmatprep.mubr.bf16.mxu0 0
        %1532 = vmatmul.mubr.bf16.gmra.mrb[0].mxu0 %v1003
        %v1533 = vpop.f32.mrb[0].mxu0
        %v1534 = vadd.f32 %v753, %v1533
        %v1535 = vpop.f32.mrb[0].mxu0
        %v1536 = vadd.f32 %v757, %v1535
        %v1537 = vpop.f32.mrb[0].mxu0
        %v1538 = vadd.f32 %v753, %v1537
        %v1539 = vpop.f32.mrb[0].mxu0
        %v1540 = vadd.f32 %v757, %v1539
        %1541 = vmatprep.mubr.bf16.mxu0 0
        %1542 = vmatmul.mubr.bf16.gmra.mrb[0].mxu0 %v1006
        %v1543 = vpop.f32.mrb[0].mxu0
        %v1544 = vadd.f32 %v753, %v1543
        %v1545 = vpop.f32.mrb[0].mxu0
        %v1546 = vadd.f32 %v757, %v1545
        %v1547 = vpop.f32.mrb[0].mxu0
        %v1548 = vadd.f32 %v753, %v1547
        %v1549 = vpop.f32.mrb[0].mxu0
        %v1550 = vadd.f32 %v757, %v1549
        %1551 = vmatprep.mubr.bf16.mxu0 0
        %1552 = vmatmul.mubr.bf16.gmra.mrb[0].mxu0 %v1009
        %v1553 = vpop.f32.mrb[0].mxu0
        %v1554 = vadd.f32 %v753, %v1553
        %v1555 = vpop.f32.mrb[0].mxu0
        %v1556 = vadd.f32 %v757, %v1555
        %v1557 = vpop.f32.mrb[0].mxu0
        %v1558 = vadd.f32 %v753, %v1557
        %v1559 = vpop.f32.mrb[0].mxu0
        %v1560 = vadd.f32 %v757, %v1559
        %1561 = vmatprep.mubr.bf16.mxu0 0
        %1562 = vmatmul.mubr.bf16.gmra.mrb[0].mxu0 %v1012
        %v1563 = vpop.f32.mrb[0].mxu0
        %v1564 = vadd.f32 %v753, %v1563
        %v1565 = vpop.f32.mrb[0].mxu0
        %v1566 = vadd.f32 %v757, %v1565
        %v1567 = vpop.f32.mrb[0].mxu0
        %v1568 = vadd.f32 %v753, %v1567
        %v1569 = vpop.f32.mrb[0].mxu0
        %v1570 = vadd.f32 %v757, %v1569
        %1571 = vmatprep.mubr.bf16.mxu0 0
        %1572 = vmatmul.mubr.bf16.gmra.mrb[0].mxu0 %v1015
        %v1573 = vpop.f32.mrb[0].mxu0
        %v1574 = vadd.f32 %v753, %v1573
        %v1575 = vpop.f32.mrb[0].mxu0
        %v1576 = vadd.f32 %v757, %v1575
        %v1577 = vpop.f32.mrb[0].mxu0
        %v1578 = vadd.f32 %v753, %v1577
        %v1579 = vpop.f32.mrb[0].mxu0
        %v1580 = vadd.f32 %v757, %v1579
        %1581 = vmatprep.mubr.bf16.mxu0 0
        %1582 = vmatmul.mubr.bf16.gmra.mrb[0].mxu0 %v1018
        %v1583 = vpop.f32.mrb[0].mxu0
        %v1584 = vadd.f32 %v753, %v1583
        %v1585 = vpop.f32.mrb[0].mxu0
        %v1586 = vadd.f32 %v757, %v1585
        %v1587 = vpop.f32.mrb[0].mxu0
        %v1588 = vadd.f32 %v753, %v1587
        %v1589 = vpop.f32.mrb[0].mxu0
        %v1590 = vadd.f32 %v757, %v1589
        %1591 = vmatprep.mubr.bf16.mxu0 0
        %1592 = vmatmul.mubr.bf16.gmra.mrb[0].mxu0 %v1021
        %v1593 = vpop.f32.mrb[0].mxu0
        %v1594 = vadd.f32 %v753, %v1593
        %v1595 = vpop.f32.mrb[0].mxu0
        %v1596 = vadd.f32 %v757, %v1595
        %v1597 = vpop.f32.mrb[0].mxu0
        %v1598 = vadd.f32 %v753, %v1597
        %v1599 = vpop.f32.mrb[0].mxu0
        %v1600 = vadd.f32 %v757, %v1599
        %1601 = vdwg.mxu0
        %1602 = vmatprep.subr.bf16.mxu0 %v917
        %1603 = vmatpush1.bf16.msra.mxu0 %v916
        %1604 = vmatprep.subr.bf16.mxu0 %v933
        %1605 = vmatpush1.bf16.msra.mxu0 %v932
        %1606 = vmatprep.subr.bf16.mxu0 0
        %1607 = vmatpush1.bf16.msra.mxu0 0
        %1608 = vmatprep.subr.bf16.mxu0 0
        %1609 = vmatpush1.bf16.msra.mxu0 0
        %1610 = vmatprep.subr.bf16.mxu0 0
        %1611 = vmatpush1.bf16.msra.mxu0 0
        %1612 = vmatprep.subr.bf16.mxu0 0
        %1613 = vmatpush1.bf16.msra.mxu0 0
        %1614 = vmatprep.subr.bf16.mxu0 0
        %1615 = vmatpush1.bf16.msra.mxu0 0
        %1616 = vmatprep.subr.bf16.mxu0 0
        %1617 = vmatpush1.bf16.msra.mxu0 0
        %1618 = vmatprep.subr.bf16.mxu0 0
        %1619 = vmatpush1.bf16.msra.mxu0 0
        %1620 = vmatprep.subr.bf16.mxu0 0
        %1621 = vmatpush1.bf16.msra.mxu0 0
        %1622 = vmatprep.subr.bf16.mxu0 0
        %1623 = vmatpush1.bf16.msra.mxu0 0
        %1624 = vmatprep.subr.bf16.mxu0 0
        %1625 = vmatpush1.bf16.msra.mxu0 0
        %1626 = vmatprep.subr.bf16.mxu0 0
        %1627 = vmatpush1.bf16.msra.mxu0 0
        %1628 = vmatprep.subr.bf16.mxu0 0
        %1629 = vmatpush1.bf16.msra.mxu0 0
        %1630 = vmatprep.subr.bf16.mxu0 0
        %1631 = vmatpush1.bf16.msra.mxu0 0
        %1632 = vmatprep.subr.bf16.mxu0 0
        %1633 = vmatpush1.bf16.msra.mxu0 0
        %1634 = vmatprep.mubr.bf16.mxu0 0
        %1635 = vmatmul.mubr.bf16.gmra.mrb[0].mxu0 %v976
        %v1636 = vpop.f32.mrb[0].mxu0
        %v1637 = vadd.f32 %v761, %v1636
        %v1638 = vpop.f32.mrb[0].mxu0
        %v1639 = vadd.f32 %v765, %v1638
        %v1640 = vpop.f32.mrb[0].mxu0
        %v1641 = vadd.f32 %v761, %v1640
        %v1642 = vpop.f32.mrb[0].mxu0
        %v1643 = vadd.f32 %v765, %v1642
        %1644 = vmatprep.mubr.bf16.mxu0 0
        %1645 = vmatmul.mubr.bf16.gmra.mrb[0].mxu0 %v979
        %v1646 = vpop.f32.mrb[0].mxu0
        %v1647 = vadd.f32 %v761, %v1646
        %v1648 = vpop.f32.mrb[0].mxu0
        %v1649 = vadd.f32 %v765, %v1648
        %v1650 = vpop.f32.mrb[0].mxu0
        %v1651 = vadd.f32 %v761, %v1650
        %v1652 = vpop.f32.mrb[0].mxu0
        %v1653 = vadd.f32 %v765, %v1652
        %1654 = vmatprep.mubr.bf16.mxu0 0
        %1655 = vmatmul.mubr.bf16.gmra.mrb[0].mxu0 %v982
        %v1656 = vpop.f32.mrb[0].mxu0
        %v1657 = vadd.f32 %v761, %v1656
        %v1658 = vpop.f32.mrb[0].mxu0
        %v1659 = vadd.f32 %v765, %v1658
        %v1660 = vpop.f32.mrb[0].mxu0
        %v1661 = vadd.f32 %v761, %v1660
        %v1662 = vpop.f32.mrb[0].mxu0
        %v1663 = vadd.f32 %v765, %v1662
        %1664 = vmatprep.mubr.bf16.mxu0 0
        %1665 = vmatmul.mubr.bf16.gmra.mrb[0].mxu0 %v985
        %v1666 = vpop.f32.mrb[0].mxu0
        %v1667 = vadd.f32 %v761, %v1666
        %v1668 = vpop.f32.mrb[0].mxu0
        %v1669 = vadd.f32 %v765, %v1668
        %v1670 = vpop.f32.mrb[0].mxu0
        %v1671 = vadd.f32 %v761, %v1670
        %v1672 = vpop.f32.mrb[0].mxu0
        %v1673 = vadd.f32 %v765, %v1672
        %1674 = vmatprep.mubr.bf16.mxu0 0
        %1675 = vmatmul.mubr.bf16.gmra.mrb[0].mxu0 %v988
        %v1676 = vpop.f32.mrb[0].mxu0
        %v1677 = vadd.f32 %v761, %v1676
        %v1678 = vpop.f32.mrb[0].mxu0
        %v1679 = vadd.f32 %v765, %v1678
        %v1680 = vpop.f32.mrb[0].mxu0
        %v1681 = vadd.f32 %v761, %v1680
        %v1682 = vpop.f32.mrb[0].mxu0
        %v1683 = vadd.f32 %v765, %v1682
        %1684 = vmatprep.mubr.bf16.mxu0 0
        %1685 = vmatmul.mubr.bf16.gmra.mrb[0].mxu0 %v991
        %v1686 = vpop.f32.mrb[0].mxu0
        %v1687 = vadd.f32 %v761, %v1686
        %v1688 = vpop.f32.mrb[0].mxu0
        %v1689 = vadd.f32 %v765, %v1688
        %v1690 = vpop.f32.mrb[0].mxu0
        %v1691 = vadd.f32 %v761, %v1690
        %v1692 = vpop.f32.mrb[0].mxu0
        %v1693 = vadd.f32 %v765, %v1692
        %1694 = vmatprep.mubr.bf16.mxu0 0
        %1695 = vmatmul.mubr.bf16.gmra.mrb[0].mxu0 %v994
        %v1696 = vpop.f32.mrb[0].mxu0
        %v1697 = vadd.f32 %v761, %v1696
        %v1698 = vpop.f32.mrb[0].mxu0
        %v1699 = vadd.f32 %v765, %v1698
        %v1700 = vpop.f32.mrb[0].mxu0
        %v1701 = vadd.f32 %v761, %v1700
        %v1702 = vpop.f32.mrb[0].mxu0
        %v1703 = vadd.f32 %v765, %v1702
        %1704 = vmatprep.mubr.bf16.mxu0 0
        %1705 = vmatmul.mubr.bf16.gmra.mrb[0].mxu0 %v997
        %v1706 = vpop.f32.mrb[0].mxu0
        %v1707 = vadd.f32 %v761, %v1706
        %v1708 = vpop.f32.mrb[0].mxu0
        %v1709 = vadd.f32 %v765, %v1708
        %v1710 = vpop.f32.mrb[0].mxu0
        %v1711 = vadd.f32 %v761, %v1710
        %v1712 = vpop.f32.mrb[0].mxu0
        %v1713 = vadd.f32 %v765, %v1712
        %1714 = vmatprep.mubr.bf16.mxu0 0
        %1715 = vmatmul.mubr.bf16.gmra.mrb[0].mxu0 %v1000
        %v1716 = vpop.f32.mrb[0].mxu0
        %v1717 = vadd.f32 %v761, %v1716
        %v1718 = vpop.f32.mrb[0].mxu0
        %v1719 = vadd.f32 %v765, %v1718
        %v1720 = vpop.f32.mrb[0].mxu0
        %v1721 = vadd.f32 %v761, %v1720
        %v1722 = vpop.f32.mrb[0].mxu0
        %v1723 = vadd.f32 %v765, %v1722
        %1724 = vmatprep.mubr.bf16.mxu0 0
        %1725 = vmatmul.mubr.bf16.gmra.mrb[0].mxu0 %v1003
        %v1726 = vpop.f32.mrb[0].mxu0
        %v1727 = vadd.f32 %v761, %v1726
        %v1728 = vpop.f32.mrb[0].mxu0
        %v1729 = vadd.f32 %v765, %v1728
        %v1730 = vpop.f32.mrb[0].mxu0
        %v1731 = vadd.f32 %v761, %v1730
        %v1732 = vpop.f32.mrb[0].mxu0
        %v1733 = vadd.f32 %v765, %v1732
        %1734 = vmatprep.mubr.bf16.mxu0 0
        %1735 = vmatmul.mubr.bf16.gmra.mrb[0].mxu0 %v1006
        %v1736 = vpop.f32.mrb[0].mxu0
        %v1737 = vadd.f32 %v761, %v1736
        %v1738 = vpop.f32.mrb[0].mxu0
        %v1739 = vadd.f32 %v765, %v1738
        %v1740 = vpop.f32.mrb[0].mxu0
        %v1741 = vadd.f32 %v761, %v1740
        %v1742 = vpop.f32.mrb[0].mxu0
        %v1743 = vadd.f32 %v765, %v1742
        %1744 = vmatprep.mubr.bf16.mxu0 0
        %1745 = vmatmul.mubr.bf16.gmra.mrb[0].mxu0 %v1009
        %v1746 = vpop.f32.mrb[0].mxu0
        %v1747 = vadd.f32 %v761, %v1746
        %v1748 = vpop.f32.mrb[0].mxu0
        %v1749 = vadd.f32 %v765, %v1748
        %v1750 = vpop.f32.mrb[0].mxu0
        %v1751 = vadd.f32 %v761, %v1750
        %v1752 = vpop.f32.mrb[0].mxu0
        %v1753 = vadd.f32 %v765, %v1752
        %1754 = vmatprep.mubr.bf16.mxu0 0
        %1755 = vmatmul.mubr.bf16.gmra.mrb[0].mxu0 %v1012
        %v1756 = vpop.f32.mrb[0].mxu0
        %v1757 = vadd.f32 %v761, %v1756
        %v1758 = vpop.f32.mrb[0].mxu0
        %v1759 = vadd.f32 %v765, %v1758
        %v1760 = vpop.f32.mrb[0].mxu0
        %v1761 = vadd.f32 %v761, %v1760
        %v1762 = vpop.f32.mrb[0].mxu0
        %v1763 = vadd.f32 %v765, %v1762
        %1764 = vmatprep.mubr.bf16.mxu0 0
        %1765 = vmatmul.mubr.bf16.gmra.mrb[0].mxu0 %v1015
        %v1766 = vpop.f32.mrb[0].mxu0
        %v1767 = vadd.f32 %v761, %v1766
        %v1768 = vpop.f32.mrb[0].mxu0
        %v1769 = vadd.f32 %v765, %v1768
        %v1770 = vpop.f32.mrb[0].mxu0
        %v1771 = vadd.f32 %v761, %v1770
        %v1772 = vpop.f32.mrb[0].mxu0
        %v1773 = vadd.f32 %v765, %v1772
        %1774 = vmatprep.mubr.bf16.mxu0 0
        %1775 = vmatmul.mubr.bf16.gmra.mrb[0].mxu0 %v1018
        %v1776 = vpop.f32.mrb[0].mxu0
        %v1777 = vadd.f32 %v761, %v1776
        %v1778 = vpop.f32.mrb[0].mxu0
        %v1779 = vadd.f32 %v765, %v1778
        %v1780 = vpop.f32.mrb[0].mxu0
        %v1781 = vadd.f32 %v761, %v1780
        %v1782 = vpop.f32.mrb[0].mxu0
        %v1783 = vadd.f32 %v765, %v1782
        %1784 = vmatprep.mubr.bf16.mxu0 0
        %1785 = vmatmul.mubr.bf16.gmra.mrb[0].mxu0 %v1021
        %v1786 = vpop.f32.mrb[0].mxu0
        %v1787 = vadd.f32 %v761, %v1786
        %v1788 = vpop.f32.mrb[0].mxu0
        %v1789 = vadd.f32 %v765, %v1788
        %v1790 = vpop.f32.mrb[0].mxu0
        %v1791 = vadd.f32 %v761, %v1790
        %v1792 = vpop.f32.mrb[0].mxu0
        %v1793 = vadd.f32 %v765, %v1792
        %1794 = vdwg.mxu0
        %1795 = vmatprep.subr.bf16.mxu0 %v919
        %1796 = vmatpush1.bf16.msra.mxu0 %v918
        %1797 = vmatprep.subr.bf16.mxu0 %v935
        %1798 = vmatpush1.bf16.msra.mxu0 %v934
        %1799 = vmatprep.subr.bf16.mxu0 0
        %1800 = vmatpush1.bf16.msra.mxu0 0
        %1801 = vmatprep.subr.bf16.mxu0 0
        %1802 = vmatpush1.bf16.msra.mxu0 0
        %1803 = vmatprep.subr.bf16.mxu0 0
        %1804 = vmatpush1.bf16.msra.mxu0 0
        %1805 = vmatprep.subr.bf16.mxu0 0
        %1806 = vmatpush1.bf16.msra.mxu0 0
        %1807 = vmatprep.subr.bf16.mxu0 0
        %1808 = vmatpush1.bf16.msra.mxu0 0
        %1809 = vmatprep.subr.bf16.mxu0 0
        %1810 = vmatpush1.bf16.msra.mxu0 0
        %1811 = vmatprep.subr.bf16.mxu0 0
        %1812 = vmatpush1.bf16.msra.mxu0 0
        %1813 = vmatprep.subr.bf16.mxu0 0
        %1814 = vmatpush1.bf16.msra.mxu0 0
        %1815 = vmatprep.subr.bf16.mxu0 0
        %1816 = vmatpush1.bf16.msra.mxu0 0
        %1817 = vmatprep.subr.bf16.mxu0 0
        %1818 = vmatpush1.bf16.msra.mxu0 0
        %1819 = vmatprep.subr.bf16.mxu0 0
        %1820 = vmatpush1.bf16.msra.mxu0 0
        %1821 = vmatprep.subr.bf16.mxu0 0
        %1822 = vmatpush1.bf16.msra.mxu0 0
        %1823 = vmatprep.subr.bf16.mxu0 0
        %1824 = vmatpush1.bf16.msra.mxu0 0
        %1825 = vmatprep.subr.bf16.mxu0 0
        %1826 = vmatpush1.bf16.msra.mxu0 0
        %1827 = vmatprep.mubr.bf16.mxu0 0
        %1828 = vmatmul.mubr.bf16.gmra.mrb[0].mxu0 %v976
        %v1829 = vpop.f32.mrb[0].mxu0
        %v1830 = vadd.f32 %v769, %v1829
        %v1831 = vpop.f32.mrb[0].mxu0
        %v1832 = vadd.f32 %v773, %v1831
        %v1833 = vpop.f32.mrb[0].mxu0
        %v1834 = vadd.f32 %v769, %v1833
        %v1835 = vpop.f32.mrb[0].mxu0
        %v1836 = vadd.f32 %v773, %v1835
        %1837 = vmatprep.mubr.bf16.mxu0 0
        %1838 = vmatmul.mubr.bf16.gmra.mrb[0].mxu0 %v979
        %v1839 = vpop.f32.mrb[0].mxu0
        %v1840 = vadd.f32 %v769, %v1839
        %v1841 = vpop.f32.mrb[0].mxu0
        %v1842 = vadd.f32 %v773, %v1841
        %v1843 = vpop.f32.mrb[0].mxu0
        %v1844 = vadd.f32 %v769, %v1843
        %v1845 = vpop.f32.mrb[0].mxu0
        %v1846 = vadd.f32 %v773, %v1845
        %1847 = vmatprep.mubr.bf16.mxu0 0
        %1848 = vmatmul.mubr.bf16.gmra.mrb[0].mxu0 %v982
        %v1849 = vpop.f32.mrb[0].mxu0
        %v1850 = vadd.f32 %v769, %v1849
        %v1851 = vpop.f32.mrb[0].mxu0
        %v1852 = vadd.f32 %v773, %v1851
        %v1853 = vpop.f32.mrb[0].mxu0
        %v1854 = vadd.f32 %v769, %v1853
        %v1855 = vpop.f32.mrb[0].mxu0
        %v1856 = vadd.f32 %v773, %v1855
        %1857 = vmatprep.mubr.bf16.mxu0 0
        %1858 = vmatmul.mubr.bf16.gmra.mrb[0].mxu0 %v985
        %v1859 = vpop.f32.mrb[0].mxu0
        %v1860 = vadd.f32 %v769, %v1859
        %v1861 = vpop.f32.mrb[0].mxu0
        %v1862 = vadd.f32 %v773, %v1861
        %v1863 = vpop.f32.mrb[0].mxu0
        %v1864 = vadd.f32 %v769, %v1863
        %v1865 = vpop.f32.mrb[0].mxu0
        %v1866 = vadd.f32 %v773, %v1865
        %1867 = vmatprep.mubr.bf16.mxu0 0
        %1868 = vmatmul.mubr.bf16.gmra.mrb[0].mxu0 %v988
        %v1869 = vpop.f32.mrb[0].mxu0
        %v1870 = vadd.f32 %v769, %v1869
        %v1871 = vpop.f32.mrb[0].mxu0
        %v1872 = vadd.f32 %v773, %v1871
        %v1873 = vpop.f32.mrb[0].mxu0
        %v1874 = vadd.f32 %v769, %v1873
        %v1875 = vpop.f32.mrb[0].mxu0
        %v1876 = vadd.f32 %v773, %v1875
        %1877 = vmatprep.mubr.bf16.mxu0 0
        %1878 = vmatmul.mubr.bf16.gmra.mrb[0].mxu0 %v991
        %v1879 = vpop.f32.mrb[0].mxu0
        %v1880 = vadd.f32 %v769, %v1879
        %v1881 = vpop.f32.mrb[0].mxu0
        %v1882 = vadd.f32 %v773, %v1881
        %v1883 = vpop.f32.mrb[0].mxu0
        %v1884 = vadd.f32 %v769, %v1883
        %v1885 = vpop.f32.mrb[0].mxu0
        %v1886 = vadd.f32 %v773, %v1885
        %1887 = vmatprep.mubr.bf16.mxu0 0
        %1888 = vmatmul.mubr.bf16.gmra.mrb[0].mxu0 %v994
        %v1889 = vpop.f32.mrb[0].mxu0
        %v1890 = vadd.f32 %v769, %v1889
        %v1891 = vpop.f32.mrb[0].mxu0
        %v1892 = vadd.f32 %v773, %v1891
        %v1893 = vpop.f32.mrb[0].mxu0
        %v1894 = vadd.f32 %v769, %v1893
        %v1895 = vpop.f32.mrb[0].mxu0
        %v1896 = vadd.f32 %v773, %v1895
        %1897 = vmatprep.mubr.bf16.mxu0 0
        %1898 = vmatmul.mubr.bf16.gmra.mrb[0].mxu0 %v997
        %v1899 = vpop.f32.mrb[0].mxu0
        %v1900 = vadd.f32 %v769, %v1899
        %v1901 = vpop.f32.mrb[0].mxu0
        %v1902 = vadd.f32 %v773, %v1901
        %v1903 = vpop.f32.mrb[0].mxu0
        %v1904 = vadd.f32 %v769, %v1903
        %v1905 = vpop.f32.mrb[0].mxu0
        %v1906 = vadd.f32 %v773, %v1905
        %1907 = vmatprep.mubr.bf16.mxu0 0
        %1908 = vmatmul.mubr.bf16.gmra.mrb[0].mxu0 %v1000
        %v1909 = vpop.f32.mrb[0].mxu0
        %v1910 = vadd.f32 %v769, %v1909
        %v1911 = vpop.f32.mrb[0].mxu0
        %v1912 = vadd.f32 %v773, %v1911
        %v1913 = vpop.f32.mrb[0].mxu0
        %v1914 = vadd.f32 %v769, %v1913
        %v1915 = vpop.f32.mrb[0].mxu0
        %v1916 = vadd.f32 %v773, %v1915
        %1917 = vmatprep.mubr.bf16.mxu0 0
        %1918 = vmatmul.mubr.bf16.gmra.mrb[0].mxu0 %v1003
        %v1919 = vpop.f32.mrb[0].mxu0
        %v1920 = vadd.f32 %v769, %v1919
        %v1921 = vpop.f32.mrb[0].mxu0
        %v1922 = vadd.f32 %v773, %v1921
        %v1923 = vpop.f32.mrb[0].mxu0
        %v1924 = vadd.f32 %v769, %v1923
        %v1925 = vpop.f32.mrb[0].mxu0
        %v1926 = vadd.f32 %v773, %v1925
        %1927 = vmatprep.mubr.bf16.mxu0 0
        %1928 = vmatmul.mubr.bf16.gmra.mrb[0].mxu0 %v1006
        %v1929 = vpop.f32.mrb[0].mxu0
        %v1930 = vadd.f32 %v769, %v1929
        %v1931 = vpop.f32.mrb[0].mxu0
        %v1932 = vadd.f32 %v773, %v1931
        %v1933 = vpop.f32.mrb[0].mxu0
        %v1934 = vadd.f32 %v769, %v1933
        %v1935 = vpop.f32.mrb[0].mxu0
        %v1936 = vadd.f32 %v773, %v1935
        %1937 = vmatprep.mubr.bf16.mxu0 0
        %1938 = vmatmul.mubr.bf16.gmra.mrb[0].mxu0 %v1009
        %v1939 = vpop.f32.mrb[0].mxu0
        %v1940 = vadd.f32 %v769, %v1939
        %v1941 = vpop.f32.mrb[0].mxu0
        %v1942 = vadd.f32 %v773, %v1941
        %v1943 = vpop.f32.mrb[0].mxu0
        %v1944 = vadd.f32 %v769, %v1943
        %v1945 = vpop.f32.mrb[0].mxu0
        %v1946 = vadd.f32 %v773, %v1945
        %1947 = vmatprep.mubr.bf16.mxu0 0
        %1948 = vmatmul.mubr.bf16.gmra.mrb[0].mxu0 %v1012
        %v1949 = vpop.f32.mrb[0].mxu0
        %v1950 = vadd.f32 %v769, %v1949
        %v1951 = vpop.f32.mrb[0].mxu0
        %v1952 = vadd.f32 %v773, %v1951
        %v1953 = vpop.f32.mrb[0].mxu0
        %v1954 = vadd.f32 %v769, %v1953
        %v1955 = vpop.f32.mrb[0].mxu0
        %v1956 = vadd.f32 %v773, %v1955
        %1957 = vmatprep.mubr.bf16.mxu0 0
        %1958 = vmatmul.mubr.bf16.gmra.mrb[0].mxu0 %v1015
        %v1959 = vpop.f32.mrb[0].mxu0
        %v1960 = vadd.f32 %v769, %v1959
        %v1961 = vpop.f32.mrb[0].mxu0
        %v1962 = vadd.f32 %v773, %v1961
        %v1963 = vpop.f32.mrb[0].mxu0
        %v1964 = vadd.f32 %v769, %v1963
        %v1965 = vpop.f32.mrb[0].mxu0
        %v1966 = vadd.f32 %v773, %v1965
        %1967 = vmatprep.mubr.bf16.mxu0 0
        %1968 = vmatmul.mubr.bf16.gmra.mrb[0].mxu0 %v1018
        %v1969 = vpop.f32.mrb[0].mxu0
        %v1970 = vadd.f32 %v769, %v1969
        %v1971 = vpop.f32.mrb[0].mxu0
        %v1972 = vadd.f32 %v773, %v1971
        %v1973 = vpop.f32.mrb[0].mxu0
        %v1974 = vadd.f32 %v769, %v1973
        %v1975 = vpop.f32.mrb[0].mxu0
        %v1976 = vadd.f32 %v773, %v1975
        %1977 = vmatprep.mubr.bf16.mxu0 0
        %1978 = vmatmul.mubr.bf16.gmra.mrb[0].mxu0 %v1021
        %v1979 = vpop.f32.mrb[0].mxu0
        %v1980 = vadd.f32 %v769, %v1979
        %v1981 = vpop.f32.mrb[0].mxu0
        %v1982 = vadd.f32 %v773, %v1981
        %v1983 = vpop.f32.mrb[0].mxu0
        %v1984 = vadd.f32 %v769, %v1983
        %v1985 = vpop.f32.mrb[0].mxu0
        %v1986 = vadd.f32 %v773, %v1985
        %1987 = vdwg.mxu0
        %1988 = vmatprep.subr.bf16.mxu0 %v921
        %1989 = vmatpush1.bf16.msra.mxu0 %v920
        %1990 = vmatprep.subr.bf16.mxu0 %v937
        %1991 = vmatpush1.bf16.msra.mxu0 %v936
        %1992 = vmatprep.subr.bf16.mxu0 0
        %1993 = vmatpush1.bf16.msra.mxu0 0
        %1994 = vmatprep.subr.bf16.mxu0 0
        %1995 = vmatpush1.bf16.msra.mxu0 0
        %1996 = vmatprep.subr.bf16.mxu0 0
        %1997 = vmatpush1.bf16.msra.mxu0 0
        %1998 = vmatprep.subr.bf16.mxu0 0
        %1999 = vmatpush1.bf16.msra.mxu0 0
        %2000 = vmatprep.subr.bf16.mxu0 0
        %2001 = vmatpush1.bf16.msra.mxu0 0
        %2002 = vmatprep.subr.bf16.mxu0 0
        %2003 = vmatpush1.bf16.msra.mxu0 0
        %2004 = vmatprep.subr.bf16.mxu0 0
        %2005 = vmatpush1.bf16.msra.mxu0 0
        %2006 = vmatprep.subr.bf16.mxu0 0
        %2007 = vmatpush1.bf16.msra.mxu0 0
        %2008 = vmatprep.subr.bf16.mxu0 0
        %2009 = vmatpush1.bf16.msra.mxu0 0
        %2010 = vmatprep.subr.bf16.mxu0 0
        %2011 = vmatpush1.bf16.msra.mxu0 0
        %2012 = vmatprep.subr.bf16.mxu0 0
        %2013 = vmatpush1.bf16.msra.mxu0 0
        %2014 = vmatprep.subr.bf16.mxu0 0
        %2015 = vmatpush1.bf16.msra.mxu0 0
        %2016 = vmatprep.subr.bf16.mxu0 0
        %2017 = vmatpush1.bf16.msra.mxu0 0
        %2018 = vmatprep.subr.bf16.mxu0 0
        %2019 = vmatpush1.bf16.msra.mxu0 0
        %2020 = vmatprep.mubr.bf16.mxu0 0
        %2021 = vmatmul.mubr.bf16.gmra.mrb[0].mxu0 %v976
        %v2022 = vpop.f32.mrb[0].mxu0
        %v2023 = vadd.f32 %v777, %v2022
        %v2024 = vpop.f32.mrb[0].mxu0
        %v2025 = vadd.f32 %v781, %v2024
        %v2026 = vpop.f32.mrb[0].mxu0
        %v2027 = vadd.f32 %v777, %v2026
        %v2028 = vpop.f32.mrb[0].mxu0
        %v2029 = vadd.f32 %v781, %v2028
        %2030 = vmatprep.mubr.bf16.mxu0 0
        %2031 = vmatmul.mubr.bf16.gmra.mrb[0].mxu0 %v979
        %v2032 = vpop.f32.mrb[0].mxu0
        %v2033 = vadd.f32 %v777, %v2032
        %v2034 = vpop.f32.mrb[0].mxu0
        %v2035 = vadd.f32 %v781, %v2034
        %v2036 = vpop.f32.mrb[0].mxu0
        %v2037 = vadd.f32 %v777, %v2036
        %v2038 = vpop.f32.mrb[0].mxu0
        %v2039 = vadd.f32 %v781, %v2038
        %2040 = vmatprep.mubr.bf16.mxu0 0
        %2041 = vmatmul.mubr.bf16.gmra.mrb[0].mxu0 %v982
        %v2042 = vpop.f32.mrb[0].mxu0
        %v2043 = vadd.f32 %v777, %v2042
        %v2044 = vpop.f32.mrb[0].mxu0
        %v2045 = vadd.f32 %v781, %v2044
        %v2046 = vpop.f32.mrb[0].mxu0
        %v2047 = vadd.f32 %v777, %v2046
        %v2048 = vpop.f32.mrb[0].mxu0
        %v2049 = vadd.f32 %v781, %v2048
        %2050 = vmatprep.mubr.bf16.mxu0 0
        %2051 = vmatmul.mubr.bf16.gmra.mrb[0].mxu0 %v985
        %v2052 = vpop.f32.mrb[0].mxu0
        %v2053 = vadd.f32 %v777, %v2052
        %v2054 = vpop.f32.mrb[0].mxu0
        %v2055 = vadd.f32 %v781, %v2054
        %v2056 = vpop.f32.mrb[0].mxu0
        %v2057 = vadd.f32 %v777, %v2056
        %v2058 = vpop.f32.mrb[0].mxu0
        %v2059 = vadd.f32 %v781, %v2058
        %2060 = vmatprep.mubr.bf16.mxu0 0
        %2061 = vmatmul.mubr.bf16.gmra.mrb[0].mxu0 %v988
        %v2062 = vpop.f32.mrb[0].mxu0
        %v2063 = vadd.f32 %v777, %v2062
        %v2064 = vpop.f32.mrb[0].mxu0
        %v2065 = vadd.f32 %v781, %v2064
        %v2066 = vpop.f32.mrb[0].mxu0
        %v2067 = vadd.f32 %v777, %v2066
        %v2068 = vpop.f32.mrb[0].mxu0
        %v2069 = vadd.f32 %v781, %v2068
        %2070 = vmatprep.mubr.bf16.mxu0 0
        %2071 = vmatmul.mubr.bf16.gmra.mrb[0].mxu0 %v991
        %v2072 = vpop.f32.mrb[0].mxu0
        %v2073 = vadd.f32 %v777, %v2072
        %v2074 = vpop.f32.mrb[0].mxu0
        %v2075 = vadd.f32 %v781, %v2074
        %v2076 = vpop.f32.mrb[0].mxu0
        %v2077 = vadd.f32 %v777, %v2076
        %v2078 = vpop.f32.mrb[0].mxu0
        %v2079 = vadd.f32 %v781, %v2078
        %2080 = vmatprep.mubr.bf16.mxu0 0
        %2081 = vmatmul.mubr.bf16.gmra.mrb[0].mxu0 %v994
        %v2082 = vpop.f32.mrb[0].mxu0
        %v2083 = vadd.f32 %v777, %v2082
        %v2084 = vpop.f32.mrb[0].mxu0
        %v2085 = vadd.f32 %v781, %v2084
        %v2086 = vpop.f32.mrb[0].mxu0
        %v2087 = vadd.f32 %v777, %v2086
        %v2088 = vpop.f32.mrb[0].mxu0
        %v2089 = vadd.f32 %v781, %v2088
        %2090 = vmatprep.mubr.bf16.mxu0 0
        %2091 = vmatmul.mubr.bf16.gmra.mrb[0].mxu0 %v997
        %v2092 = vpop.f32.mrb[0].mxu0
        %v2093 = vadd.f32 %v777, %v2092
        %v2094 = vpop.f32.mrb[0].mxu0
        %v2095 = vadd.f32 %v781, %v2094
        %v2096 = vpop.f32.mrb[0].mxu0
        %v2097 = vadd.f32 %v777, %v2096
        %v2098 = vpop.f32.mrb[0].mxu0
        %v2099 = vadd.f32 %v781, %v2098
        %2100 = vmatprep.mubr.bf16.mxu0 0
        %2101 = vmatmul.mubr.bf16.gmra.mrb[0].mxu0 %v1000
        %v2102 = vpop.f32.mrb[0].mxu0
        %v2103 = vadd.f32 %v777, %v2102
        %v2104 = vpop.f32.mrb[0].mxu0
        %v2105 = vadd.f32 %v781, %v2104
        %v2106 = vpop.f32.mrb[0].mxu0
        %v2107 = vadd.f32 %v777, %v2106
        %v2108 = vpop.f32.mrb[0].mxu0
        %v2109 = vadd.f32 %v781, %v2108
        %2110 = vmatprep.mubr.bf16.mxu0 0
        %2111 = vmatmul.mubr.bf16.gmra.mrb[0].mxu0 %v1003
        %v2112 = vpop.f32.mrb[0].mxu0
        %v2113 = vadd.f32 %v777, %v2112
        %v2114 = vpop.f32.mrb[0].mxu0
        %v2115 = vadd.f32 %v781, %v2114
        %v2116 = vpop.f32.mrb[0].mxu0
        %v2117 = vadd.f32 %v777, %v2116
        %v2118 = vpop.f32.mrb[0].mxu0
        %v2119 = vadd.f32 %v781, %v2118
        %2120 = vmatprep.mubr.bf16.mxu0 0
        %2121 = vmatmul.mubr.bf16.gmra.mrb[0].mxu0 %v1006
        %v2122 = vpop.f32.mrb[0].mxu0
        %v2123 = vadd.f32 %v777, %v2122
        %v2124 = vpop.f32.mrb[0].mxu0
        %v2125 = vadd.f32 %v781, %v2124
        %v2126 = vpop.f32.mrb[0].mxu0
        %v2127 = vadd.f32 %v777, %v2126
        %v2128 = vpop.f32.mrb[0].mxu0
        %v2129 = vadd.f32 %v781, %v2128
        %2130 = vmatprep.mubr.bf16.mxu0 0
        %2131 = vmatmul.mubr.bf16.gmra.mrb[0].mxu0 %v1009
        %v2132 = vpop.f32.mrb[0].mxu0
        %v2133 = vadd.f32 %v777, %v2132
        %v2134 = vpop.f32.mrb[0].mxu0
        %v2135 = vadd.f32 %v781, %v2134
        %v2136 = vpop.f32.mrb[0].mxu0
        %v2137 = vadd.f32 %v777, %v2136
        %v2138 = vpop.f32.mrb[0].mxu0
        %v2139 = vadd.f32 %v781, %v2138
        %2140 = vmatprep.mubr.bf16.mxu0 0
        %2141 = vmatmul.mubr.bf16.gmra.mrb[0].mxu0 %v1012
        %v2142 = vpop.f32.mrb[0].mxu0
        %v2143 = vadd.f32 %v777, %v2142
        %v2144 = vpop.f32.mrb[0].mxu0
        %v2145 = vadd.f32 %v781, %v2144
        %v2146 = vpop.f32.mrb[0].mxu0
        %v2147 = vadd.f32 %v777, %v2146
        %v2148 = vpop.f32.mrb[0].mxu0
        %v2149 = vadd.f32 %v781, %v2148
        %2150 = vmatprep.mubr.bf16.mxu0 0
        %2151 = vmatmul.mubr.bf16.gmra.mrb[0].mxu0 %v1015
        %v2152 = vpop.f32.mrb[0].mxu0
        %v2153 = vadd.f32 %v777, %v2152
        %v2154 = vpop.f32.mrb[0].mxu0
        %v2155 = vadd.f32 %v781, %v2154
        %v2156 = vpop.f32.mrb[0].mxu0
        %v2157 = vadd.f32 %v777, %v2156
        %v2158 = vpop.f32.mrb[0].mxu0
        %v2159 = vadd.f32 %v781, %v2158
        %2160 = vmatprep.mubr.bf16.mxu0 0
        %2161 = vmatmul.mubr.bf16.gmra.mrb[0].mxu0 %v1018
        %v2162 = vpop.f32.mrb[0].mxu0
        %v2163 = vadd.f32 %v777, %v2162
        %v2164 = vpop.f32.mrb[0].mxu0
        %v2165 = vadd.f32 %v781, %v2164
        %v2166 = vpop.f32.mrb[0].mxu0
        %v2167 = vadd.f32 %v777, %v2166
        %v2168 = vpop.f32.mrb[0].mxu0
        %v2169 = vadd.f32 %v781, %v2168
        %2170 = vmatprep.mubr.bf16.mxu0 0
        %2171 = vmatmul.mubr.bf16.gmra.mrb[0].mxu0 %v1021
        %v2172 = vpop.f32.mrb[0].mxu0
        %v2173 = vadd.f32 %v777, %v2172
        %v2174 = vpop.f32.mrb[0].mxu0
        %v2175 = vadd.f32 %v781, %v2174
        %v2176 = vpop.f32.mrb[0].mxu0
        %v2177 = vadd.f32 %v777, %v2176
        %v2178 = vpop.f32.mrb[0].mxu0
        %v2179 = vadd.f32 %v781, %v2178
        %2180 = vdwg.mxu0
        %2181 = vmatprep.subr.bf16.mxu0 %v923
        %2182 = vmatpush1.bf16.msra.mxu0 %v922
        %2183 = vmatprep.subr.bf16.mxu0 %v939
        %2184 = vmatpush1.bf16.msra.mxu0 %v938
        %2185 = vmatprep.subr.bf16.mxu0 0
        %2186 = vmatpush1.bf16.msra.mxu0 0
        %2187 = vmatprep.subr.bf16.mxu0 0
        %2188 = vmatpush1.bf16.msra.mxu0 0
        %2189 = vmatprep.subr.bf16.mxu0 0
        %2190 = vmatpush1.bf16.msra.mxu0 0
        %2191 = vmatprep.subr.bf16.mxu0 0
        %2192 = vmatpush1.bf16.msra.mxu0 0
        %2193 = vmatprep.subr.bf16.mxu0 0
        %2194 = vmatpush1.bf16.msra.mxu0 0
        %2195 = vmatprep.subr.bf16.mxu0 0
        %2196 = vmatpush1.bf16.msra.mxu0 0
        %2197 = vmatprep.subr.bf16.mxu0 0
        %2198 = vmatpush1.bf16.msra.mxu0 0
        %2199 = vmatprep.subr.bf16.mxu0 0
        %2200 = vmatpush1.bf16.msra.mxu0 0
        %2201 = vmatprep.subr.bf16.mxu0 0
        %2202 = vmatpush1.bf16.msra.mxu0 0
        %2203 = vmatprep.subr.bf16.mxu0 0
        %2204 = vmatpush1.bf16.msra.mxu0 0
        %2205 = vmatprep.subr.bf16.mxu0 0
        %2206 = vmatpush1.bf16.msra.mxu0 0
        %2207 = vmatprep.subr.bf16.mxu0 0
        %2208 = vmatpush1.bf16.msra.mxu0 0
        %2209 = vmatprep.subr.bf16.mxu0 0
        %2210 = vmatpush1.bf16.msra.mxu0 0
        %2211 = vmatprep.subr.bf16.mxu0 0
        %2212 = vmatpush1.bf16.msra.mxu0 0
        %2213 = vmatprep.mubr.bf16.mxu0 0
        %2214 = vmatmul.mubr.bf16.gmra.mrb[0].mxu0 %v976
        %v2215 = vpop.f32.mrb[0].mxu0
        %v2216 = vadd.f32 %v785, %v2215
        %v2217 = vpop.f32.mrb[0].mxu0
        %v2218 = vadd.f32 %v789, %v2217
        %v2219 = vpop.f32.mrb[0].mxu0
        %v2220 = vadd.f32 %v785, %v2219
        %v2221 = vpop.f32.mrb[0].mxu0
        %v2222 = vadd.f32 %v789, %v2221
        %2223 = vmatprep.mubr.bf16.mxu0 0
        %2224 = vmatmul.mubr.bf16.gmra.mrb[0].mxu0 %v979
        %v2225 = vpop.f32.mrb[0].mxu0
        %v2226 = vadd.f32 %v785, %v2225
        %v2227 = vpop.f32.mrb[0].mxu0
        %v2228 = vadd.f32 %v789, %v2227
        %v2229 = vpop.f32.mrb[0].mxu0
        %v2230 = vadd.f32 %v785, %v2229
        %v2231 = vpop.f32.mrb[0].mxu0
        %v2232 = vadd.f32 %v789, %v2231
        %2233 = vmatprep.mubr.bf16.mxu0 0
        %2234 = vmatmul.mubr.bf16.gmra.mrb[0].mxu0 %v982
        %v2235 = vpop.f32.mrb[0].mxu0
        %v2236 = vadd.f32 %v785, %v2235
        %v2237 = vpop.f32.mrb[0].mxu0
        %v2238 = vadd.f32 %v789, %v2237
        %v2239 = vpop.f32.mrb[0].mxu0
        %v2240 = vadd.f32 %v785, %v2239
        %v2241 = vpop.f32.mrb[0].mxu0
        %v2242 = vadd.f32 %v789, %v2241
        %2243 = vmatprep.mubr.bf16.mxu0 0
        %2244 = vmatmul.mubr.bf16.gmra.mrb[0].mxu0 %v985
        %v2245 = vpop.f32.mrb[0].mxu0
        %v2246 = vadd.f32 %v785, %v2245
        %v2247 = vpop.f32.mrb[0].mxu0
        %v2248 = vadd.f32 %v789, %v2247
        %v2249 = vpop.f32.mrb[0].mxu0
        %v2250 = vadd.f32 %v785, %v2249
        %v2251 = vpop.f32.mrb[0].mxu0
        %v2252 = vadd.f32 %v789, %v2251
        %2253 = vmatprep.mubr.bf16.mxu0 0
        %2254 = vmatmul.mubr.bf16.gmra.mrb[0].mxu0 %v988
        %v2255 = vpop.f32.mrb[0].mxu0
        %v2256 = vadd.f32 %v785, %v2255
        %v2257 = vpop.f32.mrb[0].mxu0
        %v2258 = vadd.f32 %v789, %v2257
        %v2259 = vpop.f32.mrb[0].mxu0
        %v2260 = vadd.f32 %v785, %v2259
        %v2261 = vpop.f32.mrb[0].mxu0
        %v2262 = vadd.f32 %v789, %v2261
        %2263 = vmatprep.mubr.bf16.mxu0 0
        %2264 = vmatmul.mubr.bf16.gmra.mrb[0].mxu0 %v991
        %v2265 = vpop.f32.mrb[0].mxu0
        %v2266 = vadd.f32 %v785, %v2265
        %v2267 = vpop.f32.mrb[0].mxu0
        %v2268 = vadd.f32 %v789, %v2267
        %v2269 = vpop.f32.mrb[0].mxu0
        %v2270 = vadd.f32 %v785, %v2269
        %v2271 = vpop.f32.mrb[0].mxu0
        %v2272 = vadd.f32 %v789, %v2271
        %2273 = vmatprep.mubr.bf16.mxu0 0
        %2274 = vmatmul.mubr.bf16.gmra.mrb[0].mxu0 %v994
        %v2275 = vpop.f32.mrb[0].mxu0
        %v2276 = vadd.f32 %v785, %v2275
        %v2277 = vpop.f32.mrb[0].mxu0
        %v2278 = vadd.f32 %v789, %v2277
        %v2279 = vpop.f32.mrb[0].mxu0
        %v2280 = vadd.f32 %v785, %v2279
        %v2281 = vpop.f32.mrb[0].mxu0
        %v2282 = vadd.f32 %v789, %v2281
        %2283 = vmatprep.mubr.bf16.mxu0 0
        %2284 = vmatmul.mubr.bf16.gmra.mrb[0].mxu0 %v997
        %v2285 = vpop.f32.mrb[0].mxu0
        %v2286 = vadd.f32 %v785, %v2285
        %v2287 = vpop.f32.mrb[0].mxu0
        %v2288 = vadd.f32 %v789, %v2287
        %v2289 = vpop.f32.mrb[0].mxu0
        %v2290 = vadd.f32 %v785, %v2289
        %v2291 = vpop.f32.mrb[0].mxu0
        %v2292 = vadd.f32 %v789, %v2291
        %2293 = vmatprep.mubr.bf16.mxu0 0
        %2294 = vmatmul.mubr.bf16.gmra.mrb[0].mxu0 %v1000
        %v2295 = vpop.f32.mrb[0].mxu0
        %v2296 = vadd.f32 %v785, %v2295
        %v2297 = vpop.f32.mrb[0].mxu0
        %v2298 = vadd.f32 %v789, %v2297
        %v2299 = vpop.f32.mrb[0].mxu0
        %v2300 = vadd.f32 %v785, %v2299
        %v2301 = vpop.f32.mrb[0].mxu0
        %v2302 = vadd.f32 %v789, %v2301
        %2303 = vmatprep.mubr.bf16.mxu0 0
        %2304 = vmatmul.mubr.bf16.gmra.mrb[0].mxu0 %v1003
        %v2305 = vpop.f32.mrb[0].mxu0
        %v2306 = vadd.f32 %v785, %v2305
        %v2307 = vpop.f32.mrb[0].mxu0
        %v2308 = vadd.f32 %v789, %v2307
        %v2309 = vpop.f32.mrb[0].mxu0
        %v2310 = vadd.f32 %v785, %v2309
        %v2311 = vpop.f32.mrb[0].mxu0
        %v2312 = vadd.f32 %v789, %v2311
        %2313 = vmatprep.mubr.bf16.mxu0 0
        %2314 = vmatmul.mubr.bf16.gmra.mrb[0].mxu0 %v1006
        %v2315 = vpop.f32.mrb[0].mxu0
        %v2316 = vadd.f32 %v785, %v2315
        %v2317 = vpop.f32.mrb[0].mxu0
        %v2318 = vadd.f32 %v789, %v2317
        %v2319 = vpop.f32.mrb[0].mxu0
        %v2320 = vadd.f32 %v785, %v2319
        %v2321 = vpop.f32.mrb[0].mxu0
        %v2322 = vadd.f32 %v789, %v2321
        %2323 = vmatprep.mubr.bf16.mxu0 0
        %2324 = vmatmul.mubr.bf16.gmra.mrb[0].mxu0 %v1009
        %v2325 = vpop.f32.mrb[0].mxu0
        %v2326 = vadd.f32 %v785, %v2325
        %v2327 = vpop.f32.mrb[0].mxu0
        %v2328 = vadd.f32 %v789, %v2327
        %v2329 = vpop.f32.mrb[0].mxu0
        %v2330 = vadd.f32 %v785, %v2329
        %v2331 = vpop.f32.mrb[0].mxu0
        %v2332 = vadd.f32 %v789, %v2331
        %2333 = vmatprep.mubr.bf16.mxu0 0
        %2334 = vmatmul.mubr.bf16.gmra.mrb[0].mxu0 %v1012
        %v2335 = vpop.f32.mrb[0].mxu0
        %v2336 = vadd.f32 %v785, %v2335
        %v2337 = vpop.f32.mrb[0].mxu0
        %v2338 = vadd.f32 %v789, %v2337
        %v2339 = vpop.f32.mrb[0].mxu0
        %v2340 = vadd.f32 %v785, %v2339
        %v2341 = vpop.f32.mrb[0].mxu0
        %v2342 = vadd.f32 %v789, %v2341
        %2343 = vmatprep.mubr.bf16.mxu0 0
        %2344 = vmatmul.mubr.bf16.gmra.mrb[0].mxu0 %v1015
        %v2345 = vpop.f32.mrb[0].mxu0
        %v2346 = vadd.f32 %v785, %v2345
        %v2347 = vpop.f32.mrb[0].mxu0
        %v2348 = vadd.f32 %v789, %v2347
        %v2349 = vpop.f32.mrb[0].mxu0
        %v2350 = vadd.f32 %v785, %v2349
        %v2351 = vpop.f32.mrb[0].mxu0
        %v2352 = vadd.f32 %v789, %v2351
        %2353 = vmatprep.mubr.bf16.mxu0 0
        %2354 = vmatmul.mubr.bf16.gmra.mrb[0].mxu0 %v1018
        %v2355 = vpop.f32.mrb[0].mxu0
        %v2356 = vadd.f32 %v785, %v2355
        %v2357 = vpop.f32.mrb[0].mxu0
        %v2358 = vadd.f32 %v789, %v2357
        %v2359 = vpop.f32.mrb[0].mxu0
        %v2360 = vadd.f32 %v785, %v2359
        %v2361 = vpop.f32.mrb[0].mxu0
        %v2362 = vadd.f32 %v789, %v2361
        %2363 = vmatprep.mubr.bf16.mxu0 0
        %2364 = vmatmul.mubr.bf16.gmra.mrb[0].mxu0 %v1021
        %v2365 = vpop.f32.mrb[0].mxu0
        %v2366 = vadd.f32 %v785, %v2365
        %v2367 = vpop.f32.mrb[0].mxu0
        %v2368 = vadd.f32 %v789, %v2367
        %v2369 = vpop.f32.mrb[0].mxu0
        %v2370 = vadd.f32 %v785, %v2369
        %v2371 = vpop.f32.mrb[0].mxu0
        %v2372 = vadd.f32 %v789, %v2371
        %2373 = vdwg.mxu0
        %2374 = vmatprep.subr.bf16.mxu0 %v925
        %2375 = vmatpush1.bf16.msra.mxu0 %v924
        %2376 = vmatprep.subr.bf16.mxu0 %v941
        %2377 = vmatpush1.bf16.msra.mxu0 %v940
        %2378 = vmatprep.subr.bf16.mxu0 0
        %2379 = vmatpush1.bf16.msra.mxu0 0
        %2380 = vmatprep.subr.bf16.mxu0 0
        %2381 = vmatpush1.bf16.msra.mxu0 0
        %2382 = vmatprep.subr.bf16.mxu0 0
        %2383 = vmatpush1.bf16.msra.mxu0 0
        %2384 = vmatprep.subr.bf16.mxu0 0
        %2385 = vmatpush1.bf16.msra.mxu0 0
        %2386 = vmatprep.subr.bf16.mxu0 0
        %2387 = vmatpush1.bf16.msra.mxu0 0
        %2388 = vmatprep.subr.bf16.mxu0 0
        %2389 = vmatpush1.bf16.msra.mxu0 0
        %2390 = vmatprep.subr.bf16.mxu0 0
        %2391 = vmatpush1.bf16.msra.mxu0 0
        %2392 = vmatprep.subr.bf16.mxu0 0
        %2393 = vmatpush1.bf16.msra.mxu0 0
        %2394 = vmatprep.subr.bf16.mxu0 0
        %2395 = vmatpush1.bf16.msra.mxu0 0
        %2396 = vmatprep.subr.bf16.mxu0 0
        %2397 = vmatpush1.bf16.msra.mxu0 0
        %2398 = vmatprep.subr.bf16.mxu0 0
        %2399 = vmatpush1.bf16.msra.mxu0 0
        %2400 = vmatprep.subr.bf16.mxu0 0
        %2401 = vmatpush1.bf16.msra.mxu0 0
        %2402 = vmatprep.subr.bf16.mxu0 0
        %2403 = vmatpush1.bf16.msra.mxu0 0
        %2404 = vmatprep.subr.bf16.mxu0 0
        %2405 = vmatpush1.bf16.msra.mxu0 0
        %2406 = vmatprep.mubr.bf16.mxu0 0
        %2407 = vmatmul.mubr.bf16.gmra.mrb[0].mxu0 %v976
        %v2408 = vpop.f32.mrb[0].mxu0
        %v2409 = vadd.f32 %v793, %v2408
        %v2410 = vpop.f32.mrb[0].mxu0
        %v2411 = vadd.f32 %v797, %v2410
        %v2412 = vpop.f32.mrb[0].mxu0
        %v2413 = vadd.f32 %v793, %v2412
        %v2414 = vpop.f32.mrb[0].mxu0
        %v2415 = vadd.f32 %v797, %v2414
        %2416 = vmatprep.mubr.bf16.mxu0 0
        %2417 = vmatmul.mubr.bf16.gmra.mrb[0].mxu0 %v979
        %v2418 = vpop.f32.mrb[0].mxu0
        %v2419 = vadd.f32 %v793, %v2418
        %v2420 = vpop.f32.mrb[0].mxu0
        %v2421 = vadd.f32 %v797, %v2420
        %v2422 = vpop.f32.mrb[0].mxu0
        %v2423 = vadd.f32 %v793, %v2422
        %v2424 = vpop.f32.mrb[0].mxu0
        %v2425 = vadd.f32 %v797, %v2424
        %2426 = vmatprep.mubr.bf16.mxu0 0
        %2427 = vmatmul.mubr.bf16.gmra.mrb[0].mxu0 %v982
        %v2428 = vpop.f32.mrb[0].mxu0
        %v2429 = vadd.f32 %v793, %v2428
        %v2430 = vpop.f32.mrb[0].mxu0
        %v2431 = vadd.f32 %v797, %v2430
        %v2432 = vpop.f32.mrb[0].mxu0
        %v2433 = vadd.f32 %v793, %v2432
        %v2434 = vpop.f32.mrb[0].mxu0
        %v2435 = vadd.f32 %v797, %v2434
        %2436 = vmatprep.mubr.bf16.mxu0 0
        %2437 = vmatmul.mubr.bf16.gmra.mrb[0].mxu0 %v985
        %v2438 = vpop.f32.mrb[0].mxu0
        %v2439 = vadd.f32 %v793, %v2438
        %v2440 = vpop.f32.mrb[0].mxu0
        %v2441 = vadd.f32 %v797, %v2440
        %v2442 = vpop.f32.mrb[0].mxu0
        %v2443 = vadd.f32 %v793, %v2442
        %v2444 = vpop.f32.mrb[0].mxu0
        %v2445 = vadd.f32 %v797, %v2444
        %2446 = vmatprep.mubr.bf16.mxu0 0
        %2447 = vmatmul.mubr.bf16.gmra.mrb[0].mxu0 %v988
        %v2448 = vpop.f32.mrb[0].mxu0
        %v2449 = vadd.f32 %v793, %v2448
        %v2450 = vpop.f32.mrb[0].mxu0
        %v2451 = vadd.f32 %v797, %v2450
        %v2452 = vpop.f32.mrb[0].mxu0
        %v2453 = vadd.f32 %v793, %v2452
        %v2454 = vpop.f32.mrb[0].mxu0
        %v2455 = vadd.f32 %v797, %v2454
        %2456 = vmatprep.mubr.bf16.mxu0 0
        %2457 = vmatmul.mubr.bf16.gmra.mrb[0].mxu0 %v991
        %v2458 = vpop.f32.mrb[0].mxu0
        %v2459 = vadd.f32 %v793, %v2458
        %v2460 = vpop.f32.mrb[0].mxu0
        %v2461 = vadd.f32 %v797, %v2460
        %v2462 = vpop.f32.mrb[0].mxu0
        %v2463 = vadd.f32 %v793, %v2462
        %v2464 = vpop.f32.mrb[0].mxu0
        %v2465 = vadd.f32 %v797, %v2464
        %2466 = vmatprep.mubr.bf16.mxu0 0
        %2467 = vmatmul.mubr.bf16.gmra.mrb[0].mxu0 %v994
        %v2468 = vpop.f32.mrb[0].mxu0
        %v2469 = vadd.f32 %v793, %v2468
        %v2470 = vpop.f32.mrb[0].mxu0
        %v2471 = vadd.f32 %v797, %v2470
        %v2472 = vpop.f32.mrb[0].mxu0
        %v2473 = vadd.f32 %v793, %v2472
        %v2474 = vpop.f32.mrb[0].mxu0
        %v2475 = vadd.f32 %v797, %v2474
        %2476 = vmatprep.mubr.bf16.mxu0 0
        %2477 = vmatmul.mubr.bf16.gmra.mrb[0].mxu0 %v997
        %v2478 = vpop.f32.mrb[0].mxu0
        %v2479 = vadd.f32 %v793, %v2478
        %v2480 = vpop.f32.mrb[0].mxu0
        %v2481 = vadd.f32 %v797, %v2480
        %v2482 = vpop.f32.mrb[0].mxu0
        %v2483 = vadd.f32 %v793, %v2482
        %v2484 = vpop.f32.mrb[0].mxu0
        %v2485 = vadd.f32 %v797, %v2484
        %2486 = vmatprep.mubr.bf16.mxu0 0
        %2487 = vmatmul.mubr.bf16.gmra.mrb[0].mxu0 %v1000
        %v2488 = vpop.f32.mrb[0].mxu0
        %v2489 = vadd.f32 %v793, %v2488
        %v2490 = vpop.f32.mrb[0].mxu0
        %v2491 = vadd.f32 %v797, %v2490
        %v2492 = vpop.f32.mrb[0].mxu0
        %v2493 = vadd.f32 %v793, %v2492
        %v2494 = vpop.f32.mrb[0].mxu0
        %v2495 = vadd.f32 %v797, %v2494
        %2496 = vmatprep.mubr.bf16.mxu0 0
        %2497 = vmatmul.mubr.bf16.gmra.mrb[0].mxu0 %v1003
        %v2498 = vpop.f32.mrb[0].mxu0
        %v2499 = vadd.f32 %v793, %v2498
        %v2500 = vpop.f32.mrb[0].mxu0
        %v2501 = vadd.f32 %v797, %v2500
        %v2502 = vpop.f32.mrb[0].mxu0
        %v2503 = vadd.f32 %v793, %v2502
        %v2504 = vpop.f32.mrb[0].mxu0
        %v2505 = vadd.f32 %v797, %v2504
        %2506 = vmatprep.mubr.bf16.mxu0 0
        %2507 = vmatmul.mubr.bf16.gmra.mrb[0].mxu0 %v1006
        %v2508 = vpop.f32.mrb[0].mxu0
        %v2509 = vadd.f32 %v793, %v2508
        %v2510 = vpop.f32.mrb[0].mxu0
        %v2511 = vadd.f32 %v797, %v2510
        %v2512 = vpop.f32.mrb[0].mxu0
        %v2513 = vadd.f32 %v793, %v2512
        %v2514 = vpop.f32.mrb[0].mxu0
        %v2515 = vadd.f32 %v797, %v2514
        %2516 = vmatprep.mubr.bf16.mxu0 0
        %2517 = vmatmul.mubr.bf16.gmra.mrb[0].mxu0 %v1009
        %v2518 = vpop.f32.mrb[0].mxu0
        %v2519 = vadd.f32 %v793, %v2518
        %v2520 = vpop.f32.mrb[0].mxu0
        %v2521 = vadd.f32 %v797, %v2520
        %v2522 = vpop.f32.mrb[0].mxu0
        %v2523 = vadd.f32 %v793, %v2522
        %v2524 = vpop.f32.mrb[0].mxu0
        %v2525 = vadd.f32 %v797, %v2524
        %2526 = vmatprep.mubr.bf16.mxu0 0
        %2527 = vmatmul.mubr.bf16.gmra.mrb[0].mxu0 %v1012
        %v2528 = vpop.f32.mrb[0].mxu0
        %v2529 = vadd.f32 %v793, %v2528
        %v2530 = vpop.f32.mrb[0].mxu0
        %v2531 = vadd.f32 %v797, %v2530
        %v2532 = vpop.f32.mrb[0].mxu0
        %v2533 = vadd.f32 %v793, %v2532
        %v2534 = vpop.f32.mrb[0].mxu0
        %v2535 = vadd.f32 %v797, %v2534
        %2536 = vmatprep.mubr.bf16.mxu0 0
        %2537 = vmatmul.mubr.bf16.gmra.mrb[0].mxu0 %v1015
        %v2538 = vpop.f32.mrb[0].mxu0
        %v2539 = vadd.f32 %v793, %v2538
        %v2540 = vpop.f32.mrb[0].mxu0
        %v2541 = vadd.f32 %v797, %v2540
        %v2542 = vpop.f32.mrb[0].mxu0
        %v2543 = vadd.f32 %v793, %v2542
        %v2544 = vpop.f32.mrb[0].mxu0
        %v2545 = vadd.f32 %v797, %v2544
        %2546 = vmatprep.mubr.bf16.mxu0 0
        %2547 = vmatmul.mubr.bf16.gmra.mrb[0].mxu0 %v1018
        %v2548 = vpop.f32.mrb[0].mxu0
        %v2549 = vadd.f32 %v793, %v2548
        %v2550 = vpop.f32.mrb[0].mxu0
        %v2551 = vadd.f32 %v797, %v2550
        %v2552 = vpop.f32.mrb[0].mxu0
        %v2553 = vadd.f32 %v793, %v2552
        %v2554 = vpop.f32.mrb[0].mxu0
        %v2555 = vadd.f32 %v797, %v2554
        %2556 = vmatprep.mubr.bf16.mxu0 0
        %2557 = vmatmul.mubr.bf16.gmra.mrb[0].mxu0 %v1021
        %v2558 = vpop.f32.mrb[0].mxu0
        %v2559 = vadd.f32 %v793, %v2558
        %v2560 = vpop.f32.mrb[0].mxu0
        %v2561 = vadd.f32 %v797, %v2560
        %v2562 = vpop.f32.mrb[0].mxu0
        %v2563 = vadd.f32 %v793, %v2562
        %v2564 = vpop.f32.mrb[0].mxu0
        %v2565 = vadd.f32 %v797, %v2564
        %2566 = vdwg.mxu0
        %v2567 = vmax.f32 %v1058, 0.0
        %v2568 = vmax.f32 %v1060, 0.0
        %v2569 = vmax.f32 %v1251, 0.0
        %v2570 = vmax.f32 %v1253, 0.0
        %v2571 = vmax.f32 %v1444, 0.0
        %v2572 = vmax.f32 %v1446, 0.0
        %v2573 = vmax.f32 %v1637, 0.0
        %v2574 = vmax.f32 %v1639, 0.0
        %v2575 = vmax.f32 %v1830, 0.0
        %v2576 = vmax.f32 %v1832, 0.0
        %v2577 = vmax.f32 %v2023, 0.0
        %v2578 = vmax.f32 %v2025, 0.0
        %v2579 = vmax.f32 %v2216, 0.0
        %v2580 = vmax.f32 %v2218, 0.0
        %v2581 = vmax.f32 %v2409, 0.0
        %v2582 = vmax.f32 %v2411, 0.0
        %v2583 = vmax.f32 %v1062, 0.0
        %v2584 = vmax.f32 %v1064, 0.0
        %v2585 = vmax.f32 %v1255, 0.0
        %v2586 = vmax.f32 %v1257, 0.0
        %v2587 = vmax.f32 %v1448, 0.0
        %v2588 = vmax.f32 %v1450, 0.0
        %v2589 = vmax.f32 %v1641, 0.0
        %v2590 = vmax.f32 %v1643, 0.0
        %v2591 = vmax.f32 %v1834, 0.0
        %v2592 = vmax.f32 %v1836, 0.0
        %v2593 = vmax.f32 %v2027, 0.0
        %v2594 = vmax.f32 %v2029, 0.0
        %v2595 = vmax.f32 %v2220, 0.0
        %v2596 = vmax.f32 %v2222, 0.0
        %v2597 = vmax.f32 %v2413, 0.0
        %v2598 = vmax.f32 %v2415, 0.0
        %v2599 = vmax.f32 %v1068, 0.0
        %v2600 = vmax.f32 %v1070, 0.0
        %v2601 = vmax.f32 %v1261, 0.0
        %v2602 = vmax.f32 %v1263, 0.0
        %v2603 = vmax.f32 %v1454, 0.0
        %v2604 = vmax.f32 %v1456, 0.0
        %v2605 = vmax.f32 %v1647, 0.0
        %v2606 = vmax.f32 %v1649, 0.0
        %v2607 = vmax.f32 %v1840, 0.0
        %v2608 = vmax.f32 %v1842, 0.0
        %v2609 = vmax.f32 %v2033, 0.0
        %v2610 = vmax.f32 %v2035, 0.0
        %v2611 = vmax.f32 %v2226, 0.0
        %v2612 = vmax.f32 %v2228, 0.0
        %v2613 = vmax.f32 %v2419, 0.0
        %v2614 = vmax.f32 %v2421, 0.0
        %v2615 = vmax.f32 %v1072, 0.0
        %v2616 = vmax.f32 %v1074, 0.0
        %v2617 = vmax.f32 %v1265, 0.0
        %v2618 = vmax.f32 %v1267, 0.0
        %v2619 = vmax.f32 %v1458, 0.0
        %v2620 = vmax.f32 %v1460, 0.0
        %v2621 = vmax.f32 %v1651, 0.0
        %v2622 = vmax.f32 %v1653, 0.0
        %v2623 = vmax.f32 %v1844, 0.0
        %v2624 = vmax.f32 %v1846, 0.0
        %v2625 = vmax.f32 %v2037, 0.0
        %v2626 = vmax.f32 %v2039, 0.0
        %v2627 = vmax.f32 %v2230, 0.0
        %v2628 = vmax.f32 %v2232, 0.0
        %v2629 = vmax.f32 %v2423, 0.0
        %v2630 = vmax.f32 %v2425, 0.0
        %v2631 = vmax.f32 %v1078, 0.0
        %v2632 = vmax.f32 %v1080, 0.0
        %v2633 = vmax.f32 %v1271, 0.0
        %v2634 = vmax.f32 %v1273, 0.0
        %v2635 = vmax.f32 %v1464, 0.0
        %v2636 = vmax.f32 %v1466, 0.0
        %v2637 = vmax.f32 %v1657, 0.0
        %v2638 = vmax.f32 %v1659, 0.0
        %v2639 = vmax.f32 %v1850, 0.0
        %v2640 = vmax.f32 %v1852, 0.0
        %v2641 = vmax.f32 %v2043, 0.0
        %v2642 = vmax.f32 %v2045, 0.0
        %v2643 = vmax.f32 %v2236, 0.0
        %v2644 = vmax.f32 %v2238, 0.0
        %v2645 = vmax.f32 %v2429, 0.0
        %v2646 = vmax.f32 %v2431, 0.0
        %v2647 = vmax.f32 %v1082, 0.0
        %v2648 = vmax.f32 %v1084, 0.0
        %v2649 = vmax.f32 %v1275, 0.0
        %v2650 = vmax.f32 %v1277, 0.0
        %v2651 = vmax.f32 %v1468, 0.0
        %v2652 = vmax.f32 %v1470, 0.0
        %v2653 = vmax.f32 %v1661, 0.0
        %v2654 = vmax.f32 %v1663, 0.0
        %v2655 = vmax.f32 %v1854, 0.0
        %v2656 = vmax.f32 %v1856, 0.0
        %v2657 = vmax.f32 %v2047, 0.0
        %v2658 = vmax.f32 %v2049, 0.0
        %v2659 = vmax.f32 %v2240, 0.0
        %v2660 = vmax.f32 %v2242, 0.0
        %v2661 = vmax.f32 %v2433, 0.0
        %v2662 = vmax.f32 %v2435, 0.0
        %v2663 = vmax.f32 %v1088, 0.0
        %v2664 = vmax.f32 %v1090, 0.0
        %v2665 = vmax.f32 %v1281, 0.0
        %v2666 = vmax.f32 %v1283, 0.0
        %v2667 = vmax.f32 %v1474, 0.0
        %v2668 = vmax.f32 %v1476, 0.0
        %v2669 = vmax.f32 %v1667, 0.0
        %v2670 = vmax.f32 %v1669, 0.0
        %v2671 = vmax.f32 %v1860, 0.0
        %v2672 = vmax.f32 %v1862, 0.0
        %v2673 = vmax.f32 %v2053, 0.0
        %v2674 = vmax.f32 %v2055, 0.0
        %v2675 = vmax.f32 %v2246, 0.0
        %v2676 = vmax.f32 %v2248, 0.0
        %v2677 = vmax.f32 %v2439, 0.0
        %v2678 = vmax.f32 %v2441, 0.0
        %v2679 = vmax.f32 %v1092, 0.0
        %v2680 = vmax.f32 %v1094, 0.0
        %v2681 = vmax.f32 %v1285, 0.0
        %v2682 = vmax.f32 %v1287, 0.0
        %v2683 = vmax.f32 %v1478, 0.0
        %v2684 = vmax.f32 %v1480, 0.0
        %v2685 = vmax.f32 %v1671, 0.0
        %v2686 = vmax.f32 %v1673, 0.0
        %v2687 = vmax.f32 %v1864, 0.0
        %v2688 = vmax.f32 %v1866, 0.0
        %v2689 = vmax.f32 %v2057, 0.0
        %v2690 = vmax.f32 %v2059, 0.0
        %v2691 = vmax.f32 %v2250, 0.0
        %v2692 = vmax.f32 %v2252, 0.0
        %v2693 = vmax.f32 %v2443, 0.0
        %v2694 = vmax.f32 %v2445, 0.0
        %v2695 = vmax.f32 %v1098, 0.0
        %v2696 = vmax.f32 %v1100, 0.0
        %v2697 = vmax.f32 %v1291, 0.0
        %v2698 = vmax.f32 %v1293, 0.0
        %v2699 = vmax.f32 %v1484, 0.0
        %v2700 = vmax.f32 %v1486, 0.0
        %v2701 = vmax.f32 %v1677, 0.0
        %v2702 = vmax.f32 %v1679, 0.0
        %v2703 = vmax.f32 %v1870, 0.0
        %v2704 = vmax.f32 %v1872, 0.0
        %v2705 = vmax.f32 %v2063, 0.0
        %v2706 = vmax.f32 %v2065, 0.0
        %v2707 = vmax.f32 %v2256, 0.0
        %v2708 = vmax.f32 %v2258, 0.0
        %v2709 = vmax.f32 %v2449, 0.0
        %v2710 = vmax.f32 %v2451, 0.0
        %v2711 = vmax.f32 %v1102, 0.0
        %v2712 = vmax.f32 %v1104, 0.0
        %v2713 = vmax.f32 %v1295, 0.0
        %v2714 = vmax.f32 %v1297, 0.0
        %v2715 = vmax.f32 %v1488, 0.0
        %v2716 = vmax.f32 %v1490, 0.0
        %v2717 = vmax.f32 %v1681, 0.0
        %v2718 = vmax.f32 %v1683, 0.0
        %v2719 = vmax.f32 %v1874, 0.0
        %v2720 = vmax.f32 %v1876, 0.0
        %v2721 = vmax.f32 %v2067, 0.0
        %v2722 = vmax.f32 %v2069, 0.0
        %v2723 = vmax.f32 %v2260, 0.0
        %v2724 = vmax.f32 %v2262, 0.0
        %v2725 = vmax.f32 %v2453, 0.0
        %v2726 = vmax.f32 %v2455, 0.0
        %v2727 = vmax.f32 %v1108, 0.0
        %v2728 = vmax.f32 %v1110, 0.0
        %v2729 = vmax.f32 %v1301, 0.0
        %v2730 = vmax.f32 %v1303, 0.0
        %v2731 = vmax.f32 %v1494, 0.0
        %v2732 = vmax.f32 %v1496, 0.0
        %v2733 = vmax.f32 %v1687, 0.0
        %v2734 = vmax.f32 %v1689, 0.0
        %v2735 = vmax.f32 %v1880, 0.0
        %v2736 = vmax.f32 %v1882, 0.0
        %v2737 = vmax.f32 %v2073, 0.0
        %v2738 = vmax.f32 %v2075, 0.0
        %v2739 = vmax.f32 %v2266, 0.0
        %v2740 = vmax.f32 %v2268, 0.0
        %v2741 = vmax.f32 %v2459, 0.0
        %v2742 = vmax.f32 %v2461, 0.0
        %v2743 = vmax.f32 %v1112, 0.0
        %v2744 = vmax.f32 %v1114, 0.0
        %v2745 = vmax.f32 %v1305, 0.0
        %v2746 = vmax.f32 %v1307, 0.0
        %v2747 = vmax.f32 %v1498, 0.0
        %v2748 = vmax.f32 %v1500, 0.0
        %v2749 = vmax.f32 %v1691, 0.0
        %v2750 = vmax.f32 %v1693, 0.0
        %v2751 = vmax.f32 %v1884, 0.0
        %v2752 = vmax.f32 %v1886, 0.0
        %v2753 = vmax.f32 %v2077, 0.0
        %v2754 = vmax.f32 %v2079, 0.0
        %v2755 = vmax.f32 %v2270, 0.0
        %v2756 = vmax.f32 %v2272, 0.0
        %v2757 = vmax.f32 %v2463, 0.0
        %v2758 = vmax.f32 %v2465, 0.0
        %v2759 = vmax.f32 %v1118, 0.0
        %v2760 = vmax.f32 %v1120, 0.0
        %v2761 = vmax.f32 %v1311, 0.0
        %v2762 = vmax.f32 %v1313, 0.0
        %v2763 = vmax.f32 %v1504, 0.0
        %v2764 = vmax.f32 %v1506, 0.0
        %v2765 = vmax.f32 %v1697, 0.0
        %v2766 = vmax.f32 %v1699, 0.0
        %v2767 = vmax.f32 %v1890, 0.0
        %v2768 = vmax.f32 %v1892, 0.0
        %v2769 = vmax.f32 %v2083, 0.0
        %v2770 = vmax.f32 %v2085, 0.0
        %v2771 = vmax.f32 %v2276, 0.0
        %v2772 = vmax.f32 %v2278, 0.0
        %v2773 = vmax.f32 %v2469, 0.0
        %v2774 = vmax.f32 %v2471, 0.0
        %v2775 = vmax.f32 %v1122, 0.0
        %v2776 = vmax.f32 %v1124, 0.0
        %v2777 = vmax.f32 %v1315, 0.0
        %v2778 = vmax.f32 %v1317, 0.0
        %v2779 = vmax.f32 %v1508, 0.0
        %v2780 = vmax.f32 %v1510, 0.0
        %v2781 = vmax.f32 %v1701, 0.0
        %v2782 = vmax.f32 %v1703, 0.0
        %v2783 = vmax.f32 %v1894, 0.0
        %v2784 = vmax.f32 %v1896, 0.0
        %v2785 = vmax.f32 %v2087, 0.0
        %v2786 = vmax.f32 %v2089, 0.0
        %v2787 = vmax.f32 %v2280, 0.0
        %v2788 = vmax.f32 %v2282, 0.0
        %v2789 = vmax.f32 %v2473, 0.0
        %v2790 = vmax.f32 %v2475, 0.0
        %v2791 = vmax.f32 %v1128, 0.0
        %v2792 = vmax.f32 %v1130, 0.0
        %v2793 = vmax.f32 %v1321, 0.0
        %v2794 = vmax.f32 %v1323, 0.0
        %v2795 = vmax.f32 %v1514, 0.0
        %v2796 = vmax.f32 %v1516, 0.0
        %v2797 = vmax.f32 %v1707, 0.0
        %v2798 = vmax.f32 %v1709, 0.0
        %v2799 = vmax.f32 %v1900, 0.0
        %v2800 = vmax.f32 %v1902, 0.0
        %v2801 = vmax.f32 %v2093, 0.0
        %v2802 = vmax.f32 %v2095, 0.0
        %v2803 = vmax.f32 %v2286, 0.0
        %v2804 = vmax.f32 %v2288, 0.0
        %v2805 = vmax.f32 %v2479, 0.0
        %v2806 = vmax.f32 %v2481, 0.0
        %v2807 = vmax.f32 %v1132, 0.0
        %v2808 = vmax.f32 %v1134, 0.0
        %v2809 = vmax.f32 %v1325, 0.0
        %v2810 = vmax.f32 %v1327, 0.0
        %v2811 = vmax.f32 %v1518, 0.0
        %v2812 = vmax.f32 %v1520, 0.0
        %v2813 = vmax.f32 %v1711, 0.0
        %v2814 = vmax.f32 %v1713, 0.0
        %v2815 = vmax.f32 %v1904, 0.0
        %v2816 = vmax.f32 %v1906, 0.0
        %v2817 = vmax.f32 %v2097, 0.0
        %v2818 = vmax.f32 %v2099, 0.0
        %v2819 = vmax.f32 %v2290, 0.0
        %v2820 = vmax.f32 %v2292, 0.0
        %v2821 = vmax.f32 %v2483, 0.0
        %v2822 = vmax.f32 %v2485, 0.0
        %v2823 = vmax.f32 %v1138, 0.0
        %v2824 = vmax.f32 %v1140, 0.0
        %v2825 = vmax.f32 %v1331, 0.0
        %v2826 = vmax.f32 %v1333, 0.0
        %v2827 = vmax.f32 %v1524, 0.0
        %v2828 = vmax.f32 %v1526, 0.0
        %v2829 = vmax.f32 %v1717, 0.0
        %v2830 = vmax.f32 %v1719, 0.0
        %v2831 = vmax.f32 %v1910, 0.0
        %v2832 = vmax.f32 %v1912, 0.0
        %v2833 = vmax.f32 %v2103, 0.0
        %v2834 = vmax.f32 %v2105, 0.0
        %v2835 = vmax.f32 %v2296, 0.0
        %v2836 = vmax.f32 %v2298, 0.0
        %v2837 = vmax.f32 %v2489, 0.0
        %v2838 = vmax.f32 %v2491, 0.0
        %v2839 = vmax.f32 %v1142, 0.0
        %v2840 = vmax.f32 %v1144, 0.0
        %v2841 = vmax.f32 %v1335, 0.0
        %v2842 = vmax.f32 %v1337, 0.0
        %v2843 = vmax.f32 %v1528, 0.0
        %v2844 = vmax.f32 %v1530, 0.0
        %v2845 = vmax.f32 %v1721, 0.0
        %v2846 = vmax.f32 %v1723, 0.0
        %v2847 = vmax.f32 %v1914, 0.0
        %v2848 = vmax.f32 %v1916, 0.0
        %v2849 = vmax.f32 %v2107, 0.0
        %v2850 = vmax.f32 %v2109, 0.0
        %v2851 = vmax.f32 %v2300, 0.0
        %v2852 = vmax.f32 %v2302, 0.0
        %v2853 = vmax.f32 %v2493, 0.0
        %v2854 = vmax.f32 %v2495, 0.0
        %v2855 = vmax.f32 %v1148, 0.0
        %v2856 = vmax.f32 %v1150, 0.0
        %v2857 = vmax.f32 %v1341, 0.0
        %v2858 = vmax.f32 %v1343, 0.0
        %v2859 = vmax.f32 %v1534, 0.0
        %v2860 = vmax.f32 %v1536, 0.0
        %v2861 = vmax.f32 %v1727, 0.0
        %v2862 = vmax.f32 %v1729, 0.0
        %v2863 = vmax.f32 %v1920, 0.0
        %v2864 = vmax.f32 %v1922, 0.0
        %v2865 = vmax.f32 %v2113, 0.0
        %v2866 = vmax.f32 %v2115, 0.0
        %v2867 = vmax.f32 %v2306, 0.0
        %v2868 = vmax.f32 %v2308, 0.0
        %v2869 = vmax.f32 %v2499, 0.0
        %v2870 = vmax.f32 %v2501, 0.0
        %v2871 = vmax.f32 %v1152, 0.0
        %v2872 = vmax.f32 %v1154, 0.0
        %v2873 = vmax.f32 %v1345, 0.0
        %v2874 = vmax.f32 %v1347, 0.0
        %v2875 = vmax.f32 %v1538, 0.0
        %v2876 = vmax.f32 %v1540, 0.0
        %v2877 = vmax.f32 %v1731, 0.0
        %v2878 = vmax.f32 %v1733, 0.0
        %v2879 = vmax.f32 %v1924, 0.0
        %v2880 = vmax.f32 %v1926, 0.0
        %v2881 = vmax.f32 %v2117, 0.0
        %v2882 = vmax.f32 %v2119, 0.0
        %v2883 = vmax.f32 %v2310, 0.0
        %v2884 = vmax.f32 %v2312, 0.0
        %v2885 = vmax.f32 %v2503, 0.0
        %v2886 = vmax.f32 %v2505, 0.0
        %v2887 = vmax.f32 %v1158, 0.0
        %v2888 = vmax.f32 %v1160, 0.0
        %v2889 = vmax.f32 %v1351, 0.0
        %v2890 = vmax.f32 %v1353, 0.0
        %v2891 = vmax.f32 %v1544, 0.0
        %v2892 = vmax.f32 %v1546, 0.0
        %v2893 = vmax.f32 %v1737, 0.0
        %v2894 = vmax.f32 %v1739, 0.0
        %v2895 = vmax.f32 %v1930, 0.0
        %v2896 = vmax.f32 %v1932, 0.0
        %v2897 = vmax.f32 %v2123, 0.0
        %v2898 = vmax.f32 %v2125, 0.0
        %v2899 = vmax.f32 %v2316, 0.0
        %v2900 = vmax.f32 %v2318, 0.0
        %v2901 = vmax.f32 %v2509, 0.0
        %v2902 = vmax.f32 %v2511, 0.0
        %v2903 = vmax.f32 %v1162, 0.0
        %v2904 = vmax.f32 %v1164, 0.0
        %v2905 = vmax.f32 %v1355, 0.0
        %v2906 = vmax.f32 %v1357, 0.0
        %v2907 = vmax.f32 %v1548, 0.0
        %v2908 = vmax.f32 %v1550, 0.0
        %v2909 = vmax.f32 %v1741, 0.0
        %v2910 = vmax.f32 %v1743, 0.0
        %v2911 = vmax.f32 %v1934, 0.0
        %v2912 = vmax.f32 %v1936, 0.0
        %v2913 = vmax.f32 %v2127, 0.0
        %v2914 = vmax.f32 %v2129, 0.0
        %v2915 = vmax.f32 %v2320, 0.0
        %v2916 = vmax.f32 %v2322, 0.0
        %v2917 = vmax.f32 %v2513, 0.0
        %v2918 = vmax.f32 %v2515, 0.0
        %v2919 = vmax.f32 %v1168, 0.0
        %v2920 = vmax.f32 %v1170, 0.0
        %v2921 = vmax.f32 %v1361, 0.0
        %v2922 = vmax.f32 %v1363, 0.0
        %v2923 = vmax.f32 %v1554, 0.0
        %v2924 = vmax.f32 %v1556, 0.0
        %v2925 = vmax.f32 %v1747, 0.0
        %v2926 = vmax.f32 %v1749, 0.0
        %v2927 = vmax.f32 %v1940, 0.0
        %v2928 = vmax.f32 %v1942, 0.0
        %v2929 = vmax.f32 %v2133, 0.0
        %v2930 = vmax.f32 %v2135, 0.0
        %v2931 = vmax.f32 %v2326, 0.0
        %v2932 = vmax.f32 %v2328, 0.0
        %v2933 = vmax.f32 %v2519, 0.0
        %v2934 = vmax.f32 %v2521, 0.0
        %v2935 = vmax.f32 %v1172, 0.0
        %v2936 = vmax.f32 %v1174, 0.0
        %v2937 = vmax.f32 %v1365, 0.0
        %v2938 = vmax.f32 %v1367, 0.0
        %v2939 = vmax.f32 %v1558, 0.0
        %v2940 = vmax.f32 %v1560, 0.0
        %v2941 = vmax.f32 %v1751, 0.0
        %v2942 = vmax.f32 %v1753, 0.0
        %v2943 = vmax.f32 %v1944, 0.0
        %v2944 = vmax.f32 %v1946, 0.0
        %v2945 = vmax.f32 %v2137, 0.0
        %v2946 = vmax.f32 %v2139, 0.0
        %v2947 = vmax.f32 %v2330, 0.0
        %v2948 = vmax.f32 %v2332, 0.0
        %v2949 = vmax.f32 %v2523, 0.0
        %v2950 = vmax.f32 %v2525, 0.0
        %v2951 = vmax.f32 %v1178, 0.0
        %v2952 = vmax.f32 %v1180, 0.0
        %v2953 = vmax.f32 %v1371, 0.0
        %v2954 = vmax.f32 %v1373, 0.0
        %v2955 = vmax.f32 %v1564, 0.0
        %v2956 = vmax.f32 %v1566, 0.0
        %v2957 = vmax.f32 %v1757, 0.0
        %v2958 = vmax.f32 %v1759, 0.0
        %v2959 = vmax.f32 %v1950, 0.0
        %v2960 = vmax.f32 %v1952, 0.0
        %v2961 = vmax.f32 %v2143, 0.0
        %v2962 = vmax.f32 %v2145, 0.0
        %v2963 = vmax.f32 %v2336, 0.0
        %v2964 = vmax.f32 %v2338, 0.0
        %v2965 = vmax.f32 %v2529, 0.0
        %v2966 = vmax.f32 %v2531, 0.0
        %v2967 = vmax.f32 %v1182, 0.0
        %v2968 = vmax.f32 %v1184, 0.0
        %v2969 = vmax.f32 %v1375, 0.0
        %v2970 = vmax.f32 %v1377, 0.0
        %v2971 = vmax.f32 %v1568, 0.0
        %v2972 = vmax.f32 %v1570, 0.0
        %v2973 = vmax.f32 %v1761, 0.0
        %v2974 = vmax.f32 %v1763, 0.0
        %v2975 = vmax.f32 %v1954, 0.0
        %v2976 = vmax.f32 %v1956, 0.0
        %v2977 = vmax.f32 %v2147, 0.0
        %v2978 = vmax.f32 %v2149, 0.0
        %v2979 = vmax.f32 %v2340, 0.0
        %v2980 = vmax.f32 %v2342, 0.0
        %v2981 = vmax.f32 %v2533, 0.0
        %v2982 = vmax.f32 %v2535, 0.0
        %v2983 = vmax.f32 %v1188, 0.0
        %v2984 = vmax.f32 %v1190, 0.0
        %v2985 = vmax.f32 %v1381, 0.0
        %v2986 = vmax.f32 %v1383, 0.0
        %v2987 = vmax.f32 %v1574, 0.0
        %v2988 = vmax.f32 %v1576, 0.0
        %v2989 = vmax.f32 %v1767, 0.0
        %v2990 = vmax.f32 %v1769, 0.0
        %v2991 = vmax.f32 %v1960, 0.0
        %v2992 = vmax.f32 %v1962, 0.0
        %v2993 = vmax.f32 %v2153, 0.0
        %v2994 = vmax.f32 %v2155, 0.0
        %v2995 = vmax.f32 %v2346, 0.0
        %v2996 = vmax.f32 %v2348, 0.0
        %v2997 = vmax.f32 %v2539, 0.0
        %v2998 = vmax.f32 %v2541, 0.0
        %v2999 = vmax.f32 %v1192, 0.0
        %v3000 = vmax.f32 %v1194, 0.0
        %v3001 = vmax.f32 %v1385, 0.0
        %v3002 = vmax.f32 %v1387, 0.0
        %v3003 = vmax.f32 %v1578, 0.0
        %v3004 = vmax.f32 %v1580, 0.0
        %v3005 = vmax.f32 %v1771, 0.0
        %v3006 = vmax.f32 %v1773, 0.0
        %v3007 = vmax.f32 %v1964, 0.0
        %v3008 = vmax.f32 %v1966, 0.0
        %v3009 = vmax.f32 %v2157, 0.0
        %v3010 = vmax.f32 %v2159, 0.0
        %v3011 = vmax.f32 %v2350, 0.0
        %v3012 = vmax.f32 %v2352, 0.0
        %v3013 = vmax.f32 %v2543, 0.0
        %v3014 = vmax.f32 %v2545, 0.0
        %v3015 = vmax.f32 %v1198, 0.0
        %v3016 = vmax.f32 %v1200, 0.0
        %v3017 = vmax.f32 %v1391, 0.0
        %v3018 = vmax.f32 %v1393, 0.0
        %v3019 = vmax.f32 %v1584, 0.0
        %v3020 = vmax.f32 %v1586, 0.0
        %v3021 = vmax.f32 %v1777, 0.0
        %v3022 = vmax.f32 %v1779, 0.0
        %v3023 = vmax.f32 %v1970, 0.0
        %v3024 = vmax.f32 %v1972, 0.0
        %v3025 = vmax.f32 %v2163, 0.0
        %v3026 = vmax.f32 %v2165, 0.0
        %v3027 = vmax.f32 %v2356, 0.0
        %v3028 = vmax.f32 %v2358, 0.0
        %v3029 = vmax.f32 %v2549, 0.0
        %v3030 = vmax.f32 %v2551, 0.0
        %v3031 = vmax.f32 %v1202, 0.0
        %v3032 = vmax.f32 %v1204, 0.0
        %v3033 = vmax.f32 %v1395, 0.0
        %v3034 = vmax.f32 %v1397, 0.0
        %v3035 = vmax.f32 %v1588, 0.0
        %v3036 = vmax.f32 %v1590, 0.0
        %v3037 = vmax.f32 %v1781, 0.0
        %v3038 = vmax.f32 %v1783, 0.0
        %v3039 = vmax.f32 %v1974, 0.0
        %v3040 = vmax.f32 %v1976, 0.0
        %v3041 = vmax.f32 %v2167, 0.0
        %v3042 = vmax.f32 %v2169, 0.0
        %v3043 = vmax.f32 %v2360, 0.0
        %v3044 = vmax.f32 %v2362, 0.0
        %v3045 = vmax.f32 %v2553, 0.0
        %v3046 = vmax.f32 %v2555, 0.0
        %v3047 = vmax.f32 %v1208, 0.0
        %v3048 = vmax.f32 %v1210, 0.0
        %v3049 = vmax.f32 %v1401, 0.0
        %v3050 = vmax.f32 %v1403, 0.0
        %v3051 = vmax.f32 %v1594, 0.0
        %v3052 = vmax.f32 %v1596, 0.0
        %v3053 = vmax.f32 %v1787, 0.0
        %v3054 = vmax.f32 %v1789, 0.0
        %v3055 = vmax.f32 %v1980, 0.0
        %v3056 = vmax.f32 %v1982, 0.0
        %v3057 = vmax.f32 %v2173, 0.0
        %v3058 = vmax.f32 %v2175, 0.0
        %v3059 = vmax.f32 %v2366, 0.0
        %v3060 = vmax.f32 %v2368, 0.0
        %v3061 = vmax.f32 %v2559, 0.0
        %v3062 = vmax.f32 %v2561, 0.0
        %v3063 = vmax.f32 %v1212, 0.0
        %v3064 = vmax.f32 %v1214, 0.0
        %v3065 = vmax.f32 %v1405, 0.0
        %v3066 = vmax.f32 %v1407, 0.0
        %v3067 = vmax.f32 %v1598, 0.0
        %v3068 = vmax.f32 %v1600, 0.0
        %v3069 = vmax.f32 %v1791, 0.0
        %v3070 = vmax.f32 %v1793, 0.0
        %v3071 = vmax.f32 %v1984, 0.0
        %v3072 = vmax.f32 %v1986, 0.0
        %v3073 = vmax.f32 %v2177, 0.0
        %v3074 = vmax.f32 %v2179, 0.0
        %v3075 = vmax.f32 %v2370, 0.0
        %v3076 = vmax.f32 %v2372, 0.0
        %v3077 = vmax.f32 %v2563, 0.0
        %v3078 = vmax.f32 %v2565, 0.0
        %3079 = vmatprep.subr.mxu0 %v2568
        %3080 = vmatpush1.msra.mxu0 %v2567
        %3081 = vmatprep.subr.mxu0 %v2584
        %3082 = vmatpush1.msra.mxu0 %v2583
        %3083 = vmatprep.subr.mxu0 %v2600
        %3084 = vmatpush1.msra.mxu0 %v2599
        %3085 = vmatprep.subr.mxu0 %v2616
        %3086 = vmatpush1.msra.mxu0 %v2615
        %3087 = vmatprep.subr.mxu0 %v2632
        %3088 = vmatpush1.msra.mxu0 %v2631
        %3089 = vmatprep.subr.mxu0 %v2648
        %3090 = vmatpush1.msra.mxu0 %v2647
        %3091 = vmatprep.subr.mxu0 %v2664
        %3092 = vmatpush1.msra.mxu0 %v2663
        %3093 = vmatprep.subr.mxu0 %v2680
        %3094 = vmatpush1.msra.mxu0 %v2679
        %3095 = vmatprep.subr.mxu0 %v2696
        %3096 = vmatpush1.msra.mxu0 %v2695
        %3097 = vmatprep.subr.mxu0 %v2712
        %3098 = vmatpush1.msra.mxu0 %v2711
        %3099 = vmatprep.subr.mxu0 %v2728
        %3100 = vmatpush1.msra.mxu0 %v2727
        %3101 = vmatprep.subr.mxu0 %v2744
        %3102 = vmatpush1.msra.mxu0 %v2743
        %3103 = vmatprep.subr.mxu0 %v2760
        %3104 = vmatpush1.msra.mxu0 %v2759
        %3105 = vmatprep.subr.mxu0 %v2776
        %3106 = vmatpush1.msra.mxu0 %v2775
        %3107 = vmatprep.subr.mxu0 %v2792
        %3108 = vmatpush1.msra.mxu0 %v2791
        %3109 = vmatprep.subr.mxu0 %v2808
        %3110 = vmatpush1.msra.mxu0 %v2807
        %3111 = vmatprep.subr.mxu0 %v2824
        %3112 = vmatpush1.msra.mxu0 %v2823
        %3113 = vmatprep.subr.mxu0 %v2840
        %3114 = vmatpush1.msra.mxu0 %v2839
        %3115 = vmatprep.subr.mxu0 %v2856
        %3116 = vmatpush1.msra.mxu0 %v2855
        %3117 = vmatprep.subr.mxu0 %v2872
        %3118 = vmatpush1.msra.mxu0 %v2871
        %3119 = vmatprep.subr.mxu0 %v2888
        %3120 = vmatpush1.msra.mxu0 %v2887
        %3121 = vmatprep.subr.mxu0 %v2904
        %3122 = vmatpush1.msra.mxu0 %v2903
        %3123 = vmatprep.subr.mxu0 %v2920
        %3124 = vmatpush1.msra.mxu0 %v2919
        %3125 = vmatprep.subr.mxu0 %v2936
        %3126 = vmatpush1.msra.mxu0 %v2935
        %3127 = vmatprep.subr.mxu0 %v2952
        %3128 = vmatpush1.msra.mxu0 %v2951
        %3129 = vmatprep.subr.mxu0 %v2968
        %3130 = vmatpush1.msra.mxu0 %v2967
        %3131 = vmatprep.subr.mxu0 %v2984
        %3132 = vmatpush1.msra.mxu0 %v2983
        %3133 = vmatprep.subr.mxu0 %v3000
        %3134 = vmatpush1.msra.mxu0 %v2999
        %3135 = vmatprep.subr.mxu0 %v3016
        %3136 = vmatpush1.msra.mxu0 %v3015
        %3137 = vmatprep.subr.mxu0 %v3032
        %3138 = vmatpush1.msra.mxu0 %v3031
        %3139 = vmatprep.subr.mxu0 %v3048
        %3140 = vmatpush1.msra.mxu0 %v3047
        %3141 = vmatprep.subr.mxu0 %v3064
        %3142 = vmatpush1.msra.mxu0 %v3063
        %3143 = vmatprep.mubr.f32.mxu0 0.00390625
        %3144 = vmatmul.mubr.f32.gmra.mrb[0].mxu0 0.00390625
        %v3145 = vpop.f32.mrb[0].mxu0
        %v3146 = vadd.f32 0.0, %v3145
        %v3147 = vpop.f32.mrb[0].mxu0
        %v3148 = vadd.f32 0.0, %v3147
        %3149 = vdwg.mxu0
        %3150 = vmatprep.subr.mxu0 %v2570
        %3151 = vmatpush1.msra.mxu0 %v2569
        %3152 = vmatprep.subr.mxu0 %v2586
        %3153 = vmatpush1.msra.mxu0 %v2585
        %3154 = vmatprep.subr.mxu0 %v2602
        %3155 = vmatpush1.msra.mxu0 %v2601
        %3156 = vmatprep.subr.mxu0 %v2618
        %3157 = vmatpush1.msra.mxu0 %v2617
        %3158 = vmatprep.subr.mxu0 %v2634
        %3159 = vmatpush1.msra.mxu0 %v2633
        %3160 = vmatprep.subr.mxu0 %v2650
        %3161 = vmatpush1.msra.mxu0 %v2649
        %3162 = vmatprep.subr.mxu0 %v2666
        %3163 = vmatpush1.msra.mxu0 %v2665
        %3164 = vmatprep.subr.mxu0 %v2682
        %3165 = vmatpush1.msra.mxu0 %v2681
        %3166 = vmatprep.subr.mxu0 %v2698
        %3167 = vmatpush1.msra.mxu0 %v2697
        %3168 = vmatprep.subr.mxu0 %v2714
        %3169 = vmatpush1.msra.mxu0 %v2713
        %3170 = vmatprep.subr.mxu0 %v2730
        %3171 = vmatpush1.msra.mxu0 %v2729
        %3172 = vmatprep.subr.mxu0 %v2746
        %3173 = vmatpush1.msra.mxu0 %v2745
        %3174 = vmatprep.subr.mxu0 %v2762
        %3175 = vmatpush1.msra.mxu0 %v2761
        %3176 = vmatprep.subr.mxu0 %v2778
        %3177 = vmatpush1.msra.mxu0 %v2777
        %3178 = vmatprep.subr.mxu0 %v2794
        %3179 = vmatpush1.msra.mxu0 %v2793
        %3180 = vmatprep.subr.mxu0 %v2810
        %3181 = vmatpush1.msra.mxu0 %v2809
        %3182 = vmatprep.subr.mxu0 %v2826
        %3183 = vmatpush1.msra.mxu0 %v2825
        %3184 = vmatprep.subr.mxu0 %v2842
        %3185 = vmatpush1.msra.mxu0 %v2841
        %3186 = vmatprep.subr.mxu0 %v2858
        %3187 = vmatpush1.msra.mxu0 %v2857
        %3188 = vmatprep.subr.mxu0 %v2874
        %3189 = vmatpush1.msra.mxu0 %v2873
        %3190 = vmatprep.subr.mxu0 %v2890
        %3191 = vmatpush1.msra.mxu0 %v2889
        %3192 = vmatprep.subr.mxu0 %v2906
        %3193 = vmatpush1.msra.mxu0 %v2905
        %3194 = vmatprep.subr.mxu0 %v2922
        %3195 = vmatpush1.msra.mxu0 %v2921
        %3196 = vmatprep.subr.mxu0 %v2938
        %3197 = vmatpush1.msra.mxu0 %v2937
        %3198 = vmatprep.subr.mxu0 %v2954
        %3199 = vmatpush1.msra.mxu0 %v2953
        %3200 = vmatprep.subr.mxu0 %v2970
        %3201 = vmatpush1.msra.mxu0 %v2969
        %3202 = vmatprep.subr.mxu0 %v2986
        %3203 = vmatpush1.msra.mxu0 %v2985
        %3204 = vmatprep.subr.mxu0 %v3002
        %3205 = vmatpush1.msra.mxu0 %v3001
        %3206 = vmatprep.subr.mxu0 %v3018
        %3207 = vmatpush1.msra.mxu0 %v3017
        %3208 = vmatprep.subr.mxu0 %v3034
        %3209 = vmatpush1.msra.mxu0 %v3033
        %3210 = vmatprep.subr.mxu0 %v3050
        %3211 = vmatpush1.msra.mxu0 %v3049
        %3212 = vmatprep.subr.mxu0 %v3066
        %3213 = vmatpush1.msra.mxu0 %v3065
        %3214 = vmatprep.mubr.f32.mxu0 0.00390625
        %3215 = vmatmul.mubr.f32.gmra.mrb[0].mxu0 0.00390625
        %v3216 = vpop.f32.mrb[0].mxu0
        %v3217 = vadd.f32 0.0, %v3216
        %v3218 = vpop.f32.mrb[0].mxu0
        %v3219 = vadd.f32 0.0, %v3218
        %3220 = vdwg.mxu0
        %3221 = vmatprep.subr.mxu0 %v2572
        %3222 = vmatpush1.msra.mxu0 %v2571
        %3223 = vmatprep.subr.mxu0 %v2588
        %3224 = vmatpush1.msra.mxu0 %v2587
        %3225 = vmatprep.subr.mxu0 %v2604
        %3226 = vmatpush1.msra.mxu0 %v2603
        %3227 = vmatprep.subr.mxu0 %v2620
        %3228 = vmatpush1.msra.mxu0 %v2619
        %3229 = vmatprep.subr.mxu0 %v2636
        %3230 = vmatpush1.msra.mxu0 %v2635
        %3231 = vmatprep.subr.mxu0 %v2652
        %3232 = vmatpush1.msra.mxu0 %v2651
        %3233 = vmatprep.subr.mxu0 %v2668
        %3234 = vmatpush1.msra.mxu0 %v2667
        %3235 = vmatprep.subr.mxu0 %v2684
        %3236 = vmatpush1.msra.mxu0 %v2683
        %3237 = vmatprep.subr.mxu0 %v2700
        %3238 = vmatpush1.msra.mxu0 %v2699
        %3239 = vmatprep.subr.mxu0 %v2716
        %3240 = vmatpush1.msra.mxu0 %v2715
        %3241 = vmatprep.subr.mxu0 %v2732
        %3242 = vmatpush1.msra.mxu0 %v2731
        %3243 = vmatprep.subr.mxu0 %v2748
        %3244 = vmatpush1.msra.mxu0 %v2747
        %3245 = vmatprep.subr.mxu0 %v2764
        %3246 = vmatpush1.msra.mxu0 %v2763
        %3247 = vmatprep.subr.mxu0 %v2780
        %3248 = vmatpush1.msra.mxu0 %v2779
        %3249 = vmatprep.subr.mxu0 %v2796
        %3250 = vmatpush1.msra.mxu0 %v2795
        %3251 = vmatprep.subr.mxu0 %v2812
        %3252 = vmatpush1.msra.mxu0 %v2811
        %3253 = vmatprep.subr.mxu0 %v2828
        %3254 = vmatpush1.msra.mxu0 %v2827
        %3255 = vmatprep.subr.mxu0 %v2844
        %3256 = vmatpush1.msra.mxu0 %v2843
        %3257 = vmatprep.subr.mxu0 %v2860
        %3258 = vmatpush1.msra.mxu0 %v2859
        %3259 = vmatprep.subr.mxu0 %v2876
        %3260 = vmatpush1.msra.mxu0 %v2875
        %3261 = vmatprep.subr.mxu0 %v2892
        %3262 = vmatpush1.msra.mxu0 %v2891
        %3263 = vmatprep.subr.mxu0 %v2908
        %3264 = vmatpush1.msra.mxu0 %v2907
        %3265 = vmatprep.subr.mxu0 %v2924
        %3266 = vmatpush1.msra.mxu0 %v2923
        %3267 = vmatprep.subr.mxu0 %v2940
        %3268 = vmatpush1.msra.mxu0 %v2939
        %3269 = vmatprep.subr.mxu0 %v2956
        %3270 = vmatpush1.msra.mxu0 %v2955
        %3271 = vmatprep.subr.mxu0 %v2972
        %3272 = vmatpush1.msra.mxu0 %v2971
        %3273 = vmatprep.subr.mxu0 %v2988
        %3274 = vmatpush1.msra.mxu0 %v2987
        %3275 = vmatprep.subr.mxu0 %v3004
        %3276 = vmatpush1.msra.mxu0 %v3003
        %3277 = vmatprep.subr.mxu0 %v3020
        %3278 = vmatpush1.msra.mxu0 %v3019
        %3279 = vmatprep.subr.mxu0 %v3036
        %3280 = vmatpush1.msra.mxu0 %v3035
        %3281 = vmatprep.subr.mxu0 %v3052
        %3282 = vmatpush1.msra.mxu0 %v3051
        %3283 = vmatprep.subr.mxu0 %v3068
        %3284 = vmatpush1.msra.mxu0 %v3067
        %3285 = vmatprep.mubr.f32.mxu0 0.00390625
        %3286 = vmatmul.mubr.f32.gmra.mrb[0].mxu0 0.00390625
        %v3287 = vpop.f32.mrb[0].mxu0
        %v3288 = vadd.f32 0.0, %v3287
        %v3289 = vpop.f32.mrb[0].mxu0
        %v3290 = vadd.f32 0.0, %v3289
        %3291 = vdwg.mxu0
        %3292 = vmatprep.subr.mxu0 %v2574
        %3293 = vmatpush1.msra.mxu0 %v2573
        %3294 = vmatprep.subr.mxu0 %v2590
        %3295 = vmatpush1.msra.mxu0 %v2589
        %3296 = vmatprep.subr.mxu0 %v2606
        %3297 = vmatpush1.msra.mxu0 %v2605
        %3298 = vmatprep.subr.mxu0 %v2622
        %3299 = vmatpush1.msra.mxu0 %v2621
        %3300 = vmatprep.subr.mxu0 %v2638
        %3301 = vmatpush1.msra.mxu0 %v2637
        %3302 = vmatprep.subr.mxu0 %v2654
        %3303 = vmatpush1.msra.mxu0 %v2653
        %3304 = vmatprep.subr.mxu0 %v2670
        %3305 = vmatpush1.msra.mxu0 %v2669
        %3306 = vmatprep.subr.mxu0 %v2686
        %3307 = vmatpush1.msra.mxu0 %v2685
        %3308 = vmatprep.subr.mxu0 %v2702
        %3309 = vmatpush1.msra.mxu0 %v2701
        %3310 = vmatprep.subr.mxu0 %v2718
        %3311 = vmatpush1.msra.mxu0 %v2717
        %3312 = vmatprep.subr.mxu0 %v2734
        %3313 = vmatpush1.msra.mxu0 %v2733
        %3314 = vmatprep.subr.mxu0 %v2750
        %3315 = vmatpush1.msra.mxu0 %v2749
        %3316 = vmatprep.subr.mxu0 %v2766
        %3317 = vmatpush1.msra.mxu0 %v2765
        %3318 = vmatprep.subr.mxu0 %v2782
        %3319 = vmatpush1.msra.mxu0 %v2781
        %3320 = vmatprep.subr.mxu0 %v2798
        %3321 = vmatpush1.msra.mxu0 %v2797
        %3322 = vmatprep.subr.mxu0 %v2814
        %3323 = vmatpush1.msra.mxu0 %v2813
        %3324 = vmatprep.subr.mxu0 %v2830
        %3325 = vmatpush1.msra.mxu0 %v2829
        %3326 = vmatprep.subr.mxu0 %v2846
        %3327 = vmatpush1.msra.mxu0 %v2845
        %3328 = vmatprep.subr.mxu0 %v2862
        %3329 = vmatpush1.msra.mxu0 %v2861
        %3330 = vmatprep.subr.mxu0 %v2878
        %3331 = vmatpush1.msra.mxu0 %v2877
        %3332 = vmatprep.subr.mxu0 %v2894
        %3333 = vmatpush1.msra.mxu0 %v2893
        %3334 = vmatprep.subr.mxu0 %v2910
        %3335 = vmatpush1.msra.mxu0 %v2909
        %3336 = vmatprep.subr.mxu0 %v2926
        %3337 = vmatpush1.msra.mxu0 %v2925
        %3338 = vmatprep.subr.mxu0 %v2942
        %3339 = vmatpush1.msra.mxu0 %v2941
        %3340 = vmatprep.subr.mxu0 %v2958
        %3341 = vmatpush1.msra.mxu0 %v2957
        %3342 = vmatprep.subr.mxu0 %v2974
        %3343 = vmatpush1.msra.mxu0 %v2973
        %3344 = vmatprep.subr.mxu0 %v2990
        %3345 = vmatpush1.msra.mxu0 %v2989
        %3346 = vmatprep.subr.mxu0 %v3006
        %3347 = vmatpush1.msra.mxu0 %v3005
        %3348 = vmatprep.subr.mxu0 %v3022
        %3349 = vmatpush1.msra.mxu0 %v3021
        %3350 = vmatprep.subr.mxu0 %v3038
        %3351 = vmatpush1.msra.mxu0 %v3037
        %3352 = vmatprep.subr.mxu0 %v3054
        %3353 = vmatpush1.msra.mxu0 %v3053
        %3354 = vmatprep.subr.mxu0 %v3070
        %3355 = vmatpush1.msra.mxu0 %v3069
        %3356 = vmatprep.mubr.f32.mxu0 0.00390625
        %3357 = vmatmul.mubr.f32.gmra.mrb[0].mxu0 0.00390625
        %v3358 = vpop.f32.mrb[0].mxu0
        %v3359 = vadd.f32 0.0, %v3358
        %v3360 = vpop.f32.mrb[0].mxu0
        %v3361 = vadd.f32 0.0, %v3360
        %3362 = vdwg.mxu0
        %3363 = vmatprep.subr.mxu0 %v2576
        %3364 = vmatpush1.msra.mxu0 %v2575
        %3365 = vmatprep.subr.mxu0 %v2592
        %3366 = vmatpush1.msra.mxu0 %v2591
        %3367 = vmatprep.subr.mxu0 %v2608
        %3368 = vmatpush1.msra.mxu0 %v2607
        %3369 = vmatprep.subr.mxu0 %v2624
        %3370 = vmatpush1.msra.mxu0 %v2623
        %3371 = vmatprep.subr.mxu0 %v2640
        %3372 = vmatpush1.msra.mxu0 %v2639
        %3373 = vmatprep.subr.mxu0 %v2656
        %3374 = vmatpush1.msra.mxu0 %v2655
        %3375 = vmatprep.subr.mxu0 %v2672
        %3376 = vmatpush1.msra.mxu0 %v2671
        %3377 = vmatprep.subr.mxu0 %v2688
        %3378 = vmatpush1.msra.mxu0 %v2687
        %3379 = vmatprep.subr.mxu0 %v2704
        %3380 = vmatpush1.msra.mxu0 %v2703
        %3381 = vmatprep.subr.mxu0 %v2720
        %3382 = vmatpush1.msra.mxu0 %v2719
        %3383 = vmatprep.subr.mxu0 %v2736
        %3384 = vmatpush1.msra.mxu0 %v2735
        %3385 = vmatprep.subr.mxu0 %v2752
        %3386 = vmatpush1.msra.mxu0 %v2751
        %3387 = vmatprep.subr.mxu0 %v2768
        %3388 = vmatpush1.msra.mxu0 %v2767
        %3389 = vmatprep.subr.mxu0 %v2784
        %3390 = vmatpush1.msra.mxu0 %v2783
        %3391 = vmatprep.subr.mxu0 %v2800
        %3392 = vmatpush1.msra.mxu0 %v2799
        %3393 = vmatprep.subr.mxu0 %v2816
        %3394 = vmatpush1.msra.mxu0 %v2815
        %3395 = vmatprep.subr.mxu0 %v2832
        %3396 = vmatpush1.msra.mxu0 %v2831
        %3397 = vmatprep.subr.mxu0 %v2848
        %3398 = vmatpush1.msra.mxu0 %v2847
        %3399 = vmatprep.subr.mxu0 %v2864
        %3400 = vmatpush1.msra.mxu0 %v2863
        %3401 = vmatprep.subr.mxu0 %v2880
        %3402 = vmatpush1.msra.mxu0 %v2879
        %3403 = vmatprep.subr.mxu0 %v2896
        %3404 = vmatpush1.msra.mxu0 %v2895
        %3405 = vmatprep.subr.mxu0 %v2912
        %3406 = vmatpush1.msra.mxu0 %v2911
        %3407 = vmatprep.subr.mxu0 %v2928
        %3408 = vmatpush1.msra.mxu0 %v2927
        %3409 = vmatprep.subr.mxu0 %v2944
        %3410 = vmatpush1.msra.mxu0 %v2943
        %3411 = vmatprep.subr.mxu0 %v2960
        %3412 = vmatpush1.msra.mxu0 %v2959
        %3413 = vmatprep.subr.mxu0 %v2976
        %3414 = vmatpush1.msra.mxu0 %v2975
        %3415 = vmatprep.subr.mxu0 %v2992
        %3416 = vmatpush1.msra.mxu0 %v2991
        %3417 = vmatprep.subr.mxu0 %v3008
        %3418 = vmatpush1.msra.mxu0 %v3007
        %3419 = vmatprep.subr.mxu0 %v3024
        %3420 = vmatpush1.msra.mxu0 %v3023
        %3421 = vmatprep.subr.mxu0 %v3040
        %3422 = vmatpush1.msra.mxu0 %v3039
        %3423 = vmatprep.subr.mxu0 %v3056
        %3424 = vmatpush1.msra.mxu0 %v3055
        %3425 = vmatprep.subr.mxu0 %v3072
        %3426 = vmatpush1.msra.mxu0 %v3071
        %3427 = vmatprep.mubr.f32.mxu0 0.00390625
        %3428 = vmatmul.mubr.f32.gmra.mrb[0].mxu0 0.00390625
        %v3429 = vpop.f32.mrb[0].mxu0
        %v3430 = vadd.f32 0.0, %v3429
        %v3431 = vpop.f32.mrb[0].mxu0
        %v3432 = vadd.f32 0.0, %v3431
        %3433 = vdwg.mxu0
        %3434 = vmatprep.subr.mxu0 %v2578
        %3435 = vmatpush1.msra.mxu0 %v2577
        %3436 = vmatprep.subr.mxu0 %v2594
        %3437 = vmatpush1.msra.mxu0 %v2593
        %3438 = vmatprep.subr.mxu0 %v2610
        %3439 = vmatpush1.msra.mxu0 %v2609
        %3440 = vmatprep.subr.mxu0 %v2626
        %3441 = vmatpush1.msra.mxu0 %v2625
        %3442 = vmatprep.subr.mxu0 %v2642
        %3443 = vmatpush1.msra.mxu0 %v2641
        %3444 = vmatprep.subr.mxu0 %v2658
        %3445 = vmatpush1.msra.mxu0 %v2657
        %3446 = vmatprep.subr.mxu0 %v2674
        %3447 = vmatpush1.msra.mxu0 %v2673
        %3448 = vmatprep.subr.mxu0 %v2690
        %3449 = vmatpush1.msra.mxu0 %v2689
        %3450 = vmatprep.subr.mxu0 %v2706
        %3451 = vmatpush1.msra.mxu0 %v2705
        %3452 = vmatprep.subr.mxu0 %v2722
        %3453 = vmatpush1.msra.mxu0 %v2721
        %3454 = vmatprep.subr.mxu0 %v2738
        %3455 = vmatpush1.msra.mxu0 %v2737
        %3456 = vmatprep.subr.mxu0 %v2754
        %3457 = vmatpush1.msra.mxu0 %v2753
        %3458 = vmatprep.subr.mxu0 %v2770
        %3459 = vmatpush1.msra.mxu0 %v2769
        %3460 = vmatprep.subr.mxu0 %v2786
        %3461 = vmatpush1.msra.mxu0 %v2785
        %3462 = vmatprep.subr.mxu0 %v2802
        %3463 = vmatpush1.msra.mxu0 %v2801
        %3464 = vmatprep.subr.mxu0 %v2818
        %3465 = vmatpush1.msra.mxu0 %v2817
        %3466 = vmatprep.subr.mxu0 %v2834
        %3467 = vmatpush1.msra.mxu0 %v2833
        %3468 = vmatprep.subr.mxu0 %v2850
        %3469 = vmatpush1.msra.mxu0 %v2849
        %3470 = vmatprep.subr.mxu0 %v2866
        %3471 = vmatpush1.msra.mxu0 %v2865
        %3472 = vmatprep.subr.mxu0 %v2882
        %3473 = vmatpush1.msra.mxu0 %v2881
        %3474 = vmatprep.subr.mxu0 %v2898
        %3475 = vmatpush1.msra.mxu0 %v2897
        %3476 = vmatprep.subr.mxu0 %v2914
        %3477 = vmatpush1.msra.mxu0 %v2913
        %3478 = vmatprep.subr.mxu0 %v2930
        %3479 = vmatpush1.msra.mxu0 %v2929
        %3480 = vmatprep.subr.mxu0 %v2946
        %3481 = vmatpush1.msra.mxu0 %v2945
        %3482 = vmatprep.subr.mxu0 %v2962
        %3483 = vmatpush1.msra.mxu0 %v2961
        %3484 = vmatprep.subr.mxu0 %v2978
        %3485 = vmatpush1.msra.mxu0 %v2977
        %3486 = vmatprep.subr.mxu0 %v2994
        %3487 = vmatpush1.msra.mxu0 %v2993
        %3488 = vmatprep.subr.mxu0 %v3010
        %3489 = vmatpush1.msra.mxu0 %v3009
        %3490 = vmatprep.subr.mxu0 %v3026
        %3491 = vmatpush1.msra.mxu0 %v3025
        %3492 = vmatprep.subr.mxu0 %v3042
        %3493 = vmatpush1.msra.mxu0 %v3041
        %3494 = vmatprep.subr.mxu0 %v3058
        %3495 = vmatpush1.msra.mxu0 %v3057
        %3496 = vmatprep.subr.mxu0 %v3074
        %3497 = vmatpush1.msra.mxu0 %v3073
        %3498 = vmatprep.mubr.f32.mxu0 0.00390625
        %3499 = vmatmul.mubr.f32.gmra.mrb[0].mxu0 0.00390625
        %v3500 = vpop.f32.mrb[0].mxu0
        %v3501 = vadd.f32 0.0, %v3500
        %v3502 = vpop.f32.mrb[0].mxu0
        %v3503 = vadd.f32 0.0, %v3502
        %3504 = vdwg.mxu0
        %3505 = vmatprep.subr.mxu0 %v2580
        %3506 = vmatpush1.msra.mxu0 %v2579
        %3507 = vmatprep.subr.mxu0 %v2596
        %3508 = vmatpush1.msra.mxu0 %v2595
        %3509 = vmatprep.subr.mxu0 %v2612
        %3510 = vmatpush1.msra.mxu0 %v2611
        %3511 = vmatprep.subr.mxu0 %v2628
        %3512 = vmatpush1.msra.mxu0 %v2627
        %3513 = vmatprep.subr.mxu0 %v2644
        %3514 = vmatpush1.msra.mxu0 %v2643
        %3515 = vmatprep.subr.mxu0 %v2660
        %3516 = vmatpush1.msra.mxu0 %v2659
        %3517 = vmatprep.subr.mxu0 %v2676
        %3518 = vmatpush1.msra.mxu0 %v2675
        %3519 = vmatprep.subr.mxu0 %v2692
        %3520 = vmatpush1.msra.mxu0 %v2691
        %3521 = vmatprep.subr.mxu0 %v2708
        %3522 = vmatpush1.msra.mxu0 %v2707
        %3523 = vmatprep.subr.mxu0 %v2724
        %3524 = vmatpush1.msra.mxu0 %v2723
        %3525 = vmatprep.subr.mxu0 %v2740
        %3526 = vmatpush1.msra.mxu0 %v2739
        %3527 = vmatprep.subr.mxu0 %v2756
        %3528 = vmatpush1.msra.mxu0 %v2755
        %3529 = vmatprep.subr.mxu0 %v2772
        %3530 = vmatpush1.msra.mxu0 %v2771
        %3531 = vmatprep.subr.mxu0 %v2788
        %3532 = vmatpush1.msra.mxu0 %v2787
        %3533 = vmatprep.subr.mxu0 %v2804
        %3534 = vmatpush1.msra.mxu0 %v2803
        %3535 = vmatprep.subr.mxu0 %v2820
        %3536 = vmatpush1.msra.mxu0 %v2819
        %3537 = vmatprep.subr.mxu0 %v2836
        %3538 = vmatpush1.msra.mxu0 %v2835
        %3539 = vmatprep.subr.mxu0 %v2852
        %3540 = vmatpush1.msra.mxu0 %v2851
        %3541 = vmatprep.subr.mxu0 %v2868
        %3542 = vmatpush1.msra.mxu0 %v2867
        %3543 = vmatprep.subr.mxu0 %v2884
        %3544 = vmatpush1.msra.mxu0 %v2883
        %3545 = vmatprep.subr.mxu0 %v2900
        %3546 = vmatpush1.msra.mxu0 %v2899
        %3547 = vmatprep.subr.mxu0 %v2916
        %3548 = vmatpush1.msra.mxu0 %v2915
        %3549 = vmatprep.subr.mxu0 %v2932
        %3550 = vmatpush1.msra.mxu0 %v2931
        %3551 = vmatprep.subr.mxu0 %v2948
        %3552 = vmatpush1.msra.mxu0 %v2947
        %3553 = vmatprep.subr.mxu0 %v2964
        %3554 = vmatpush1.msra.mxu0 %v2963
        %3555 = vmatprep.subr.mxu0 %v2980
        %3556 = vmatpush1.msra.mxu0 %v2979
        %3557 = vmatprep.subr.mxu0 %v2996
        %3558 = vmatpush1.msra.mxu0 %v2995
        %3559 = vmatprep.subr.mxu0 %v3012
        %3560 = vmatpush1.msra.mxu0 %v3011
        %3561 = vmatprep.subr.mxu0 %v3028
        %3562 = vmatpush1.msra.mxu0 %v3027
        %3563 = vmatprep.subr.mxu0 %v3044
        %3564 = vmatpush1.msra.mxu0 %v3043
        %3565 = vmatprep.subr.mxu0 %v3060
        %3566 = vmatpush1.msra.mxu0 %v3059
        %3567 = vmatprep.subr.mxu0 %v3076
        %3568 = vmatpush1.msra.mxu0 %v3075
        %3569 = vmatprep.mubr.f32.mxu0 0.00390625
        %3570 = vmatmul.mubr.f32.gmra.mrb[0].mxu0 0.00390625
        %v3571 = vpop.f32.mrb[0].mxu0
        %v3572 = vadd.f32 0.0, %v3571
        %v3573 = vpop.f32.mrb[0].mxu0
        %v3574 = vadd.f32 0.0, %v3573
        %3575 = vdwg.mxu0
        %3576 = vmatprep.subr.mxu0 %v2582
        %3577 = vmatpush1.msra.mxu0 %v2581
        %3578 = vmatprep.subr.mxu0 %v2598
        %3579 = vmatpush1.msra.mxu0 %v2597
        %3580 = vmatprep.subr.mxu0 %v2614
        %3581 = vmatpush1.msra.mxu0 %v2613
        %3582 = vmatprep.subr.mxu0 %v2630
        %3583 = vmatpush1.msra.mxu0 %v2629
        %3584 = vmatprep.subr.mxu0 %v2646
        %3585 = vmatpush1.msra.mxu0 %v2645
        %3586 = vmatprep.subr.mxu0 %v2662
        %3587 = vmatpush1.msra.mxu0 %v2661
        %3588 = vmatprep.subr.mxu0 %v2678
        %3589 = vmatpush1.msra.mxu0 %v2677
        %3590 = vmatprep.subr.mxu0 %v2694
        %3591 = vmatpush1.msra.mxu0 %v2693
        %3592 = vmatprep.subr.mxu0 %v2710
        %3593 = vmatpush1.msra.mxu0 %v2709
        %3594 = vmatprep.subr.mxu0 %v2726
        %3595 = vmatpush1.msra.mxu0 %v2725
        %3596 = vmatprep.subr.mxu0 %v2742
        %3597 = vmatpush1.msra.mxu0 %v2741
        %3598 = vmatprep.subr.mxu0 %v2758
        %3599 = vmatpush1.msra.mxu0 %v2757
        %3600 = vmatprep.subr.mxu0 %v2774
        %3601 = vmatpush1.msra.mxu0 %v2773
        %3602 = vmatprep.subr.mxu0 %v2790
        %3603 = vmatpush1.msra.mxu0 %v2789
        %3604 = vmatprep.subr.mxu0 %v2806
        %3605 = vmatpush1.msra.mxu0 %v2805
        %3606 = vmatprep.subr.mxu0 %v2822
        %3607 = vmatpush1.msra.mxu0 %v2821
        %3608 = vmatprep.subr.mxu0 %v2838
        %3609 = vmatpush1.msra.mxu0 %v2837
        %3610 = vmatprep.subr.mxu0 %v2854
        %3611 = vmatpush1.msra.mxu0 %v2853
        %3612 = vmatprep.subr.mxu0 %v2870
        %3613 = vmatpush1.msra.mxu0 %v2869
        %3614 = vmatprep.subr.mxu0 %v2886
        %3615 = vmatpush1.msra.mxu0 %v2885
        %3616 = vmatprep.subr.mxu0 %v2902
        %3617 = vmatpush1.msra.mxu0 %v2901
        %3618 = vmatprep.subr.mxu0 %v2918
        %3619 = vmatpush1.msra.mxu0 %v2917
        %3620 = vmatprep.subr.mxu0 %v2934
        %3621 = vmatpush1.msra.mxu0 %v2933
        %3622 = vmatprep.subr.mxu0 %v2950
        %3623 = vmatpush1.msra.mxu0 %v2949
        %3624 = vmatprep.subr.mxu0 %v2966
        %3625 = vmatpush1.msra.mxu0 %v2965
        %3626 = vmatprep.subr.mxu0 %v2982
        %3627 = vmatpush1.msra.mxu0 %v2981
        %3628 = vmatprep.subr.mxu0 %v2998
        %3629 = vmatpush1.msra.mxu0 %v2997
        %3630 = vmatprep.subr.mxu0 %v3014
        %3631 = vmatpush1.msra.mxu0 %v3013
        %3632 = vmatprep.subr.mxu0 %v3030
        %3633 = vmatpush1.msra.mxu0 %v3029
        %3634 = vmatprep.subr.mxu0 %v3046
        %3635 = vmatpush1.msra.mxu0 %v3045
        %3636 = vmatprep.subr.mxu0 %v3062
        %3637 = vmatpush1.msra.mxu0 %v3061
        %3638 = vmatprep.subr.mxu0 %v3078
        %3639 = vmatpush1.msra.mxu0 %v3077
        %3640 = vmatprep.mubr.f32.mxu0 0.00390625
        %3641 = vmatmul.mubr.f32.gmra.mrb[0].mxu0 0.00390625
        %v3642 = vpop.f32.mrb[0].mxu0
        %v3643 = vadd.f32 0.0, %v3642
        %v3644 = vpop.f32.mrb[0].mxu0
        %v3645 = vadd.f32 0.0, %v3644
        %3646 = vdwg.mxu0
        %v3663 = vcombine.low %v3146, %v3148
        %v3664 = vcombine.low %v3217, %v3219
        %v3665 = vcombine.low %v3288, %v3290
        %v3666 = vcombine.low %v3359, %v3361
        %v3668 = vunpack.c.l.s4 1966171168
        %v3669 = vunpack.c.0.s8 %v3668
        %v3670 = vlaneseq
        %v3671 = vshrl.u32 %v3670, 7
        %v3672 = vsub.s32 %v3669, %v3671
        %v3673 = vrot.slane %v3663, %v3672
        %v3675 = vunpack.c.l.s4 1966171168
        %v3676 = vunpack.c.0.s8 %v3675
        %v3677 = vlaneseq
        %v3678 = vshrl.u32 %v3677, 7
        %v3679 = vsub.s32 %v3676, %v3678
        %v3680 = vrot.slane %v3664, %v3679
        %v3682 = vunpack.c.l.s4 1966171168
        %v3683 = vunpack.c.0.s8 %v3682
        %v3684 = vlaneseq
        %v3685 = vshrl.u32 %v3684, 7
        %v3686 = vsub.s32 %v3683, %v3685
        %v3687 = vrot.slane %v3665, %v3686
        %v3689 = vunpack.c.l.s4 1966171168
        %v3690 = vunpack.c.0.s8 %v3689
        %v3691 = vlaneseq
        %v3692 = vshrl.u32 %v3691, 7
        %v3693 = vsub.s32 %v3690, %v3692
        %v3694 = vrot.slane %v3666, %v3693
        %v3695 = vcombine.low %v3673, %v3680
        %v3696 = vcombine.low %v3687, %v3694
        %v3698 = vunpack.c.l.s4 1966171168
        %v3699 = vunpack.c.0.s8 %v3698
        %v3700 = vlaneseq
        %v3701 = vshrl.u32 %v3700, 7
        %v3702 = vsub.s32 %v3699, %v3701
        %v3703 = vrot.slane %v3695, %v3702
        %v3705 = vunpack.c.l.s4 1966171168
        %v3706 = vunpack.c.0.s8 %v3705
        %v3707 = vlaneseq
        %v3708 = vshrl.u32 %v3707, 7
        %v3709 = vsub.s32 %v3706, %v3708
        %v3710 = vrot.slane %v3696, %v3709
        %v3711 = vcombine.low %v3703, %v3710
        %v3712 = vcombine.low %v3430, %v3432
        %v3713 = vcombine.low %v3501, %v3503
        %v3714 = vcombine.low %v3572, %v3574
        %v3715 = vcombine.low %v3643, %v3645
        %v3717 = vunpack.c.l.s4 1966171168
        %v3718 = vunpack.c.0.s8 %v3717
        %v3719 = vlaneseq
        %v3720 = vshrl.u32 %v3719, 7
        %v3721 = vsub.s32 %v3718, %v3720
        %v3722 = vrot.slane %v3712, %v3721
        %v3724 = vunpack.c.l.s4 1966171168
        %v3725 = vunpack.c.0.s8 %v3724
        %v3726 = vlaneseq
        %v3727 = vshrl.u32 %v3726, 7
        %v3728 = vsub.s32 %v3725, %v3727
        %v3729 = vrot.slane %v3713, %v3728
        %v3731 = vunpack.c.l.s4 1966171168
        %v3732 = vunpack.c.0.s8 %v3731
        %v3733 = vlaneseq
        %v3734 = vshrl.u32 %v3733, 7
        %v3735 = vsub.s32 %v3732, %v3734
        %v3736 = vrot.slane %v3714, %v3735
        %v3738 = vunpack.c.l.s4 1966171168
        %v3739 = vunpack.c.0.s8 %v3738
        %v3740 = vlaneseq
        %v3741 = vshrl.u32 %v3740, 7
        %v3742 = vsub.s32 %v3739, %v3741
        %v3743 = vrot.slane %v3715, %v3742
        %v3744 = vcombine.low %v3722, %v3729
        %v3745 = vcombine.low %v3736, %v3743
        %v3747 = vunpack.c.l.s4 1966171168
        %v3748 = vunpack.c.0.s8 %v3747
        %v3749 = vlaneseq
        %v3750 = vshrl.u32 %v3749, 7
        %v3751 = vsub.s32 %v3748, %v3750
        %v3752 = vrot.slane %v3744, %v3751
        %v3754 = vunpack.c.l.s4 1966171168
        %v3755 = vunpack.c.0.s8 %v3754
        %v3756 = vlaneseq
        %v3757 = vshrl.u32 %v3756, 7
        %v3758 = vsub.s32 %v3755, %v3757
        %v3759 = vrot.slane %v3745, %v3758
        %v3760 = vcombine.low %v3752, %v3759
        %3763 = vst [vmem:[%s279] sm:$0xff] %v3711
        %3764 = vst [vmem:[%s279 + $0x8] sm:$0xff] %v3760
        %p3765 = scmp.lt.s32.totalorder %s19, 1
        %s3766 = scalar_select %p3765, %s19, 1
        %s3767 = smul.addr %s3766, 16
        %s3768 = scalar_lea.vmem %s5, %s3767
        // Predicated region
        $region57: #{hybrid_reid_forward.2} parent=39 // pred_check
          %p3769 = pneg %p147
        $region58: #{hybrid_reid_forward.2} parent=39 // pred_check_branch
          %3771 = sbr.rel (%p3769) target = $region60
        $region59: #{hybrid_reid_forward.2} parent=39 // pred_region
          _
        $region60: #{hybrid_reid_forward.2} parent=39 // pred_fallthru
          _
      $region40: #{hybrid_reid_forward.2} parent=5 // pred_fallthru
        _
      %p3772 = scmp.le.s32.totalorder 2, %s14
      // Predicated region
      $region61: #{hybrid_reid_forward.2} parent=5 // pred_check
        %p3773 = pneg %p3772
      $region62: #{hybrid_reid_forward.2} parent=5 // pred_check_branch
        %3775 = sbr.rel (%p3773) target = $region64
      $region63: #{hybrid_reid_forward.2} parent=5 // pred_region
        %s3776 = ssub.s32 %s14, 2
        // Predicated region
        $region65: #{hybrid_reid_forward.2} parent=63 // pred_check
          %p3777 = pneg %p153
        $region66: #{hybrid_reid_forward.2} parent=63 // pred_check_branch
          %3779 = sbr.rel (%p3777) target = $region68
        $region67: #{hybrid_reid_forward.2} parent=63 // pred_region
          %p3780 = scmp.lt.s32.totalorder %s20, 1
          %s3781 = scalar_select %p3780, %s20, 1
          %s3782 = smul.addr %s3781, 16
          %s3783 = scalar_lea.vmem %s5, %s3782
        $region68: #{hybrid_reid_forward.2} parent=63 // pred_fallthru
          _
      $region64: #{hybrid_reid_forward.2} parent=5 // pred_fallthru
        _
    $region6: #{hybrid_reid_forward.2} parent=1 // loop_footer
      %s18 = sadd.s32 1, %s14
    $region7: #{hybrid_reid_forward.2} parent=1 // loop_footer_branch
      %13 = sbr.rel target = $region3
    $region8: #{hybrid_reid_forward.2} parent=1 // loop_exit
      _
    %3784 = vsyncpa [#allocation3], 1
    %s3785 = scalar_lea.sflag [#allocation3], 1
    %3786 = vsyncpa %s3785, 1
    %3787 = vsyncpa [#allocation5], 1
    %3788 = vsyncpa [#allocation8], 1

</llo_original>
